<compile_context>
chip_gen: v7x
topology: tpu7x:2x2x1
jax: 0.10.0
libtpu: 0.0.40
codegen_flags: <defaults>
</compile_context>

<pallas_src>
import jax
import jax.numpy as jnp
from jax import lax
from jax.experimental import pallas as pl
from jax.experimental.pallas import tpu as pltpu

NC = 3      # output image channels
NGF = 2     # generator feature maps
NZ = 100    # latent dim
KS = 4      # conv-transpose kernel size
EPS = 1e-5  # BatchNorm eps (PyTorch default)

_VMEM = pl.BlockSpec(memory_space=pltpu.MemorySpace.VMEM)

# Output row parity r (oh = 2q + r) is produced by kernel taps kh in _KH[r];
# tap k reads the 1-padded input starting at row/col _TAP_START[k].
_KH = ((1, 3), (0, 2))
_TAP_START = (2, 1, 1, 0)          # == (4 - k) // 2


# ------------------------------ Pallas kernels ------------------------------

def _l1_bn_relu_kernel(z_ref, w_ref, g_ref, b_ref, o_ref):
    """Layer 1: ConvTranspose(nz, C, 4, 1, 0) on a 1x1 input + BN + ReLU.

    z: (N, NZ) bf16; w: (NZ, 16*C) bf16 with columns ordered (spatial, channel);
    g, b: (1, C) f32; o: (N, 16*C) f32.
    """
    n = z_ref.shape[0]
    c = g_ref.shape[1]
    h = jnp.dot(z_ref[...], w_ref[...],
                preferred_element_type=jnp.float32)                  # (N, 16C)
    cnt = 16.0 * n
    colsum = jnp.sum(h, axis=0, keepdims=True)                       # (1, 16C)
    mean = sum(colsum[:, s * c:(s + 1) * c] for s in range(16)) / cnt    # (1, C)
    d = h - jnp.tile(mean, (1, 16))
    sqsum = jnp.sum(d * d, axis=0, keepdims=True)                    # (1, 16C)
    var = sum(sqsum[:, s * c:(s + 1) * c] for s in range(16)) / cnt      # (1, C)
    scale = g_ref[...] * lax.rsqrt(var + EPS)
    shift = b_ref[...] - mean * scale
    o_ref[...] = jnp.maximum(
        h * jnp.tile(scale, (1, 16)) + jnp.tile(shift, (1, 16)), 0.0)


def _deconv_bn_relu_kernel(x_ref, w_ref, g_ref, b_ref, o_ref):
    """ConvTranspose(k=4, s=2, p=1) as 4 parity GEMMs + BatchNorm + ReLU.

    x: (4, K, M) bf16; w: (4, C, K) bf16; g, b: (C, 1) f32; o: (C, 4*M) f32.
    """
    m = x_ref.shape[2]
    raw = jnp.concatenate(
        [jnp.dot(w_ref[p], x_ref[p], preferred_element_type=jnp.float32)
         for p in range(4)], axis=1)                                 # (C, 4M)
    cnt = 4.0 * m
    mean = jnp.sum(raw, axis=1, keepdims=True) / cnt                 # (C, 1)
    d = raw - mean
    var = jnp.sum(d * d, axis=1, keepdims=True) / cnt
    scale = g_ref[...] * lax.rsqrt(var + EPS)
    shift = b_ref[...] - mean * scale
    o_ref[...] = jnp.maximum(raw * scale + shift, 0.0)


def _deconv_tanh_kernel(x_ref, w_ref, o_ref):
    """Last ConvTranspose(k=4, s=2, p=1) as 4 parity GEMMs + tanh."""
    o_ref[...] = jnp.concatenate(
        [jnp.tanh(jnp.dot(w_ref[p], x_ref[p],
                          preferred_element_type=jnp.float32))
         for p in range(4)], axis=1)                                 # (C, 4M)


# ------------------------------ kernel wrappers ------------------------------

def _l1_call(z2d, w1p, gamma, beta):
    n = z2d.shape[0]
    c = gamma.shape[0]
    return pl.pallas_call(
        _l1_bn_relu_kernel,
        out_shape=jax.ShapeDtypeStruct((n, 16 * c), jnp.float32),
        in_specs=[_VMEM, _VMEM, _VMEM, _VMEM],
        out_specs=_VMEM,
    )(z2d.astype(jnp.bfloat16), w1p, gamma.reshape(1, c), beta.reshape(1, c))


def _deconv_bn_relu_call(xt, wt, gamma, beta):
    c = wt.shape[1]
    m = xt.shape[2]
    return pl.pallas_call(
        _deconv_bn_relu_kernel,
        out_shape=jax.ShapeDtypeStruct((c, 4 * m), jnp.float32),
        in_specs=[_VMEM, _VMEM, _VMEM, _VMEM],
        out_specs=_VMEM,
    )(xt, wt, gamma.reshape(c, 1), beta.reshape(c, 1))


def _deconv_tanh_call(xt, wt):
    c = wt.shape[1]
    m = xt.shape[2]
    return pl.pallas_call(
        _deconv_tanh_kernel,
        out_shape=jax.ShapeDtypeStruct((c, 4 * m), jnp.float32),
        in_specs=[_VMEM, _VMEM],
        out_specs=_VMEM,
    )(xt, wt)


# ------------------------------- XLA glue -----------------------------------
# TODO(synk): the pad / shifted-slice / parity-interleave re-layouts between
# layers stay in XLA (tiny tensors); moving them into Mosaic would need
# in-kernel transposes with no clear win.

def _prep_parity_lhs(h):
    """h: (N, Cin, H, W) f32 -> (4, 4*Cin, N*H*W) bf16 parity-grouped GEMM RHS."""
    n, cin, hh, ww = h.shape
    hp = jnp.pad(h, ((0, 0), (0, 0), (1, 1), (1, 1)))
    mats = []
    for r in (0, 1):
        for v in (0, 1):
            taps = [hp[:, :,
                       _TAP_START[kh]:_TAP_START[kh] + hh,
                       _TAP_START[kw]:_TAP_START[kw] + ww]
                    for kh in _KH[r] for kw in _KH[v]]
            x = jnp.concatenate(taps, axis=1)                  # (N, 4Cin, H, W)
            x = x.transpose(1, 0, 2, 3).reshape(4 * cin, n * hh * ww)
            mats.append(x)
    return jnp.stack(mats, axis=0).astype(jnp.bfloat16)        # (4, 4Cin, M)


def _prep_parity_weights(w):
    """w: (Cin, Cout, 4, 4) -> (4, Cout, 4*Cin) bf16, K order matching the LHS."""
    ws = []
    for r in (0, 1):
        for v in (0, 1):
            blk = jnp.concatenate(
                [w[:, :, kh, kw] for kh in _KH[r] for kw in _KH[v]], axis=0)
            ws.append(blk.T)                                   # (Cout, 4Cin)
    return jnp.stack(ws, axis=0).astype(jnp.bfloat16)


def _parity_to_nchw(o, n, c, hh, ww):
    """o: (C, 4*N*H*W) parity-major lanes -> (N, C, 2H, 2W) NCHW."""
    t = o.reshape(c, 2, 2, n, hh, ww)            # (c, r, v, n, q, u)
    t = t.transpose(3, 0, 4, 1, 5, 2)            # (n, c, q, r, u, v)
    return t.reshape(n, c, 2 * hh, 2 * ww)


# ----------------------------- parameter setup -------------------------------

def init_params(key):
    """DCGAN-style init: conv weights ~ N(0, 0.02), BN gamma ~ N(1, 0.02), beta = 0."""
    layer_defs = [
        # (Cin, Cout, stride, padding, has_bn)
        (NZ,      NGF * 8, 1, 0, True),
        (NGF * 8, NGF * 4, 2, 1, True),
        (NGF * 4, NGF * 2, 2, 1, True),
        (NGF * 2, NGF,     2, 1, True),
        (NGF,     NC,      2, 1, False),
    ]
    params = []
    for idx, (cin, cout, s, p, has_bn) in enumerate(layer_defs):
        key, kw_, kg_ = jax.random.split(key, 3)
        w = 0.02 * jax.random.normal(kw_, (cin, cout, KS, KS), jnp.float32)
        if has_bn:
            gamma = 1.0 + 0.02 * jax.random.normal(kg_, (cout,), jnp.float32)
            beta = jnp.zeros((cout,), jnp.float32)
        else:
            gamma = beta = None
        entry = dict(w=w, gamma=gamma, beta=beta, stride=s, pad=p, has_bn=has_bn)
        if idx == 0:
            # (NZ, 16*Cout) with columns ordered (spatial, channel).
            entry["w1p"] = (w.transpose(0, 2, 3, 1)
                             .reshape(cin, 16 * cout).astype(jnp.bfloat16))
        else:
            entry["wp"] = _prep_parity_weights(w)
        params.append(entry)
    return params


# -------------------------------- forward ------------------------------------

def generator_forward(z, params):
    """z: (N, nz, 1, 1) -> (N, nc, 64, 64), matching the PyTorch Generator."""
    n = z.shape[0]

    # layer 1: ConvTranspose(nz, 8*ngf, 4, 1, 0) + BN + ReLU (single dense GEMM)
    p1 = params[0]
    c1 = p1["w"].shape[1]
    o1 = _l1_call(z.reshape(n, NZ), p1["w1p"], p1["gamma"], p1["beta"])  # (N, 16*C1)
    h = o1.reshape(n, 4, 4, c1).transpose(0, 3, 1, 2)                    # (N, C1, 4, 4)

    # layers 2..4: ConvTranspose(k=4, s=2, p=1) + BN + ReLU (fused per layer)
    for layer in params[1:-1]:
        cout = layer["w"].shape[1]
        _, _, hh, ww = h.shape
        xt = _prep_parity_lhs(h)
        o = _deconv_bn_relu_call(xt, layer["wp"], layer["gamma"], layer["beta"])
        h = _parity_to_nchw(o, n, cout, hh, ww)

    # layer 5: ConvTranspose(ngf, nc, 4, 2, 1) + Tanh (fused)
    last = params[-1]
    cout = last["w"].shape[1]
    _, _, hh, ww = h.shape
    xt = _prep_parity_lhs(h)
    o = _deconv_tanh_call(xt, last["wp"])
    return _parity_to_nchw(o, n, cout, hh, ww)


# --------------------------- pure-JAX reference -------------------------------

def _ref_conv_transpose(x, w, stride, padding):
    wf = jnp.flip(w, (2, 3)).transpose(1, 0, 2, 3)        # (Cout, Cin, kh, kw)
    pad = KS - 1 - padding
    return lax.conv_general_dilated(
        x, wf, window_strides=(1, 1), padding=[(pad, pad), (pad, pad)],
        lhs_dilation=(stride, stride),
        dimension_numbers=("NCHW", "OIHW", "NCHW"),
        precision=lax.Precision.HIGHEST)


def _ref_forward(z, params):
    h = z
    for layer in params:
        h = _ref_conv_transpose(h, layer["w"], layer["stride"], layer["pad"])
        if layer["has_bn"]:
            mean = jnp.mean(h, axis=(0, 2, 3), keepdims=True)
            var = jnp.mean((h - mean) ** 2, axis=(0, 2, 3), keepdims=True)
            h = (h - mean) * lax.rsqrt(var + EPS)
            h = h * layer["gamma"].reshape(1, -1, 1, 1) + layer["beta"].reshape(1, -1, 1, 1)
            h = jnp.maximum(h, 0.0)
    return jnp.tanh(h)


# ----------------------------------- main -------------------------------------

if __name__ == "__main__":
    key = jax.random.PRNGKey(0)
    key, kz = jax.random.split(key)

    params = init_params(key)

    batch = 2
    z = jax.random.normal(kz, (batch, NZ, 1, 1), jnp.float32)

    fwd = jax.jit(lambda zz: generator_forward(zz, params))
    out = jax.block_until_ready(fwd(z))

    assert out.shape == (batch, NC, 64, 64), out.shape
    assert bool(jnp.all(jnp.isfinite(out)))
    assert bool(jnp.all(jnp.abs(out) <= 1.0))          # tanh range

    # cross-check against a pure-JAX (XLA) reference of the same module
    ref = _ref_forward(z, params)
    err = float(jnp.max(jnp.abs(out - ref)))
    assert err < 8e-2, err                             # bf16-GEMM tolerance

    print("KERNEL_OK")
</pallas_src>

<mosaic_0001>
module attributes {stable_mosaic.version = 11 : i64} {
  func.func @_l1_bn_relu_kernel(%arg0: memref<2x100xbf16, #tpu.memory_space<vmem>>, %arg1: memref<100x256xbf16, #tpu.memory_space<vmem>>, %arg2: memref<1x16xf32, #tpu.memory_space<vmem>>, %arg3: memref<1x16xf32, #tpu.memory_space<vmem>>, %arg4: memref<2x256xf32, #tpu.memory_space<vmem>>) attributes {dimension_semantics = [], scalar_prefetch = 0 : i64, scratch_operands = 0 : i64, tpu.core_type = #tpu.core_type<tc>} {
    %c0 = arith.constant 0 : index
    %c0_0 = arith.constant 0 : index
    %0 = vector.load %arg0[%c0, %c0_0] : memref<2x100xbf16, #tpu.memory_space<vmem>>, vector<2x100xbf16>
    %c0_1 = arith.constant 0 : index
    %c0_2 = arith.constant 0 : index
    %1 = vector.load %arg1[%c0_1, %c0_2] : memref<100x256xbf16, #tpu.memory_space<vmem>>, vector<100x256xbf16>
    %cst = arith.constant dense<0.000000e+00> : vector<2x256xf32>
    %2 = tpu.matmul %0, %1, %cst {dimension_numbers = #tpu.dot_dimension_numbers<[1], [0], [0], [1], [0, 0, 1, 1], [], []>} : vector<2x100xbf16>, vector<100x256xbf16>, vector<2x256xf32> -> vector<2x256xf32>
    %cst_3 = arith.constant dense<0.000000e+00> : vector<256xf32>
    %3 = vector.multi_reduction <add>, %2, %cst_3 [0] : vector<2x256xf32> to vector<256xf32>
    %4 = vector.shape_cast %3 : vector<256xf32> to vector<1x256xf32>
    %5 = vector.extract_strided_slice %4 {offsets = [0, 0], sizes = [1, 16], strides = [1, 1]} : vector<1x256xf32> to vector<1x16xf32>
    %cst_4 = arith.constant 0.000000e+00 : f32
    %6 = vector.broadcast %cst_4 : f32 to vector<1x16xf32>
    %7 = arith.addf %6, %5 : vector<1x16xf32>
    %8 = vector.extract_strided_slice %4 {offsets = [0, 16], sizes = [1, 16], strides = [1, 1]} : vector<1x256xf32> to vector<1x16xf32>
    %9 = arith.addf %7, %8 : vector<1x16xf32>
    %10 = vector.extract_strided_slice %4 {offsets = [0, 32], sizes = [1, 16], strides = [1, 1]} : vector<1x256xf32> to vector<1x16xf32>
    %11 = arith.addf %9, %10 : vector<1x16xf32>
    %12 = vector.extract_strided_slice %4 {offsets = [0, 48], sizes = [1, 16], strides = [1, 1]} : vector<1x256xf32> to vector<1x16xf32>
    %13 = arith.addf %11, %12 : vector<1x16xf32>
    %14 = vector.extract_strided_slice %4 {offsets = [0, 64], sizes = [1, 16], strides = [1, 1]} : vector<1x256xf32> to vector<1x16xf32>
    %15 = arith.addf %13, %14 : vector<1x16xf32>
    %16 = vector.extract_strided_slice %4 {offsets = [0, 80], sizes = [1, 16], strides = [1, 1]} : vector<1x256xf32> to vector<1x16xf32>
    %17 = arith.addf %15, %16 : vector<1x16xf32>
    %18 = vector.extract_strided_slice %4 {offsets = [0, 96], sizes = [1, 16], strides = [1, 1]} : vector<1x256xf32> to vector<1x16xf32>
    %19 = arith.addf %17, %18 : vector<1x16xf32>
    %20 = vector.extract_strided_slice %4 {offsets = [0, 112], sizes = [1, 16], strides = [1, 1]} : vector<1x256xf32> to vector<1x16xf32>
    %21 = arith.addf %19, %20 : vector<1x16xf32>
    %22 = vector.extract_strided_slice %4 {offsets = [0, 128], sizes = [1, 16], strides = [1, 1]} : vector<1x256xf32> to vector<1x16xf32>
    %23 = arith.addf %21, %22 : vector<1x16xf32>
    %24 = vector.extract_strided_slice %4 {offsets = [0, 144], sizes = [1, 16], strides = [1, 1]} : vector<1x256xf32> to vector<1x16xf32>
    %25 = arith.addf %23, %24 : vector<1x16xf32>
    %26 = vector.extract_strided_slice %4 {offsets = [0, 160], sizes = [1, 16], strides = [1, 1]} : vector<1x256xf32> to vector<1x16xf32>
    %27 = arith.addf %25, %26 : vector<1x16xf32>
    %28 = vector.extract_strided_slice %4 {offsets = [0, 176], sizes = [1, 16], strides = [1, 1]} : vector<1x256xf32> to vector<1x16xf32>
    %29 = arith.addf %27, %28 : vector<1x16xf32>
    %30 = vector.extract_strided_slice %4 {offsets = [0, 192], sizes = [1, 16], strides = [1, 1]} : vector<1x256xf32> to vector<1x16xf32>
    %31 = arith.addf %29, %30 : vector<1x16xf32>
    %32 = vector.extract_strided_slice %4 {offsets = [0, 208], sizes = [1, 16], strides = [1, 1]} : vector<1x256xf32> to vector<1x16xf32>
    %33 = arith.addf %31, %32 : vector<1x16xf32>
    %34 = vector.extract_strided_slice %4 {offsets = [0, 224], sizes = [1, 16], strides = [1, 1]} : vector<1x256xf32> to vector<1x16xf32>
    %35 = arith.addf %33, %34 : vector<1x16xf32>
    %36 = vector.extract_strided_slice %4 {offsets = [0, 240], sizes = [1, 16], strides = [1, 1]} : vector<1x256xf32> to vector<1x16xf32>
    %37 = arith.addf %35, %36 : vector<1x16xf32>
    %cst_5 = arith.constant 3.200000e+01 : f32
    %38 = vector.broadcast %cst_5 : f32 to vector<1x16xf32>
    %39 = arith.divf %37, %38 : vector<1x16xf32>
    %40 = tpu.concatenate %39, %39, %39, %39, %39, %39, %39, %39, %39, %39, %39, %39, %39, %39, %39, %39 in 1 : vector<1x16xf32>, vector<1x16xf32>, vector<1x16xf32>, vector<1x16xf32>, vector<1x16xf32>, vector<1x16xf32>, vector<1x16xf32>, vector<1x16xf32>, vector<1x16xf32>, vector<1x16xf32>, vector<1x16xf32>, vector<1x16xf32>, vector<1x16xf32>, vector<1x16xf32>, vector<1x16xf32>, vector<1x16xf32> -> vector<1x256xf32>
    %41 = vector.broadcast %40 : vector<1x256xf32> to vector<2x256xf32>
    %42 = arith.subf %2, %41 : vector<2x256xf32>
    %43 = arith.mulf %42, %42 : vector<2x256xf32>
    %cst_6 = arith.constant dense<0.000000e+00> : vector<256xf32>
    %44 = vector.multi_reduction <add>, %43, %cst_6 [0] : vector<2x256xf32> to vector<256xf32>
    %45 = vector.shape_cast %44 : vector<256xf32> to vector<1x256xf32>
    %46 = vector.extract_strided_slice %45 {offsets = [0, 0], sizes = [1, 16], strides = [1, 1]} : vector<1x256xf32> to vector<1x16xf32>
    %cst_7 = arith.constant 0.000000e+00 : f32
    %47 = vector.broadcast %cst_7 : f32 to vector<1x16xf32>
    %48 = arith.addf %47, %46 : vector<1x16xf32>
    %49 = vector.extract_strided_slice %45 {offsets = [0, 16], sizes = [1, 16], strides = [1, 1]} : vector<1x256xf32> to vector<1x16xf32>
    %50 = arith.addf %48, %49 : vector<1x16xf32>
    %51 = vector.extract_strided_slice %45 {offsets = [0, 32], sizes = [1, 16], strides = [1, 1]} : vector<1x256xf32> to vector<1x16xf32>
    %52 = arith.addf %50, %51 : vector<1x16xf32>
    %53 = vector.extract_strided_slice %45 {offsets = [0, 48], sizes = [1, 16], strides = [1, 1]} : vector<1x256xf32> to vector<1x16xf32>
    %54 = arith.addf %52, %53 : vector<1x16xf32>
    %55 = vector.extract_strided_slice %45 {offsets = [0, 64], sizes = [1, 16], strides = [1, 1]} : vector<1x256xf32> to vector<1x16xf32>
    %56 = arith.addf %54, %55 : vector<1x16xf32>
    %57 = vector.extract_strided_slice %45 {offsets = [0, 80], sizes = [1, 16], strides = [1, 1]} : vector<1x256xf32> to vector<1x16xf32>
    %58 = arith.addf %56, %57 : vector<1x16xf32>
    %59 = vector.extract_strided_slice %45 {offsets = [0, 96], sizes = [1, 16], strides = [1, 1]} : vector<1x256xf32> to vector<1x16xf32>
    %60 = arith.addf %58, %59 : vector<1x16xf32>
    %61 = vector.extract_strided_slice %45 {offsets = [0, 112], sizes = [1, 16], strides = [1, 1]} : vector<1x256xf32> to vector<1x16xf32>
    %62 = arith.addf %60, %61 : vector<1x16xf32>
    %63 = vector.extract_strided_slice %45 {offsets = [0, 128], sizes = [1, 16], strides = [1, 1]} : vector<1x256xf32> to vector<1x16xf32>
    %64 = arith.addf %62, %63 : vector<1x16xf32>
    %65 = vector.extract_strided_slice %45 {offsets = [0, 144], sizes = [1, 16], strides = [1, 1]} : vector<1x256xf32> to vector<1x16xf32>
    %66 = arith.addf %64, %65 : vector<1x16xf32>
    %67 = vector.extract_strided_slice %45 {offsets = [0, 160], sizes = [1, 16], strides = [1, 1]} : vector<1x256xf32> to vector<1x16xf32>
    %68 = arith.addf %66, %67 : vector<1x16xf32>
    %69 = vector.extract_strided_slice %45 {offsets = [0, 176], sizes = [1, 16], strides = [1, 1]} : vector<1x256xf32> to vector<1x16xf32>
    %70 = arith.addf %68, %69 : vector<1x16xf32>
    %71 = vector.extract_strided_slice %45 {offsets = [0, 192], sizes = [1, 16], strides = [1, 1]} : vector<1x256xf32> to vector<1x16xf32>
    %72 = arith.addf %70, %71 : vector<1x16xf32>
    %73 = vector.extract_strided_slice %45 {offsets = [0, 208], sizes = [1, 16], strides = [1, 1]} : vector<1x256xf32> to vector<1x16xf32>
    %74 = arith.addf %72, %73 : vector<1x16xf32>
    %75 = vector.extract_strided_slice %45 {offsets = [0, 224], sizes = [1, 16], strides = [1, 1]} : vector<1x256xf32> to vector<1x16xf32>
    %76 = arith.addf %74, %75 : vector<1x16xf32>
    %77 = vector.extract_strided_slice %45 {offsets = [0, 240], sizes = [1, 16], strides = [1, 1]} : vector<1x256xf32> to vector<1x16xf32>
    %78 = arith.addf %76, %77 : vector<1x16xf32>
    %cst_8 = arith.constant 3.200000e+01 : f32
    %79 = vector.broadcast %cst_8 : f32 to vector<1x16xf32>
    %80 = arith.divf %78, %79 : vector<1x16xf32>
    %c0_9 = arith.constant 0 : index
    %c0_10 = arith.constant 0 : index
    %81 = vector.load %arg2[%c0_9, %c0_10] : memref<1x16xf32, #tpu.memory_space<vmem>>, vector<1x16xf32>
    %cst_11 = arith.constant 9.99999974E-6 : f32
    %82 = vector.broadcast %cst_11 : f32 to vector<1x16xf32>
    %83 = arith.addf %80, %82 : vector<1x16xf32>
    %84 = math.rsqrt %83 : vector<1x16xf32>
    %85 = arith.mulf %81, %84 : vector<1x16xf32>
    %c0_12 = arith.constant 0 : index
    %c0_13 = arith.constant 0 : index
    %86 = vector.load %arg3[%c0_12, %c0_13] : memref<1x16xf32, #tpu.memory_space<vmem>>, vector<1x16xf32>
    %87 = arith.mulf %39, %85 : vector<1x16xf32>
    %88 = arith.subf %86, %87 : vector<1x16xf32>
    %89 = tpu.concatenate %85, %85, %85, %85, %85, %85, %85, %85, %85, %85, %85, %85, %85, %85, %85, %85 in 1 : vector<1x16xf32>, vector<1x16xf32>, vector<1x16xf32>, vector<1x16xf32>, vector<1x16xf32>, vector<1x16xf32>, vector<1x16xf32>, vector<1x16xf32>, vector<1x16xf32>, vector<1x16xf32>, vector<1x16xf32>, vector<1x16xf32>, vector<1x16xf32>, vector<1x16xf32>, vector<1x16xf32>, vector<1x16xf32> -> vector<1x256xf32>
    %90 = vector.broadcast %89 : vector<1x256xf32> to vector<2x256xf32>
    %91 = arith.mulf %2, %90 : vector<2x256xf32>
    %92 = tpu.concatenate %88, %88, %88, %88, %88, %88, %88, %88, %88, %88, %88, %88, %88, %88, %88, %88 in 1 : vector<1x16xf32>, vector<1x16xf32>, vector<1x16xf32>, vector<1x16xf32>, vector<1x16xf32>, vector<1x16xf32>, vector<1x16xf32>, vector<1x16xf32>, vector<1x16xf32>, vector<1x16xf32>, vector<1x16xf32>, vector<1x16xf32>, vector<1x16xf32>, vector<1x16xf32>, vector<1x16xf32>, vector<1x16xf32> -> vector<1x256xf32>
    %93 = vector.broadcast %92 : vector<1x256xf32> to vector<2x256xf32>
    %94 = arith.addf %91, %93 : vector<2x256xf32>
    %cst_14 = arith.constant 0.000000e+00 : f32
    %95 = vector.broadcast %cst_14 : f32 to vector<2x256xf32>
    %96 = arith.maximumf %94, %95 : vector<2x256xf32>
    %c0_15 = arith.constant 0 : index
    %c0_16 = arith.constant 0 : index
    %97 = vector.load %arg4[%c0_15, %c0_16] : memref<2x256xf32, #tpu.memory_space<vmem>>, vector<2x256xf32>
    tpu.vector_store %arg4[%c0_15, %c0_16], %96 {strides = array<i32>} : memref<2x256xf32, #tpu.memory_space<vmem>>, vector<2x256xf32>,
    return
  }
}

module attributes {stable_mosaic.version = 11 : i64} {
  func.func @_deconv_bn_relu_kernel(%arg0: memref<4x64x32xbf16, #tpu.memory_space<vmem>>, %arg1: memref<4x8x64xbf16, #tpu.memory_space<vmem>>, %arg2: memref<8x1xf32, #tpu.memory_space<vmem>>, %arg3: memref<8x1xf32, #tpu.memory_space<vmem>>, %arg4: memref<8x128xf32, #tpu.memory_space<vmem>>) attributes {dimension_semantics = [], scalar_prefetch = 0 : i64, scratch_operands = 0 : i64, tpu.core_type = #tpu.core_type<tc>} {
    %c0 = arith.constant 0 : index
    %c0_0 = arith.constant 0 : index
    %c0_1 = arith.constant 0 : index
    %0 = vector.load %arg1[%c0, %c0_0, %c0_1] : memref<4x8x64xbf16, #tpu.memory_space<vmem>>, vector<1x8x64xbf16>
    %1 = vector.shape_cast %0 : vector<1x8x64xbf16> to vector<8x64xbf16>
    %c0_2 = arith.constant 0 : index
    %c0_3 = arith.constant 0 : index
    %c0_4 = arith.constant 0 : index
    %2 = vector.load %arg0[%c0_2, %c0_3, %c0_4] : memref<4x64x32xbf16, #tpu.memory_space<vmem>>, vector<1x64x32xbf16>
    %3 = vector.shape_cast %2 : vector<1x64x32xbf16> to vector<64x32xbf16>
    %cst = arith.constant dense<0.000000e+00> : vector<8x32xf32>
    %4 = tpu.matmul %1, %3, %cst {dimension_numbers = #tpu.dot_dimension_numbers<[1], [0], [0], [1], [0, 0, 1, 1], [], []>} : vector<8x64xbf16>, vector<64x32xbf16>, vector<8x32xf32> -> vector<8x32xf32>
    %c1 = arith.constant 1 : index
    %c0_5 = arith.constant 0 : index
    %c0_6 = arith.constant 0 : index
    %5 = vector.load %arg1[%c1, %c0_5, %c0_6] : memref<4x8x64xbf16, #tpu.memory_space<vmem>>, vector<1x8x64xbf16>
    %6 = vector.shape_cast %5 : vector<1x8x64xbf16> to vector<8x64xbf16>
    %c1_7 = arith.constant 1 : index
    %c0_8 = arith.constant 0 : index
    %c0_9 = arith.constant 0 : index
    %7 = vector.load %arg0[%c1_7, %c0_8, %c0_9] : memref<4x64x32xbf16, #tpu.memory_space<vmem>>, vector<1x64x32xbf16>
    %8 = vector.shape_cast %7 : vector<1x64x32xbf16> to vector<64x32xbf16>
    %cst_10 = arith.constant dense<0.000000e+00> : vector<8x32xf32>
    %9 = tpu.matmul %6, %8, %cst_10 {dimension_numbers = #tpu.dot_dimension_numbers<[1], [0], [0], [1], [0, 0, 1, 1], [], []>} : vector<8x64xbf16>, vector<64x32xbf16>, vector<8x32xf32> -> vector<8x32xf32>
    %c2 = arith.constant 2 : index
    %c0_11 = arith.constant 0 : index
    %c0_12 = arith.constant 0 : index
    %10 = vector.load %arg1[%c2, %c0_11, %c0_12] : memref<4x8x64xbf16, #tpu.memory_space<vmem>>, vector<1x8x64xbf16>
    %11 = vector.shape_cast %10 : vector<1x8x64xbf16> to vector<8x64xbf16>
    %c2_13 = arith.constant 2 : index
    %c0_14 = arith.constant 0 : index
    %c0_15 = arith.constant 0 : index
    %12 = vector.load %arg0[%c2_13, %c0_14, %c0_15] : memref<4x64x32xbf16, #tpu.memory_space<vmem>>, vector<1x64x32xbf16>
    %13 = vector.shape_cast %12 : vector<1x64x32xbf16> to vector<64x32xbf16>
    %cst_16 = arith.constant dense<0.000000e+00> : vector<8x32xf32>
    %14 = tpu.matmul %11, %13, %cst_16 {dimension_numbers = #tpu.dot_dimension_numbers<[1], [0], [0], [1], [0, 0, 1, 1], [], []>} : vector<8x64xbf16>, vector<64x32xbf16>, vector<8x32xf32> -> vector<8x32xf32>
    %c3 = arith.constant 3 : index
    %c0_17 = arith.constant 0 : index
    %c0_18 = arith.constant 0 : index
    %15 = vector.load %arg1[%c3, %c0_17, %c0_18] : memref<4x8x64xbf16, #tpu.memory_space<vmem>>, vector<1x8x64xbf16>
    %16 = vector.shape_cast %15 : vector<1x8x64xbf16> to vector<8x64xbf16>
    %c3_19 = arith.constant 3 : index
    %c0_20 = arith.constant 0 : index
    %c0_21 = arith.constant 0 : index
    %17 = vector.load %arg0[%c3_19, %c0_20, %c0_21] : memref<4x64x32xbf16, #tpu.memory_space<vmem>>, vector<1x64x32xbf16>
    %18 = vector.shape_cast %17 : vector<1x64x32xbf16> to vector<64x32xbf16>
    %cst_22 = arith.constant dense<0.000000e+00> : vector<8x32xf32>
    %19 = tpu.matmul %16, %18, %cst_22 {dimension_numbers = #tpu.dot_dimension_numbers<[1], [0], [0], [1], [0, 0, 1, 1], [], []>} : vector<8x64xbf16>, vector<64x32xbf16>, vector<8x32xf32> -> vector<8x32xf32>
    %20 = tpu.concatenate %4, %9, %14, %19 in 1 : vector<8x32xf32>, vector<8x32xf32>, vector<8x32xf32>, vector<8x32xf32> -> vector<8x128xf32>
    %cst_23 = arith.constant dense<0.000000e+00> : vector<8xf32>
    %21 = vector.multi_reduction <add>, %20, %cst_23 [1] : vector<8x128xf32> to vector<8xf32>
    %22 = vector.shape_cast %21 : vector<8xf32> to vector<8x1xf32>
    %cst_24 = arith.constant 1.280000e+02 : f32
    %23 = vector.broadcast %cst_24 : f32 to vector<8x1xf32>
    %24 = arith.divf %22, %23 : vector<8x1xf32>
    %25 = vector.broadcast %24 : vector<8x1xf32> to vector<8x128xf32>
    %26 = arith.subf %20, %25 : vector<8x128xf32>
    %27 = arith.mulf %26, %26 : vector<8x128xf32>
    %cst_25 = arith.constant dense<0.000000e+00> : vector<8xf32>
    %28 = vector.multi_reduction <add>, %27, %cst_25 [1] : vector<8x128xf32> to vector<8xf32>
    %29 = vector.shape_cast %28 : vector<8xf32> to vector<8x1xf32>
    %cst_26 = arith.constant 1.280000e+02 : f32
    %30 = vector.broadcast %cst_26 : f32 to vector<8x1xf32>
    %31 = arith.divf %29, %30 : vector<8x1xf32>
    %c0_27 = arith.constant 0 : index
    %c0_28 = arith.constant 0 : index
    %32 = vector.load %arg2[%c0_27, %c0_28] : memref<8x1xf32, #tpu.memory_space<vmem>>, vector<8x1xf32>
    %cst_29 = arith.constant 9.99999974E-6 : f32
    %33 = vector.broadcast %cst_29 : f32 to vector<8x1xf32>
    %34 = arith.addf %31, %33 : vector<8x1xf32>
    %35 = math.rsqrt %34 : vector<8x1xf32>
    %36 = arith.mulf %32, %35 : vector<8x1xf32>
    %c0_30 = arith.constant 0 : index
    %c0_31 = arith.constant 0 : index
    %37 = vector.load %arg3[%c0_30, %c0_31] : memref<8x1xf32, #tpu.memory_space<vmem>>, vector<8x1xf32>
    %38 = arith.mulf %24, %36 : vector<8x1xf32>
    %39 = arith.subf %37, %38 : vector<8x1xf32>
    %40 = vector.broadcast %36 : vector<8x1xf32> to vector<8x128xf32>
    %41 = arith.mulf %20, %40 : vector<8x128xf32>
    %42 = vector.broadcast %39 : vector<8x1xf32> to vector<8x128xf32>
    %43 = arith.addf %41, %42 : vector<8x128xf32>
    %cst_32 = arith.constant 0.000000e+00 : f32
    %44 = vector.broadcast %cst_32 : f32 to vector<8x128xf32>
    %45 = arith.maximumf %43, %44 : vector<8x128xf32>
    %c0_33 = arith.constant 0 : index
    %c0_34 = arith.constant 0 : index
    %46 = vector.load %arg4[%c0_33, %c0_34] : memref<8x128xf32, #tpu.memory_space<vmem>>, vector<8x128xf32>
    tpu.vector_store %arg4[%c0_33, %c0_34], %45 {strides = array<i32>} : memref<8x128xf32, #tpu.memory_space<vmem>>, vector<8x128xf32>,
    return
  }
}

module attributes {stable_mosaic.version = 11 : i64} {
  func.func @_deconv_bn_relu_kernel(%arg0: memref<4x32x128xbf16, #tpu.memory_space<vmem>>, %arg1: memref<4x4x32xbf16, #tpu.memory_space<vmem>>, %arg2: memref<4x1xf32, #tpu.memory_space<vmem>>, %arg3: memref<4x1xf32, #tpu.memory_space<vmem>>, %arg4: memref<4x512xf32, #tpu.memory_space<vmem>>) attributes {dimension_semantics = [], scalar_prefetch = 0 : i64, scratch_operands = 0 : i64, tpu.core_type = #tpu.core_type<tc>} {
    %c0 = arith.constant 0 : index
    %c0_0 = arith.constant 0 : index
    %c0_1 = arith.constant 0 : index
    %0 = vector.load %arg1[%c0, %c0_0, %c0_1] : memref<4x4x32xbf16, #tpu.memory_space<vmem>>, vector<1x4x32xbf16>
    %1 = vector.shape_cast %0 : vector<1x4x32xbf16> to vector<4x32xbf16>
    %c0_2 = arith.constant 0 : index
    %c0_3 = arith.constant 0 : index
    %c0_4 = arith.constant 0 : index
    %2 = vector.load %arg0[%c0_2, %c0_3, %c0_4] : memref<4x32x128xbf16, #tpu.memory_space<vmem>>, vector<1x32x128xbf16>
    %3 = vector.shape_cast %2 : vector<1x32x128xbf16> to vector<32x128xbf16>
    %cst = arith.constant dense<0.000000e+00> : vector<4x128xf32>
    %4 = tpu.matmul %1, %3, %cst {dimension_numbers = #tpu.dot_dimension_numbers<[1], [0], [0], [1], [0, 0, 1, 1], [], []>} : vector<4x32xbf16>, vector<32x128xbf16>, vector<4x128xf32> -> vector<4x128xf32>
    %c1 = arith.constant 1 : index
    %c0_5 = arith.constant 0 : index
    %c0_6 = arith.constant 0 : index
    %5 = vector.load %arg1[%c1, %c0_5, %c0_6] : memref<4x4x32xbf16, #tpu.memory_space<vmem>>, vector<1x4x32xbf16>
    %6 = vector.shape_cast %5 : vector<1x4x32xbf16> to vector<4x32xbf16>
    %c1_7 = arith.constant 1 : index
    %c0_8 = arith.constant 0 : index
    %c0_9 = arith.constant 0 : index
    %7 = vector.load %arg0[%c1_7, %c0_8, %c0_9] : memref<4x32x128xbf16, #tpu.memory_space<vmem>>, vector<1x32x128xbf16>
    %8 = vector.shape_cast %7 : vector<1x32x128xbf16> to vector<32x128xbf16>
    %cst_10 = arith.constant dense<0.000000e+00> : vector<4x128xf32>
    %9 = tpu.matmul %6, %8, %cst_10 {dimension_numbers = #tpu.dot_dimension_numbers<[1], [0], [0], [1], [0, 0, 1, 1], [], []>} : vector<4x32xbf16>, vector<32x128xbf16>, vector<4x128xf32> -> vector<4x128xf32>
    %c2 = arith.constant 2 : index
    %c0_11 = arith.constant 0 : index
    %c0_12 = arith.constant 0 : index
    %10 = vector.load %arg1[%c2, %c0_11, %c0_12] : memref<4x4x32xbf16, #tpu.memory_space<vmem>>, vector<1x4x32xbf16>
    %11 = vector.shape_cast %10 : vector<1x4x32xbf16> to vector<4x32xbf16>
    %c2_13 = arith.constant 2 : index
    %c0_14 = arith.constant 0 : index
    %c0_15 = arith.constant 0 : index
    %12 = vector.load %arg0[%c2_13, %c0_14, %c0_15] : memref<4x32x128xbf16, #tpu.memory_space<vmem>>, vector<1x32x128xbf16>
    %13 = vector.shape_cast %12 : vector<1x32x128xbf16> to vector<32x128xbf16>
    %cst_16 = arith.constant dense<0.000000e+00> : vector<4x128xf32>
    %14 = tpu.matmul %11, %13, %cst_16 {dimension_numbers = #tpu.dot_dimension_numbers<[1], [0], [0], [1], [0, 0, 1, 1], [], []>} : vector<4x32xbf16>, vector<32x128xbf16>, vector<4x128xf32> -> vector<4x128xf32>
    %c3 = arith.constant 3 : index
    %c0_17 = arith.constant 0 : index
    %c0_18 = arith.constant 0 : index
    %15 = vector.load %arg1[%c3, %c0_17, %c0_18] : memref<4x4x32xbf16, #tpu.memory_space<vmem>>, vector<1x4x32xbf16>
    %16 = vector.shape_cast %15 : vector<1x4x32xbf16> to vector<4x32xbf16>
    %c3_19 = arith.constant 3 : index
    %c0_20 = arith.constant 0 : index
    %c0_21 = arith.constant 0 : index
    %17 = vector.load %arg0[%c3_19, %c0_20, %c0_21] : memref<4x32x128xbf16, #tpu.memory_space<vmem>>, vector<1x32x128xbf16>
    %18 = vector.shape_cast %17 : vector<1x32x128xbf16> to vector<32x128xbf16>
    %cst_22 = arith.constant dense<0.000000e+00> : vector<4x128xf32>
    %19 = tpu.matmul %16, %18, %cst_22 {dimension_numbers = #tpu.dot_dimension_numbers<[1], [0], [0], [1], [0, 0, 1, 1], [], []>} : vector<4x32xbf16>, vector<32x128xbf16>, vector<4x128xf32> -> vector<4x128xf32>
    %20 = tpu.concatenate %4, %9, %14, %19 in 1 : vector<4x128xf32>, vector<4x128xf32>, vector<4x128xf32>, vector<4x128xf32> -> vector<4x512xf32>
    %cst_23 = arith.constant dense<0.000000e+00> : vector<4xf32>
    %21 = vector.multi_reduction <add>, %20, %cst_23 [1] : vector<4x512xf32> to vector<4xf32>
    %22 = vector.shape_cast %21 : vector<4xf32> to vector<4x1xf32>
    %cst_24 = arith.constant 5.120000e+02 : f32
    %23 = vector.broadcast %cst_24 : f32 to vector<4x1xf32>
    %24 = arith.divf %22, %23 : vector<4x1xf32>
    %25 = vector.broadcast %24 : vector<4x1xf32> to vector<4x512xf32>
    %26 = arith.subf %20, %25 : vector<4x512xf32>
    %27 = arith.mulf %26, %26 : vector<4x512xf32>
    %cst_25 = arith.constant dense<0.000000e+00> : vector<4xf32>
    %28 = vector.multi_reduction <add>, %27, %cst_25 [1] : vector<4x512xf32> to vector<4xf32>
    %29 = vector.shape_cast %28 : vector<4xf32> to vector<4x1xf32>
    %cst_26 = arith.constant 5.120000e+02 : f32
    %30 = vector.broadcast %cst_26 : f32 to vector<4x1xf32>
    %31 = arith.divf %29, %30 : vector<4x1xf32>
    %c0_27 = arith.constant 0 : index
    %c0_28 = arith.constant 0 : index
    %32 = vector.load %arg2[%c0_27, %c0_28] : memref<4x1xf32, #tpu.memory_space<vmem>>, vector<4x1xf32>
    %cst_29 = arith.constant 9.99999974E-6 : f32
    %33 = vector.broadcast %cst_29 : f32 to vector<4x1xf32>
    %34 = arith.addf %31, %33 : vector<4x1xf32>
    %35 = math.rsqrt %34 : vector<4x1xf32>
    %36 = arith.mulf %32, %35 : vector<4x1xf32>
    %c0_30 = arith.constant 0 : index
    %c0_31 = arith.constant 0 : index
    %37 = vector.load %arg3[%c0_30, %c0_31] : memref<4x1xf32, #tpu.memory_space<vmem>>, vector<4x1xf32>
    %38 = arith.mulf %24, %36 : vector<4x1xf32>
    %39 = arith.subf %37, %38 : vector<4x1xf32>
    %40 = vector.broadcast %36 : vector<4x1xf32> to vector<4x512xf32>
    %41 = arith.mulf %20, %40 : vector<4x512xf32>
    %42 = vector.broadcast %39 : vector<4x1xf32> to vector<4x512xf32>
    %43 = arith.addf %41, %42 : vector<4x512xf32>
    %cst_32 = arith.constant 0.000000e+00 : f32
    %44 = vector.broadcast %cst_32 : f32 to vector<4x512xf32>
    %45 = arith.maximumf %43, %44 : vector<4x512xf32>
    %c0_33 = arith.constant 0 : index
    %c0_34 = arith.constant 0 : index
    %46 = vector.load %arg4[%c0_33, %c0_34] : memref<4x512xf32, #tpu.memory_space<vmem>>, vector<4x512xf32>
    tpu.vector_store %arg4[%c0_33, %c0_34], %45 {strides = array<i32>} : memref<4x512xf32, #tpu.memory_space<vmem>>, vector<4x512xf32>,
    return
  }
}

module attributes {stable_mosaic.version = 11 : i64} {
  func.func @_deconv_bn_relu_kernel(%arg0: memref<4x16x512xbf16, #tpu.memory_space<vmem>>, %arg1: memref<4x2x16xbf16, #tpu.memory_space<vmem>>, %arg2: memref<2x1xf32, #tpu.memory_space<vmem>>, %arg3: memref<2x1xf32, #tpu.memory_space<vmem>>, %arg4: memref<2x2048xf32, #tpu.memory_space<vmem>>) attributes {dimension_semantics = [], scalar_prefetch = 0 : i64, scratch_operands = 0 : i64, tpu.core_type = #tpu.core_type<tc>} {
    %c0 = arith.constant 0 : index
    %c0_0 = arith.constant 0 : index
    %c0_1 = arith.constant 0 : index
    %0 = vector.load %arg1[%c0, %c0_0, %c0_1] : memref<4x2x16xbf16, #tpu.memory_space<vmem>>, vector<1x2x16xbf16>
    %1 = vector.shape_cast %0 : vector<1x2x16xbf16> to vector<2x16xbf16>
    %c0_2 = arith.constant 0 : index
    %c0_3 = arith.constant 0 : index
    %c0_4 = arith.constant 0 : index
    %2 = vector.load %arg0[%c0_2, %c0_3, %c0_4] : memref<4x16x512xbf16, #tpu.memory_space<vmem>>, vector<1x16x512xbf16>
    %3 = vector.shape_cast %2 : vector<1x16x512xbf16> to vector<16x512xbf16>
    %cst = arith.constant dense<0.000000e+00> : vector<2x512xf32>
    %4 = tpu.matmul %1, %3, %cst {dimension_numbers = #tpu.dot_dimension_numbers<[1], [0], [0], [1], [0, 0, 1, 1], [], []>} : vector<2x16xbf16>, vector<16x512xbf16>, vector<2x512xf32> -> vector<2x512xf32>
    %c1 = arith.constant 1 : index
    %c0_5 = arith.constant 0 : index
    %c0_6 = arith.constant 0 : index
    %5 = vector.load %arg1[%c1, %c0_5, %c0_6] : memref<4x2x16xbf16, #tpu.memory_space<vmem>>, vector<1x2x16xbf16>
    %6 = vector.shape_cast %5 : vector<1x2x16xbf16> to vector<2x16xbf16>
    %c1_7 = arith.constant 1 : index
    %c0_8 = arith.constant 0 : index
    %c0_9 = arith.constant 0 : index
    %7 = vector.load %arg0[%c1_7, %c0_8, %c0_9] : memref<4x16x512xbf16, #tpu.memory_space<vmem>>, vector<1x16x512xbf16>
    %8 = vector.shape_cast %7 : vector<1x16x512xbf16> to vector<16x512xbf16>
    %cst_10 = arith.constant dense<0.000000e+00> : vector<2x512xf32>
    %9 = tpu.matmul %6, %8, %cst_10 {dimension_numbers = #tpu.dot_dimension_numbers<[1], [0], [0], [1], [0, 0, 1, 1], [], []>} : vector<2x16xbf16>, vector<16x512xbf16>, vector<2x512xf32> -> vector<2x512xf32>
    %c2 = arith.constant 2 : index
    %c0_11 = arith.constant 0 : index
    %c0_12 = arith.constant 0 : index
    %10 = vector.load %arg1[%c2, %c0_11, %c0_12] : memref<4x2x16xbf16, #tpu.memory_space<vmem>>, vector<1x2x16xbf16>
    %11 = vector.shape_cast %10 : vector<1x2x16xbf16> to vector<2x16xbf16>
    %c2_13 = arith.constant 2 : index
    %c0_14 = arith.constant 0 : index
    %c0_15 = arith.constant 0 : index
    %12 = vector.load %arg0[%c2_13, %c0_14, %c0_15] : memref<4x16x512xbf16, #tpu.memory_space<vmem>>, vector<1x16x512xbf16>
    %13 = vector.shape_cast %12 : vector<1x16x512xbf16> to vector<16x512xbf16>
    %cst_16 = arith.constant dense<0.000000e+00> : vector<2x512xf32>
    %14 = tpu.matmul %11, %13, %cst_16 {dimension_numbers = #tpu.dot_dimension_numbers<[1], [0], [0], [1], [0, 0, 1, 1], [], []>} : vector<2x16xbf16>, vector<16x512xbf16>, vector<2x512xf32> -> vector<2x512xf32>
    %c3 = arith.constant 3 : index
    %c0_17 = arith.constant 0 : index
    %c0_18 = arith.constant 0 : index
    %15 = vector.load %arg1[%c3, %c0_17, %c0_18] : memref<4x2x16xbf16, #tpu.memory_space<vmem>>, vector<1x2x16xbf16>
    %16 = vector.shape_cast %15 : vector<1x2x16xbf16> to vector<2x16xbf16>
    %c3_19 = arith.constant 3 : index
    %c0_20 = arith.constant 0 : index
    %c0_21 = arith.constant 0 : index
    %17 = vector.load %arg0[%c3_19, %c0_20, %c0_21] : memref<4x16x512xbf16, #tpu.memory_space<vmem>>, vector<1x16x512xbf16>
    %18 = vector.shape_cast %17 : vector<1x16x512xbf16> to vector<16x512xbf16>
    %cst_22 = arith.constant dense<0.000000e+00> : vector<2x512xf32>
    %19 = tpu.matmul %16, %18, %cst_22 {dimension_numbers = #tpu.dot_dimension_numbers<[1], [0], [0], [1], [0, 0, 1, 1], [], []>} : vector<2x16xbf16>, vector<16x512xbf16>, vector<2x512xf32> -> vector<2x512xf32>
    %20 = tpu.concatenate %4, %9, %14, %19 in 1 : vector<2x512xf32>, vector<2x512xf32>, vector<2x512xf32>, vector<2x512xf32> -> vector<2x2048xf32>
    %cst_23 = arith.constant dense<0.000000e+00> : vector<2xf32>
    %21 = vector.multi_reduction <add>, %20, %cst_23 [1] : vector<2x2048xf32> to vector<2xf32>
    %22 = vector.shape_cast %21 : vector<2xf32> to vector<2x1xf32>
    %cst_24 = arith.constant 2.048000e+03 : f32
    %23 = vector.broadcast %cst_24 : f32 to vector<2x1xf32>
    %24 = arith.divf %22, %23 : vector<2x1xf32>
    %25 = vector.broadcast %24 : vector<2x1xf32> to vector<2x2048xf32>
    %26 = arith.subf %20, %25 : vector<2x2048xf32>
    %27 = arith.mulf %26, %26 : vector<2x2048xf32>
    %cst_25 = arith.constant dense<0.000000e+00> : vector<2xf32>
    %28 = vector.multi_reduction <add>, %27, %cst_25 [1] : vector<2x2048xf32> to vector<2xf32>
    %29 = vector.shape_cast %28 : vector<2xf32> to vector<2x1xf32>
    %cst_26 = arith.constant 2.048000e+03 : f32
    %30 = vector.broadcast %cst_26 : f32 to vector<2x1xf32>
    %31 = arith.divf %29, %30 : vector<2x1xf32>
    %c0_27 = arith.constant 0 : index
    %c0_28 = arith.constant 0 : index
    %32 = vector.load %arg2[%c0_27, %c0_28] : memref<2x1xf32, #tpu.memory_space<vmem>>, vector<2x1xf32>
    %cst_29 = arith.constant 9.99999974E-6 : f32
    %33 = vector.broadcast %cst_29 : f32 to vector<2x1xf32>
    %34 = arith.addf %31, %33 : vector<2x1xf32>
    %35 = math.rsqrt %34 : vector<2x1xf32>
    %36 = arith.mulf %32, %35 : vector<2x1xf32>
    %c0_30 = arith.constant 0 : index
    %c0_31 = arith.constant 0 : index
    %37 = vector.load %arg3[%c0_30, %c0_31] : memref<2x1xf32, #tpu.memory_space<vmem>>, vector<2x1xf32>
    %38 = arith.mulf %24, %36 : vector<2x1xf32>
    %39 = arith.subf %37, %38 : vector<2x1xf32>
    %40 = vector.broadcast %36 : vector<2x1xf32> to vector<2x2048xf32>
    %41 = arith.mulf %20, %40 : vector<2x2048xf32>
    %42 = vector.broadcast %39 : vector<2x1xf32> to vector<2x2048xf32>
    %43 = arith.addf %41, %42 : vector<2x2048xf32>
    %cst_32 = arith.constant 0.000000e+00 : f32
    %44 = vector.broadcast %cst_32 : f32 to vector<2x2048xf32>
    %45 = arith.maximumf %43, %44 : vector<2x2048xf32>
    %c0_33 = arith.constant 0 : index
    %c0_34 = arith.constant 0 : index
    %46 = vector.load %arg4[%c0_33, %c0_34] : memref<2x2048xf32, #tpu.memory_space<vmem>>, vector<2x2048xf32>
    tpu.vector_store %arg4[%c0_33, %c0_34], %45 {strides = array<i32>} : memref<2x2048xf32, #tpu.memory_space<vmem>>, vector<2x2048xf32>,
    return
  }
}

module attributes {stable_mosaic.version = 11 : i64} {
  func.func @_deconv_tanh_kernel(%arg0: memref<4x8x2048xbf16, #tpu.memory_space<vmem>>, %arg1: memref<4x3x8xbf16, #tpu.memory_space<vmem>>, %arg2: memref<3x8192xf32, #tpu.memory_space<vmem>>) attributes {dimension_semantics = [], scalar_prefetch = 0 : i64, scratch_operands = 0 : i64, tpu.core_type = #tpu.core_type<tc>} {
    %c0 = arith.constant 0 : index
    %c0_0 = arith.constant 0 : index
    %c0_1 = arith.constant 0 : index
    %0 = vector.load %arg1[%c0, %c0_0, %c0_1] : memref<4x3x8xbf16, #tpu.memory_space<vmem>>, vector<1x3x8xbf16>
    %1 = vector.shape_cast %0 : vector<1x3x8xbf16> to vector<3x8xbf16>
    %c0_2 = arith.constant 0 : index
    %c0_3 = arith.constant 0 : index
    %c0_4 = arith.constant 0 : index
    %2 = vector.load %arg0[%c0_2, %c0_3, %c0_4] : memref<4x8x2048xbf16, #tpu.memory_space<vmem>>, vector<1x8x2048xbf16>
    %3 = vector.shape_cast %2 : vector<1x8x2048xbf16> to vector<8x2048xbf16>
    %cst = arith.constant dense<0.000000e+00> : vector<3x2048xf32>
    %4 = tpu.matmul %1, %3, %cst {dimension_numbers = #tpu.dot_dimension_numbers<[1], [0], [0], [1], [0, 0, 1, 1], [], []>} : vector<3x8xbf16>, vector<8x2048xbf16>, vector<3x2048xf32> -> vector<3x2048xf32>
    %5 = math.tanh %4 : vector<3x2048xf32>
    %c1 = arith.constant 1 : index
    %c0_5 = arith.constant 0 : index
    %c0_6 = arith.constant 0 : index
    %6 = vector.load %arg1[%c1, %c0_5, %c0_6] : memref<4x3x8xbf16, #tpu.memory_space<vmem>>, vector<1x3x8xbf16>
    %7 = vector.shape_cast %6 : vector<1x3x8xbf16> to vector<3x8xbf16>
    %c1_7 = arith.constant 1 : index
    %c0_8 = arith.constant 0 : index
    %c0_9 = arith.constant 0 : index
    %8 = vector.load %arg0[%c1_7, %c0_8, %c0_9] : memref<4x8x2048xbf16, #tpu.memory_space<vmem>>, vector<1x8x2048xbf16>
    %9 = vector.shape_cast %8 : vector<1x8x2048xbf16> to vector<8x2048xbf16>
    %cst_10 = arith.constant dense<0.000000e+00> : vector<3x2048xf32>
    %10 = tpu.matmul %7, %9, %cst_10 {dimension_numbers = #tpu.dot_dimension_numbers<[1], [0], [0], [1], [0, 0, 1, 1], [], []>} : vector<3x8xbf16>, vector<8x2048xbf16>, vector<3x2048xf32> -> vector<3x2048xf32>
    %11 = math.tanh %10 : vector<3x2048xf32>
    %c2 = arith.constant 2 : index
    %c0_11 = arith.constant 0 : index
    %c0_12 = arith.constant 0 : index
    %12 = vector.load %arg1[%c2, %c0_11, %c0_12] : memref<4x3x8xbf16, #tpu.memory_space<vmem>>, vector<1x3x8xbf16>
    %13 = vector.shape_cast %12 : vector<1x3x8xbf16> to vector<3x8xbf16>
    %c2_13 = arith.constant 2 : index
    %c0_14 = arith.constant 0 : index
    %c0_15 = arith.constant 0 : index
    %14 = vector.load %arg0[%c2_13, %c0_14, %c0_15] : memref<4x8x2048xbf16, #tpu.memory_space<vmem>>, vector<1x8x2048xbf16>
    %15 = vector.shape_cast %14 : vector<1x8x2048xbf16> to vector<8x2048xbf16>
    %cst_16 = arith.constant dense<0.000000e+00> : vector<3x2048xf32>
    %16 = tpu.matmul %13, %15, %cst_16 {dimension_numbers = #tpu.dot_dimension_numbers<[1], [0], [0], [1], [0, 0, 1, 1], [], []>} : vector<3x8xbf16>, vector<8x2048xbf16>, vector<3x2048xf32> -> vector<3x2048xf32>
    %17 = math.tanh %16 : vector<3x2048xf32>
    %c3 = arith.constant 3 : index
    %c0_17 = arith.constant 0 : index
    %c0_18 = arith.constant 0 : index
    %18 = vector.load %arg1[%c3, %c0_17, %c0_18] : memref<4x3x8xbf16, #tpu.memory_space<vmem>>, vector<1x3x8xbf16>
    %19 = vector.shape_cast %18 : vector<1x3x8xbf16> to vector<3x8xbf16>
    %c3_19 = arith.constant 3 : index
    %c0_20 = arith.constant 0 : index
    %c0_21 = arith.constant 0 : index
    %20 = vector.load %arg0[%c3_19, %c0_20, %c0_21] : memref<4x8x2048xbf16, #tpu.memory_space<vmem>>, vector<1x8x2048xbf16>
    %21 = vector.shape_cast %20 : vector<1x8x2048xbf16> to vector<8x2048xbf16>
    %cst_22 = arith.constant dense<0.000000e+00> : vector<3x2048xf32>
    %22 = tpu.matmul %19, %21, %cst_22 {dimension_numbers = #tpu.dot_dimension_numbers<[1], [0], [0], [1], [0, 0, 1, 1], [], []>} : vector<3x8xbf16>, vector<8x2048xbf16>, vector<3x2048xf32> -> vector<3x2048xf32>
    %23 = math.tanh %22 : vector<3x2048xf32>
    %24 = tpu.concatenate %5, %11, %17, %23 in 1 : vector<3x2048xf32>, vector<3x2048xf32>, vector<3x2048xf32>, vector<3x2048xf32> -> vector<3x8192xf32>
    %c0_23 = arith.constant 0 : index
    %c0_24 = arith.constant 0 : index
    %25 = vector.load %arg2[%c0_23, %c0_24] : memref<3x8192xf32, #tpu.memory_space<vmem>>, vector<3x8192xf32>
    tpu.vector_store %arg2[%c0_23, %c0_24], %24 {strides = array<i32>} : memref<3x8192xf32, #tpu.memory_space<vmem>>, vector<3x8192xf32>,
    return
  }
}

</mosaic_0001>

<llo_original>
// kernel: _lambda_.5
$region0: #{_lambda_.5}
  #allocation0 [shape = 'u32[]', space=smem, size = 0x4, offset = 0x4, fixed_abs, tag = 'smem constant byte address 0x4 - core index']
  #allocation1 [shape = 'u32[144,128]{1,0:T(1,128)}', space=vmem, size = 0x12000, scoped, tag = 'internal scratch']
  %s0 = inlined_call_operand.vmem [shape: bf16[2,100], index: 0, kind: input, shape index: {}]
  %s1 = inlined_call_operand.hbm [shape: bf16[100,256], index: 1, kind: input, shape index: {}]
  %s2 = inlined_call_operand.hbm [shape: f32[1,16], index: 2, kind: input, shape index: {}]
  %s3 = inlined_call_operand.vmem [shape: f32[1,16], index: 3, kind: input, shape index: {}]
  %s4 = inlined_call_operand.vmem [shape: f32[2,256], index: 4, kind: output, shape index: {}]
  %s5 = sld [smem:[#allocation0]]
  $region34: #{_lambda_.5} parent=0
    _
  %s7 = ssub.s32 1, %s5
  %s8 = scalar_select 0, %s7, %s5
  $region1: #{_lambda_.5} parent=0
    #allocation2 [shape = 'u8[53248]{0}', space=vmem, size = 0xd000, scoped, tag = 'input window, operand 1, single buffered']
    #allocation3 [shape = 's32[1]{0}', space=sflag, size = 0x4, scoped, tag = 'scoped memory for _lambda_.5']
    #allocation4 [shape = 'u8[512]{0}', space=vmem, size = 0x400, scoped, tag = 'input window, operand 2, single buffered']
    #allocation5 [shape = 's32[1]{0}', space=sflag, size = 0x4, scoped, tag = 'scoped memory for _lambda_.5']
    %9 = vsyncpa [#allocation3], 0
    %10 = vsyncpa [#allocation5], 0
    // Predicated region
    $region2: #{_lambda_.5} parent=1 // pred_check
      _
    $region3: #{_lambda_.5} parent=1 // pred_check_branch
      %12 = sbr.rel (0) target = $region5
    $region4: #{_lambda_.5} parent=1 // pred_region
      _
    $region5: #{_lambda_.5} parent=1 // pred_fallthru
      _
    // Predicated region
    $region6: #{_lambda_.5} parent=1 // pred_check
      _
    $region7: #{_lambda_.5} parent=1 // pred_check_branch
      %14 = sbr.rel (0) target = $region9
    $region8: #{_lambda_.5} parent=1 // pred_region
      %s16 = ssub.s32 1664, 1664
      %17 = vsyncadd [#allocation3], %s16
      %s18 = sshll.u32 [#allocation2], 4
      %s19 = int_to_ptr.vmem [resolvable:$true] %s18
      %24 = dma.hbm_to_vmem [thread:$0]  %s1, 1664, %s19, [#allocation3], 128, 128, 8
    $region9: #{_lambda_.5} parent=1 // pred_fallthru
      _
    // Predicated region
    $region10: #{_lambda_.5} parent=1 // pred_check
      _
    $region11: #{_lambda_.5} parent=1 // pred_check_branch
      %26 = sbr.rel (0) target = $region13
    $region12: #{_lambda_.5} parent=1 // pred_region
      %s28 = ssub.s32 16, 16
      %29 = vsyncadd [#allocation5], %s28
      %s31 = sshll.u32 [#allocation4], 4
      %s32 = int_to_ptr.vmem [resolvable:$true] %s31
      %34 = dma.hbm_to_vmem [thread:$0]  %s2, 16, %s32, [#allocation5]
    $region13: #{_lambda_.5} parent=1 // pred_fallthru
      _
    // Predicated region
    $region14: #{_lambda_.5} parent=1 // pred_check
      _
    $region15: #{_lambda_.5} parent=1 // pred_check_branch
      %36 = sbr.rel (0) target = $region17
    $region16: #{_lambda_.5} parent=1 // pred_region
      _
    $region17: #{_lambda_.5} parent=1 // pred_fallthru
      _
    // Predicated region
    $region18: #{_lambda_.5} parent=1 // pred_check
      _
    $region19: #{_lambda_.5} parent=1 // pred_check_branch
      %38 = sbr.rel (0) target = $region21
    $region20: #{_lambda_.5} parent=1 // pred_region
      %39 = dma.done [#allocation3], 1664
    $region21: #{_lambda_.5} parent=1 // pred_fallthru
      _
    // Predicated region
    $region22: #{_lambda_.5} parent=1 // pred_check
      _
    $region23: #{_lambda_.5} parent=1 // pred_check_branch
      %41 = sbr.rel (0) target = $region25
    $region24: #{_lambda_.5} parent=1 // pred_region
      %42 = dma.done [#allocation5], 16
    $region25: #{_lambda_.5} parent=1 // pred_fallthru
      _
    %v44 = vld [vmem:[%s0] sm:$0x1]
    %v45 = vld [vmem:[#allocation2] sm:$0xff]
    %v46 = vld [vmem:[#allocation2 + $0x8] sm:$0xff]
    %v47 = vld [vmem:[#allocation2 + $0x10] sm:$0xff]
    %v48 = vld [vmem:[#allocation2 + $0x18] sm:$0xff]
    %v49 = vld [vmem:[#allocation2 + $0x20] sm:$0xff]
    %v50 = vld [vmem:[#allocation2 + $0x28] sm:$0xff]
    %v51 = vld [vmem:[#allocation2 + $0x30] sm:$0xff]
    %v52 = vld [vmem:[#allocation2 + $0x38] sm:$0xff]
    %v53 = vld [vmem:[#allocation2 + $0x40] sm:$0xff]
    %v54 = vld [vmem:[#allocation2 + $0x48] sm:$0xff]
    %v55 = vld [vmem:[#allocation2 + $0x50] sm:$0xff]
    %v56 = vld [vmem:[#allocation2 + $0x58] sm:$0xff]
    %v57 = vld [vmem:[#allocation2 + $0x60] sm:$0x33]
    %v71 = vunpack.c.l.b16 %v45
    %v72 = vunpack.c.h.b16 %v45
    %v73 = vunpack.c.l.b16 %v46
    %v74 = vunpack.c.h.b16 %v46
    %v75 = vunpack.c.l.b16 %v47
    %v76 = vunpack.c.h.b16 %v47
    %v77 = vunpack.c.l.b16 %v48
    %v78 = vunpack.c.h.b16 %v48
    %v79 = vunpack.c.l.b16 %v49
    %v80 = vunpack.c.h.b16 %v49
    %v81 = vunpack.c.l.b16 %v50
    %v82 = vunpack.c.h.b16 %v50
    %v83 = vunpack.c.l.b16 %v51
    %v84 = vunpack.c.h.b16 %v51
    %v85 = vunpack.c.l.b16 %v52
    %v86 = vunpack.c.h.b16 %v52
    %v87 = vunpack.c.l.b16 %v53
    %v88 = vunpack.c.h.b16 %v53
    %v89 = vunpack.c.l.b16 %v54
    %v90 = vunpack.c.h.b16 %v54
    %v91 = vunpack.c.l.b16 %v55
    %v92 = vunpack.c.h.b16 %v55
    %v93 = vunpack.c.l.b16 %v56
    %v94 = vunpack.c.h.b16 %v56
    %v95 = vunpack.c.l.b16 %v57
    %v96 = vunpack.c.h.b16 %v57
    %v97 = vpack.c.b16 %v73, %v71
    %v98 = vpack.c.b16 %v74, %v72
    %v99 = vpack.c.b16 %v77, %v75
    %v100 = vpack.c.b16 %v78, %v76
    %v101 = vpack.c.b16 %v81, %v79
    %v102 = vpack.c.b16 %v82, %v80
    %v103 = vpack.c.b16 %v85, %v83
    %v104 = vpack.c.b16 %v86, %v84
    %v105 = vpack.c.b16 %v89, %v87
    %v106 = vpack.c.b16 %v90, %v88
    %v107 = vpack.c.b16 %v93, %v91
    %v108 = vpack.c.b16 %v94, %v92
    %v109 = vpack.c.b16 %v95, %v95
    %v110 = vpack.c.b16 %v96, %v96
    %vm123 = vcmask 818176
    %v125 = vsel %vm123, %v44, 0
    %vm127 = vcmask 1041408
    %v129 = vsel %vm127, %v109, 0
    %v132 = vsel %vm127, %v110, 0
    %134 = vmatprep.subr.bf16.mxu0 %v98
    %135 = vmatpush1.bf16.msra.mxu0 %v97
    %136 = vmatprep.subr.bf16.mxu0 %v100
    %137 = vmatpush1.bf16.msra.mxu0 %v99
    %138 = vmatprep.subr.bf16.mxu0 %v102
    %139 = vmatpush1.bf16.msra.mxu0 %v101
    %140 = vmatprep.subr.bf16.mxu0 %v104
    %141 = vmatpush1.bf16.msra.mxu0 %v103
    %142 = vmatprep.subr.bf16.mxu0 %v106
    %143 = vmatpush1.bf16.msra.mxu0 %v105
    %144 = vmatprep.subr.bf16.mxu0 %v108
    %145 = vmatpush1.bf16.msra.mxu0 %v107
    %146 = vmatprep.subr.bf16.mxu0 %v132
    %147 = vmatpush1.bf16.msra.mxu0 %v129
    %148 = vmatprep.subr.bf16.mxu0 0
    %149 = vmatpush1.bf16.msra.mxu0 0
    %150 = vmatprep.subr.bf16.mxu0 0
    %151 = vmatpush1.bf16.msra.mxu0 0
    %152 = vmatprep.subr.bf16.mxu0 0
    %153 = vmatpush1.bf16.msra.mxu0 0
    %154 = vmatprep.subr.bf16.mxu0 0
    %155 = vmatpush1.bf16.msra.mxu0 0
    %156 = vmatprep.subr.bf16.mxu0 0
    %157 = vmatpush1.bf16.msra.mxu0 0
    %158 = vmatprep.subr.bf16.mxu0 0
    %159 = vmatpush1.bf16.msra.mxu0 0
    %160 = vmatprep.subr.bf16.mxu0 0
    %161 = vmatpush1.bf16.msra.mxu0 0
    %162 = vmatprep.subr.bf16.mxu0 0
    %163 = vmatpush1.bf16.msra.mxu0 0
    %164 = vmatprep.subr.bf16.mxu0 0
    %165 = vmatpush1.bf16.msra.mxu0 0
    %166 = vmatprep.mubr.bf16.mxu0 0
    %167 = vmatmul.mubr.bf16.gmra.mrb[0].mxu0 %v125
    %v168 = vpop.f32.mrb[0].mxu0
    %v169 = vadd.f32 0.0, %v168
    %v170 = vpop.f32.mrb[0].mxu0
    %v171 = vadd.f32 0.0, %v170
    %v172 = vpop.f32.mrb[0].mxu0
    %v173 = vpop.f32.mrb[0].mxu0
    %174 = vdwg.mxu0
    %v175 = vsel %vm127, %v169, 0.0
    %v176 = vrot.slane %v175, 4
    %v177 = vadd.f32 %v175, %v176
    %v178 = vrot.slane %v177, 2
    %v179 = vadd.f32 %v177, %v178
    %v180 = vrot.slane %v179, 1
    %v181 = vadd.f32 %v179, %v180
    %v182 = vsel %vm127, %v171, 0.0
    %v183 = vrot.slane %v182, 4
    %v184 = vadd.f32 %v182, %v183
    %v185 = vrot.slane %v184, 2
    %v186 = vadd.f32 %v184, %v185
    %v187 = vrot.slane %v186, 1
    %v188 = vadd.f32 %v186, %v187
    %v189 = vadd.f32 %v181, 0.0
    %191 = vrot.lane.b32.xlu0 %v181, 112
    %v192 = vpop.permute.xlu0 %191
    %v194 = vadd.f32 %v189, %v192
    %195 = vrot.lane.b32.xlu0 %v181, 96
    %v196 = vpop.permute.xlu0 %195
    %v198 = vadd.f32 %v194, %v196
    %199 = vrot.lane.b32.xlu0 %v181, 80
    %v200 = vpop.permute.xlu0 %199
    %v202 = vadd.f32 %v198, %v200
    %203 = vrot.lane.b32.xlu0 %v181, 64
    %v204 = vpop.permute.xlu0 %203
    %v206 = vadd.f32 %v202, %v204
    %207 = vrot.lane.b32.xlu0 %v181, 48
    %v208 = vpop.permute.xlu0 %207
    %v210 = vadd.f32 %v206, %v208
    %211 = vrot.lane.b32.xlu0 %v181, 32
    %v212 = vpop.permute.xlu0 %211
    %v214 = vadd.f32 %v210, %v212
    %215 = vrot.lane.b32.xlu0 %v181, 16
    %v216 = vpop.permute.xlu0 %215
    %v218 = vadd.f32 %v214, %v216
    %v219 = vadd.f32 %v218, %v188
    %221 = vrot.lane.b32.xlu0 %v188, 112
    %v222 = vpop.permute.xlu0 %221
    %v224 = vadd.f32 %v219, %v222
    %225 = vrot.lane.b32.xlu0 %v188, 96
    %v226 = vpop.permute.xlu0 %225
    %v228 = vadd.f32 %v224, %v226
    %229 = vrot.lane.b32.xlu0 %v188, 80
    %v230 = vpop.permute.xlu0 %229
    %v232 = vadd.f32 %v228, %v230
    %233 = vrot.lane.b32.xlu0 %v188, 64
    %v234 = vpop.permute.xlu0 %233
    %v236 = vadd.f32 %v232, %v234
    %237 = vrot.lane.b32.xlu0 %v188, 48
    %v238 = vpop.permute.xlu0 %237
    %v240 = vadd.f32 %v236, %v238
    %241 = vrot.lane.b32.xlu0 %v188, 32
    %v242 = vpop.permute.xlu0 %241
    %v244 = vadd.f32 %v240, %v242
    %245 = vrot.lane.b32.xlu0 %v188, 16
    %v246 = vpop.permute.xlu0 %245
    %v248 = vadd.f32 %v244, %v246
    %v249 = vrcp.pop 32.0
    %v250 = vmul.f32 %v248, %v249
    %252 = vrot.lane.b32.xlu0 %v250, 16
    %v253 = vpop.permute.xlu0 %252
    %255 = vrot.lane.b32.xlu0 %v250, 32
    %v256 = vpop.permute.xlu0 %255
    %258 = vrot.lane.b32.xlu0 %v250, 48
    %v259 = vpop.permute.xlu0 %258
    %261 = vrot.lane.b32.xlu0 %v250, 64
    %v262 = vpop.permute.xlu0 %261
    %264 = vrot.lane.b32.xlu0 %v250, 80
    %v265 = vpop.permute.xlu0 %264
    %267 = vrot.lane.b32.xlu0 %v250, 96
    %v268 = vpop.permute.xlu0 %267
    %270 = vrot.lane.b32.xlu0 %v250, 112
    %v271 = vpop.permute.xlu0 %270
    %vm273 = vcmask 130048
    %v274 = vsel %vm273, %v250, %v253
    %vm275 = vcmask 261120
    %v276 = vsel %vm275, %v274, %v256
    %vm277 = vcmask 392192
    %v278 = vsel %vm277, %v276, %v259
    %vm279 = vcmask 523264
    %v280 = vsel %vm279, %v278, %v262
    %vm281 = vcmask 654336
    %v282 = vsel %vm281, %v280, %v265
    %vm283 = vcmask 785408
    %v284 = vsel %vm283, %v282, %v268
    %vm285 = vcmask 916480
    %v286 = vsel %vm285, %v284, %v271
    %v287 = vlaneseq
    %v288 = vshrl.u32 %v287, 7
    %v289 = vsub.s32 0, %v288
    %v290 = vrot.slane %v286, %v289
    %v291 = vsub.f32 %v169, %v290
    %v292 = vsub.f32 %v171, %v290
    %v293 = vmul.f32 %v291, %v291
    %v294 = vmul.f32 %v292, %v292
    %v295 = vsel %vm127, %v293, 0.0
    %v296 = vrot.slane %v295, 4
    %v297 = vadd.f32 %v295, %v296
    %v298 = vrot.slane %v297, 2
    %v299 = vadd.f32 %v297, %v298
    %v300 = vrot.slane %v299, 1
    %v301 = vadd.f32 %v299, %v300
    %v302 = vsel %vm127, %v294, 0.0
    %v303 = vrot.slane %v302, 4
    %v304 = vadd.f32 %v302, %v303
    %v305 = vrot.slane %v304, 2
    %v306 = vadd.f32 %v304, %v305
    %v307 = vrot.slane %v306, 1
    %v308 = vadd.f32 %v306, %v307
    %v309 = vadd.f32 %v301, 0.0
    %311 = vrot.lane.b32.xlu0 %v301, 112
    %v312 = vpop.permute.xlu0 %311
    %v314 = vadd.f32 %v309, %v312
    %315 = vrot.lane.b32.xlu0 %v301, 96
    %v316 = vpop.permute.xlu0 %315
    %v318 = vadd.f32 %v314, %v316
    %319 = vrot.lane.b32.xlu0 %v301, 80
    %v320 = vpop.permute.xlu0 %319
    %v322 = vadd.f32 %v318, %v320
    %323 = vrot.lane.b32.xlu0 %v301, 64
    %v324 = vpop.permute.xlu0 %323
    %v326 = vadd.f32 %v322, %v324
    %327 = vrot.lane.b32.xlu0 %v301, 48
    %v328 = vpop.permute.xlu0 %327
    %v330 = vadd.f32 %v326, %v328
    %331 = vrot.lane.b32.xlu0 %v301, 32
    %v332 = vpop.permute.xlu0 %331
    %v334 = vadd.f32 %v330, %v332
    %335 = vrot.lane.b32.xlu0 %v301, 16
    %v336 = vpop.permute.xlu0 %335
    %v338 = vadd.f32 %v334, %v336
    %v339 = vadd.f32 %v338, %v308
    %341 = vrot.lane.b32.xlu0 %v308, 112
    %v342 = vpop.permute.xlu0 %341
    %v344 = vadd.f32 %v339, %v342
    %345 = vrot.lane.b32.xlu0 %v308, 96
    %v346 = vpop.permute.xlu0 %345
    %v348 = vadd.f32 %v344, %v346
    %349 = vrot.lane.b32.xlu0 %v308, 80
    %v350 = vpop.permute.xlu0 %349
    %v352 = vadd.f32 %v348, %v350
    %353 = vrot.lane.b32.xlu0 %v308, 64
    %v354 = vpop.permute.xlu0 %353
    %v356 = vadd.f32 %v352, %v354
    %357 = vrot.lane.b32.xlu0 %v308, 48
    %v358 = vpop.permute.xlu0 %357
    %v360 = vadd.f32 %v356, %v358
    %361 = vrot.lane.b32.xlu0 %v308, 32
    %v362 = vpop.permute.xlu0 %361
    %v364 = vadd.f32 %v360, %v362
    %365 = vrot.lane.b32.xlu0 %v308, 16
    %v366 = vpop.permute.xlu0 %365
    %v368 = vadd.f32 %v364, %v366
    %v369 = vmul.f32 %v368, %v249
    %v370 = vld [vmem:[#allocation4] sm:$0x1]
    %v371 = vadd.f32 %v369, 1e-05
    %v372 = vrsqrt.pop %v371
    %v373 = vmul.f32 %v370, %v372
    %v374 = vld [vmem:[%s3] sm:$0x1]
    %v375 = vmul.f32 %v250, %v373
    %v376 = vsub.f32 %v374, %v375
    %v378 = vlaneseq
    %v379 = vshrl.u32 %v378, 7
    %v380 = vsub.s32 0, %v379
    %v381 = vrot.slane %v373, %v380
    %382 = vrot.lane.b32.xlu0 %v381, 16
    %v383 = vpop.permute.xlu0 %382
    %385 = vrot.lane.b32.xlu0 %v381, 32
    %v386 = vpop.permute.xlu0 %385
    %388 = vrot.lane.b32.xlu0 %v381, 48
    %v389 = vpop.permute.xlu0 %388
    %391 = vrot.lane.b32.xlu0 %v381, 64
    %v392 = vpop.permute.xlu0 %391
    %394 = vrot.lane.b32.xlu0 %v381, 80
    %v395 = vpop.permute.xlu0 %394
    %397 = vrot.lane.b32.xlu0 %v381, 96
    %v398 = vpop.permute.xlu0 %397
    %400 = vrot.lane.b32.xlu0 %v381, 112
    %v401 = vpop.permute.xlu0 %400
    %v403 = vsel %vm273, %v373, %v383
    %v404 = vsel %vm275, %v403, %v386
    %v405 = vsel %vm277, %v404, %v389
    %v406 = vsel %vm279, %v405, %v392
    %v407 = vsel %vm281, %v406, %v395
    %v408 = vsel %vm283, %v407, %v398
    %v409 = vsel %vm285, %v408, %v401
    %v410 = vlaneseq
    %v411 = vshrl.u32 %v410, 7
    %v412 = vsub.s32 0, %v411
    %v413 = vrot.slane %v409, %v412
    %v414 = vmul.f32 %v169, %v413
    %v415 = vmul.f32 %v171, %v413
    %v417 = vlaneseq
    %v418 = vshrl.u32 %v417, 7
    %v419 = vsub.s32 0, %v418
    %v420 = vrot.slane %v376, %v419
    %421 = vrot.lane.b32.xlu0 %v420, 16
    %v422 = vpop.permute.xlu0 %421
    %424 = vrot.lane.b32.xlu0 %v420, 32
    %v425 = vpop.permute.xlu0 %424
    %427 = vrot.lane.b32.xlu0 %v420, 48
    %v428 = vpop.permute.xlu0 %427
    %430 = vrot.lane.b32.xlu0 %v420, 64
    %v431 = vpop.permute.xlu0 %430
    %433 = vrot.lane.b32.xlu0 %v420, 80
    %v434 = vpop.permute.xlu0 %433
    %436 = vrot.lane.b32.xlu0 %v420, 96
    %v437 = vpop.permute.xlu0 %436
    %439 = vrot.lane.b32.xlu0 %v420, 112
    %v440 = vpop.permute.xlu0 %439
    %v442 = vsel %vm273, %v376, %v422
    %v443 = vsel %vm275, %v442, %v425
    %v444 = vsel %vm277, %v443, %v428
    %v445 = vsel %vm279, %v444, %v431
    %v446 = vsel %vm281, %v445, %v434
    %v447 = vsel %vm283, %v446, %v437
    %v448 = vsel %vm285, %v447, %v440
    %v449 = vlaneseq
    %v450 = vshrl.u32 %v449, 7
    %v451 = vsub.s32 0, %v450
    %v452 = vrot.slane %v448, %v451
    %v453 = vadd.f32 %v414, %v452
    %v454 = vadd.f32 %v415, %v452
    %v455 = vmax.f32 %v453, 0.0
    %v456 = vmax.f32 %v454, 0.0
    %v459 = vcombine.low %v455, %v456
    %v461 = vunpack.c.l.s4 1983009808
    %v462 = vunpack.c.0.s8 %v461
    %v463 = vlaneseq
    %v464 = vshrl.u32 %v463, 7
    %v465 = vsub.s32 %v462, %v464
    %v466 = vrot.slane %v459, %v465
    %468 = vst [vmem:[%s4] sm:$0xf] %v466
    // Predicated region
    $region26: #{_lambda_.5} parent=1 // pred_check
      _
    $region27: #{_lambda_.5} parent=1 // pred_check_branch
      %470 = sbr.rel (0) target = $region29
    $region28: #{_lambda_.5} parent=1 // pred_region
      _
    $region29: #{_lambda_.5} parent=1 // pred_fallthru
      _
    // Predicated region
    $region30: #{_lambda_.5} parent=1 // pred_check
      _
    $region31: #{_lambda_.5} parent=1 // pred_check_branch
      %472 = sbr.rel (0) target = $region33
    $region32: #{_lambda_.5} parent=1 // pred_region
      _
    $region33: #{_lambda_.5} parent=1 // pred_fallthru
      _
    %473 = vsyncpa [#allocation3], 1
    %474 = vsyncpa [#allocation5], 1

// kernel: _lambda_.6
$region0: #{_lambda_.6}
  #allocation0 [shape = 'u32[]', space=smem, size = 0x4, offset = 0x4, fixed_abs, tag = 'smem constant byte address 0x4 - core index']
  #allocation1 [shape = 'u32[144,128]{1,0:T(1,128)}', space=vmem, size = 0x12000, scoped, tag = 'internal scratch']
  %s0 = inlined_call_operand.vmem [shape: bf16[4,64,32], index: 0, kind: input, shape index: {}]
  %s1 = inlined_call_operand.hbm [shape: bf16[4,8,64], index: 1, kind: input, shape index: {}]
  %s2 = inlined_call_operand.hbm [shape: f32[8,1], index: 2, kind: input, shape index: {}]
  %s3 = inlined_call_operand.vmem [shape: f32[8,1], index: 3, kind: input, shape index: {}]
  %s4 = inlined_call_operand.vmem [shape: f32[8,128], index: 4, kind: output, shape index: {}]
  %s5 = sld [smem:[#allocation0]]
  $region34: #{_lambda_.6} parent=0
    _
  %s7 = ssub.s32 1, %s5
  %s8 = scalar_select 0, %s7, %s5
  $region1: #{_lambda_.6} parent=0
    #allocation2 [shape = 'u8[8192]{0}', space=vmem, size = 0x2000, scoped, tag = 'input window, operand 1, single buffered']
    #allocation3 [shape = 's32[1]{0}', space=sflag, size = 0x4, scoped, tag = 'scoped memory for _lambda_.6']
    #allocation4 [shape = 'u8[4096]{0}', space=vmem, size = 0x1000, scoped, tag = 'input window, operand 2, single buffered']
    #allocation5 [shape = 's32[1]{0}', space=sflag, size = 0x4, scoped, tag = 'scoped memory for _lambda_.6']
    %9 = vsyncpa [#allocation3], 0
    %10 = vsyncpa [#allocation5], 0
    // Predicated region
    $region2: #{_lambda_.6} parent=1 // pred_check
      _
    $region3: #{_lambda_.6} parent=1 // pred_check_branch
      %12 = sbr.rel (0) target = $region5
    $region4: #{_lambda_.6} parent=1 // pred_region
      _
    $region5: #{_lambda_.6} parent=1 // pred_fallthru
      _
    // Predicated region
    $region6: #{_lambda_.6} parent=1 // pred_check
      _
    $region7: #{_lambda_.6} parent=1 // pred_check_branch
      %14 = sbr.rel (0) target = $region9
    $region8: #{_lambda_.6} parent=1 // pred_region
      %s16 = ssub.s32 256, 256
      %17 = vsyncadd [#allocation3], %s16
      %s18 = sshll.u32 [#allocation2], 4
      %s19 = int_to_ptr.vmem [resolvable:$true] %s18
      %24 = dma.hbm_to_vmem [thread:$0]  %s1, 256, %s19, [#allocation3], 64, 64, 4
    $region9: #{_lambda_.6} parent=1 // pred_fallthru
      _
    // Predicated region
    $region10: #{_lambda_.6} parent=1 // pred_check
      _
    $region11: #{_lambda_.6} parent=1 // pred_check_branch
      %26 = sbr.rel (0) target = $region13
    $region12: #{_lambda_.6} parent=1 // pred_region
      %s28 = ssub.s32 128, 128
      %29 = vsyncadd [#allocation5], %s28
      %s31 = sshll.u32 [#allocation4], 4
      %s32 = int_to_ptr.vmem [resolvable:$true] %s31
      %34 = dma.hbm_to_vmem [thread:$0]  %s2, 128, %s32, [#allocation5]
    $region13: #{_lambda_.6} parent=1 // pred_fallthru
      _
    // Predicated region
    $region14: #{_lambda_.6} parent=1 // pred_check
      _
    $region15: #{_lambda_.6} parent=1 // pred_check_branch
      %36 = sbr.rel (0) target = $region17
    $region16: #{_lambda_.6} parent=1 // pred_region
      _
    $region17: #{_lambda_.6} parent=1 // pred_fallthru
      _
    // Predicated region
    $region18: #{_lambda_.6} parent=1 // pred_check
      _
    $region19: #{_lambda_.6} parent=1 // pred_check_branch
      %38 = sbr.rel (0) target = $region21
    $region20: #{_lambda_.6} parent=1 // pred_region
      %39 = dma.done [#allocation3], 256
    $region21: #{_lambda_.6} parent=1 // pred_fallthru
      _
    // Predicated region
    $region22: #{_lambda_.6} parent=1 // pred_check
      _
    $region23: #{_lambda_.6} parent=1 // pred_check_branch
      %41 = sbr.rel (0) target = $region25
    $region24: #{_lambda_.6} parent=1 // pred_region
      %42 = dma.done [#allocation5], 128
    $region25: #{_lambda_.6} parent=1 // pred_fallthru
      _
    %v44 = vld [vmem:[#allocation2] sm:$0xf]
    %v45 = vld [vmem:[%s0] sm:$0xf]
    %v46 = vld [vmem:[%s0 + $0x4] sm:$0xf]
    %v47 = vld [vmem:[%s0 + $0x8] sm:$0xf]
    %v48 = vld [vmem:[%s0 + $0xc] sm:$0xf]
    %v49 = vld [vmem:[%s0 + $0x10] sm:$0xf]
    %v50 = vld [vmem:[%s0 + $0x14] sm:$0xf]
    %v51 = vld [vmem:[%s0 + $0x18] sm:$0xf]
    %v52 = vld [vmem:[%s0 + $0x1c] sm:$0xf]
    %v61 = vunpack.c.l.b16 %v45
    %v62 = vunpack.c.l.b16 %v46
    %v63 = vunpack.c.l.b16 %v47
    %v64 = vunpack.c.l.b16 %v48
    %v65 = vunpack.c.l.b16 %v49
    %v66 = vunpack.c.l.b16 %v50
    %v67 = vunpack.c.l.b16 %v51
    %v68 = vunpack.c.l.b16 %v52
    %v69 = vpack.c.b16 %v62, %v61
    %v70 = vpack.c.b16 %v64, %v63
    %v71 = vpack.c.b16 %v66, %v65
    %v72 = vpack.c.b16 %v68, %v67
    %vm77 = vcmask 523264
    %v79 = vsel %vm77, %v44, 0
    %81 = vmatprep.subr.bf16.mxu0 0
    %82 = vmatpush1.bf16.msra.mxu0 %v69
    %83 = vmatprep.subr.bf16.mxu0 0
    %84 = vmatpush1.bf16.msra.mxu0 %v70
    %85 = vmatprep.subr.bf16.mxu0 0
    %86 = vmatpush1.bf16.msra.mxu0 %v71
    %87 = vmatprep.subr.bf16.mxu0 0
    %88 = vmatpush1.bf16.msra.mxu0 %v72
    %89 = vmatprep.subr.bf16.mxu0 0
    %90 = vmatpush1.bf16.msra.mxu0 0
    %91 = vmatprep.subr.bf16.mxu0 0
    %92 = vmatpush1.bf16.msra.mxu0 0
    %93 = vmatprep.subr.bf16.mxu0 0
    %94 = vmatpush1.bf16.msra.mxu0 0
    %95 = vmatprep.subr.bf16.mxu0 0
    %96 = vmatpush1.bf16.msra.mxu0 0
    %97 = vmatprep.subr.bf16.mxu0 0
    %98 = vmatpush1.bf16.msra.mxu0 0
    %99 = vmatprep.subr.bf16.mxu0 0
    %100 = vmatpush1.bf16.msra.mxu0 0
    %101 = vmatprep.subr.bf16.mxu0 0
    %102 = vmatpush1.bf16.msra.mxu0 0
    %103 = vmatprep.subr.bf16.mxu0 0
    %104 = vmatpush1.bf16.msra.mxu0 0
    %105 = vmatprep.subr.bf16.mxu0 0
    %106 = vmatpush1.bf16.msra.mxu0 0
    %107 = vmatprep.subr.bf16.mxu0 0
    %108 = vmatpush1.bf16.msra.mxu0 0
    %109 = vmatprep.subr.bf16.mxu0 0
    %110 = vmatpush1.bf16.msra.mxu0 0
    %111 = vmatprep.subr.bf16.mxu0 0
    %112 = vmatpush1.bf16.msra.mxu0 0
    %113 = vmatprep.mubr.bf16.mxu0 0
    %114 = vmatmul.mubr.bf16.gmra.mrb[0].mxu0 %v79
    %v115 = vpop.f32.mrb[0].mxu0
    %v116 = vadd.f32 0.0, %v115
    %v117 = vpop.f32.mrb[0].mxu0
    %v118 = vpop.f32.mrb[0].mxu0
    %v119 = vpop.f32.mrb[0].mxu0
    %120 = vdwg.mxu0
    %s121 = scalar_lea.vmem [#allocation2], 4
    %v122 = vld [vmem:[%s121] sm:$0xf]
    %s123 = scalar_lea.vmem %s0, 32
    %v124 = vld [vmem:[%s123] sm:$0xf]
    %v125 = vld [vmem:[%s123 + $0x4] sm:$0xf]
    %v126 = vld [vmem:[%s123 + $0x8] sm:$0xf]
    %v127 = vld [vmem:[%s123 + $0xc] sm:$0xf]
    %v128 = vld [vmem:[%s123 + $0x10] sm:$0xf]
    %v129 = vld [vmem:[%s123 + $0x14] sm:$0xf]
    %v130 = vld [vmem:[%s123 + $0x18] sm:$0xf]
    %v131 = vld [vmem:[%s123 + $0x1c] sm:$0xf]
    %v140 = vunpack.c.l.b16 %v124
    %v141 = vunpack.c.l.b16 %v125
    %v142 = vunpack.c.l.b16 %v126
    %v143 = vunpack.c.l.b16 %v127
    %v144 = vunpack.c.l.b16 %v128
    %v145 = vunpack.c.l.b16 %v129
    %v146 = vunpack.c.l.b16 %v130
    %v147 = vunpack.c.l.b16 %v131
    %v148 = vpack.c.b16 %v141, %v140
    %v149 = vpack.c.b16 %v143, %v142
    %v150 = vpack.c.b16 %v145, %v144
    %v151 = vpack.c.b16 %v147, %v146
    %v157 = vsel %vm77, %v122, 0
    %159 = vmatprep.subr.bf16.mxu0 0
    %160 = vmatpush1.bf16.msra.mxu0 %v148
    %161 = vmatprep.subr.bf16.mxu0 0
    %162 = vmatpush1.bf16.msra.mxu0 %v149
    %163 = vmatprep.subr.bf16.mxu0 0
    %164 = vmatpush1.bf16.msra.mxu0 %v150
    %165 = vmatprep.subr.bf16.mxu0 0
    %166 = vmatpush1.bf16.msra.mxu0 %v151
    %167 = vmatprep.subr.bf16.mxu0 0
    %168 = vmatpush1.bf16.msra.mxu0 0
    %169 = vmatprep.subr.bf16.mxu0 0
    %170 = vmatpush1.bf16.msra.mxu0 0
    %171 = vmatprep.subr.bf16.mxu0 0
    %172 = vmatpush1.bf16.msra.mxu0 0
    %173 = vmatprep.subr.bf16.mxu0 0
    %174 = vmatpush1.bf16.msra.mxu0 0
    %175 = vmatprep.subr.bf16.mxu0 0
    %176 = vmatpush1.bf16.msra.mxu0 0
    %177 = vmatprep.subr.bf16.mxu0 0
    %178 = vmatpush1.bf16.msra.mxu0 0
    %179 = vmatprep.subr.bf16.mxu0 0
    %180 = vmatpush1.bf16.msra.mxu0 0
    %181 = vmatprep.subr.bf16.mxu0 0
    %182 = vmatpush1.bf16.msra.mxu0 0
    %183 = vmatprep.subr.bf16.mxu0 0
    %184 = vmatpush1.bf16.msra.mxu0 0
    %185 = vmatprep.subr.bf16.mxu0 0
    %186 = vmatpush1.bf16.msra.mxu0 0
    %187 = vmatprep.subr.bf16.mxu0 0
    %188 = vmatpush1.bf16.msra.mxu0 0
    %189 = vmatprep.subr.bf16.mxu0 0
    %190 = vmatpush1.bf16.msra.mxu0 0
    %191 = vmatprep.mubr.bf16.mxu0 0
    %192 = vmatmul.mubr.bf16.gmra.mrb[0].mxu0 %v157
    %v193 = vpop.f32.mrb[0].mxu0
    %v194 = vadd.f32 0.0, %v193
    %v195 = vpop.f32.mrb[0].mxu0
    %v196 = vpop.f32.mrb[0].mxu0
    %v197 = vpop.f32.mrb[0].mxu0
    %198 = vdwg.mxu0
    %s199 = scalar_lea.vmem [#allocation2], 8
    %v200 = vld [vmem:[%s199] sm:$0xf]
    %s201 = scalar_lea.vmem %s0, 64
    %v202 = vld [vmem:[%s201] sm:$0xf]
    %v203 = vld [vmem:[%s201 + $0x4] sm:$0xf]
    %v204 = vld [vmem:[%s201 + $0x8] sm:$0xf]
    %v205 = vld [vmem:[%s201 + $0xc] sm:$0xf]
    %v206 = vld [vmem:[%s201 + $0x10] sm:$0xf]
    %v207 = vld [vmem:[%s201 + $0x14] sm:$0xf]
    %v208 = vld [vmem:[%s201 + $0x18] sm:$0xf]
    %v209 = vld [vmem:[%s201 + $0x1c] sm:$0xf]
    %v218 = vunpack.c.l.b16 %v202
    %v219 = vunpack.c.l.b16 %v203
    %v220 = vunpack.c.l.b16 %v204
    %v221 = vunpack.c.l.b16 %v205
    %v222 = vunpack.c.l.b16 %v206
    %v223 = vunpack.c.l.b16 %v207
    %v224 = vunpack.c.l.b16 %v208
    %v225 = vunpack.c.l.b16 %v209
    %v226 = vpack.c.b16 %v219, %v218
    %v227 = vpack.c.b16 %v221, %v220
    %v228 = vpack.c.b16 %v223, %v222
    %v229 = vpack.c.b16 %v225, %v224
    %v235 = vsel %vm77, %v200, 0
    %237 = vmatprep.subr.bf16.mxu0 0
    %238 = vmatpush1.bf16.msra.mxu0 %v226
    %239 = vmatprep.subr.bf16.mxu0 0
    %240 = vmatpush1.bf16.msra.mxu0 %v227
    %241 = vmatprep.subr.bf16.mxu0 0
    %242 = vmatpush1.bf16.msra.mxu0 %v228
    %243 = vmatprep.subr.bf16.mxu0 0
    %244 = vmatpush1.bf16.msra.mxu0 %v229
    %245 = vmatprep.subr.bf16.mxu0 0
    %246 = vmatpush1.bf16.msra.mxu0 0
    %247 = vmatprep.subr.bf16.mxu0 0
    %248 = vmatpush1.bf16.msra.mxu0 0
    %249 = vmatprep.subr.bf16.mxu0 0
    %250 = vmatpush1.bf16.msra.mxu0 0
    %251 = vmatprep.subr.bf16.mxu0 0
    %252 = vmatpush1.bf16.msra.mxu0 0
    %253 = vmatprep.subr.bf16.mxu0 0
    %254 = vmatpush1.bf16.msra.mxu0 0
    %255 = vmatprep.subr.bf16.mxu0 0
    %256 = vmatpush1.bf16.msra.mxu0 0
    %257 = vmatprep.subr.bf16.mxu0 0
    %258 = vmatpush1.bf16.msra.mxu0 0
    %259 = vmatprep.subr.bf16.mxu0 0
    %260 = vmatpush1.bf16.msra.mxu0 0
    %261 = vmatprep.subr.bf16.mxu0 0
    %262 = vmatpush1.bf16.msra.mxu0 0
    %263 = vmatprep.subr.bf16.mxu0 0
    %264 = vmatpush1.bf16.msra.mxu0 0
    %265 = vmatprep.subr.bf16.mxu0 0
    %266 = vmatpush1.bf16.msra.mxu0 0
    %267 = vmatprep.subr.bf16.mxu0 0
    %268 = vmatpush1.bf16.msra.mxu0 0
    %269 = vmatprep.mubr.bf16.mxu0 0
    %270 = vmatmul.mubr.bf16.gmra.mrb[0].mxu0 %v235
    %v271 = vpop.f32.mrb[0].mxu0
    %v272 = vadd.f32 0.0, %v271
    %v273 = vpop.f32.mrb[0].mxu0
    %v274 = vpop.f32.mrb[0].mxu0
    %v275 = vpop.f32.mrb[0].mxu0
    %276 = vdwg.mxu0
    %s277 = scalar_lea.vmem [#allocation2], 12
    %v278 = vld [vmem:[%s277] sm:$0xf]
    %s279 = scalar_lea.vmem %s0, 96
    %v280 = vld [vmem:[%s279] sm:$0xf]
    %v281 = vld [vmem:[%s279 + $0x4] sm:$0xf]
    %v282 = vld [vmem:[%s279 + $0x8] sm:$0xf]
    %v283 = vld [vmem:[%s279 + $0xc] sm:$0xf]
    %v284 = vld [vmem:[%s279 + $0x10] sm:$0xf]
    %v285 = vld [vmem:[%s279 + $0x14] sm:$0xf]
    %v286 = vld [vmem:[%s279 + $0x18] sm:$0xf]
    %v287 = vld [vmem:[%s279 + $0x1c] sm:$0xf]
    %v296 = vunpack.c.l.b16 %v280
    %v297 = vunpack.c.l.b16 %v281
    %v298 = vunpack.c.l.b16 %v282
    %v299 = vunpack.c.l.b16 %v283
    %v300 = vunpack.c.l.b16 %v284
    %v301 = vunpack.c.l.b16 %v285
    %v302 = vunpack.c.l.b16 %v286
    %v303 = vunpack.c.l.b16 %v287
    %v304 = vpack.c.b16 %v297, %v296
    %v305 = vpack.c.b16 %v299, %v298
    %v306 = vpack.c.b16 %v301, %v300
    %v307 = vpack.c.b16 %v303, %v302
    %v313 = vsel %vm77, %v278, 0
    %315 = vmatprep.subr.bf16.mxu0 0
    %316 = vmatpush1.bf16.msra.mxu0 %v304
    %317 = vmatprep.subr.bf16.mxu0 0
    %318 = vmatpush1.bf16.msra.mxu0 %v305
    %319 = vmatprep.subr.bf16.mxu0 0
    %320 = vmatpush1.bf16.msra.mxu0 %v306
    %321 = vmatprep.subr.bf16.mxu0 0
    %322 = vmatpush1.bf16.msra.mxu0 %v307
    %323 = vmatprep.subr.bf16.mxu0 0
    %324 = vmatpush1.bf16.msra.mxu0 0
    %325 = vmatprep.subr.bf16.mxu0 0
    %326 = vmatpush1.bf16.msra.mxu0 0
    %327 = vmatprep.subr.bf16.mxu0 0
    %328 = vmatpush1.bf16.msra.mxu0 0
    %329 = vmatprep.subr.bf16.mxu0 0
    %330 = vmatpush1.bf16.msra.mxu0 0
    %331 = vmatprep.subr.bf16.mxu0 0
    %332 = vmatpush1.bf16.msra.mxu0 0
    %333 = vmatprep.subr.bf16.mxu0 0
    %334 = vmatpush1.bf16.msra.mxu0 0
    %335 = vmatprep.subr.bf16.mxu0 0
    %336 = vmatpush1.bf16.msra.mxu0 0
    %337 = vmatprep.subr.bf16.mxu0 0
    %338 = vmatpush1.bf16.msra.mxu0 0
    %339 = vmatprep.subr.bf16.mxu0 0
    %340 = vmatpush1.bf16.msra.mxu0 0
    %341 = vmatprep.subr.bf16.mxu0 0
    %342 = vmatpush1.bf16.msra.mxu0 0
    %343 = vmatprep.subr.bf16.mxu0 0
    %344 = vmatpush1.bf16.msra.mxu0 0
    %345 = vmatprep.subr.bf16.mxu0 0
    %346 = vmatpush1.bf16.msra.mxu0 0
    %347 = vmatprep.mubr.bf16.mxu0 0
    %348 = vmatmul.mubr.bf16.gmra.mrb[0].mxu0 %v313
    %v349 = vpop.f32.mrb[0].mxu0
    %v350 = vadd.f32 0.0, %v349
    %v351 = vpop.f32.mrb[0].mxu0
    %v352 = vpop.f32.mrb[0].mxu0
    %v353 = vpop.f32.mrb[0].mxu0
    %354 = vdwg.mxu0
    %356 = vrot.lane.b32.xlu0 %v194, 32
    %v357 = vpop.permute.xlu0 %356
    %360 = vrot.lane.b32.xlu0 %v272, 64
    %v361 = vpop.permute.xlu0 %360
    %364 = vrot.lane.b32.xlu0 %v350, 96
    %v365 = vpop.permute.xlu0 %364
    %vm367 = vcmask 261120
    %v368 = vsel %vm367, %v116, %v357
    %v369 = vsel %vm77, %v368, %v361
    %vm370 = vcmask 785408
    %v371 = vsel %vm370, %v369, %v365
    %372 = vadd.xlane.f32.xlu0 %v371
    %v373 = vpop.xlane.xlu0 %372
    %v374 = vrcp.pop 128.0
    %v375 = vmul.f32 %v373, %v374
    %v376 = vsub.f32 %v371, %v375
    %v377 = vmul.f32 %v376, %v376
    %378 = vadd.xlane.f32.xlu0 %v377
    %v379 = vpop.xlane.xlu0 %378
    %v380 = vmul.f32 %v379, %v374
    %v381 = vld [vmem:[#allocation4] sm:$0xff]
    %v382 = vadd.f32 %v380, 1e-05
    %v383 = vrsqrt.pop %v382
    %v384 = vmul.f32 %v381, %v383
    %v385 = vld [vmem:[%s3] sm:$0xff]
    %v386 = vmul.f32 %v375, %v384
    %v387 = vsub.f32 %v385, %v386
    %389 = vset.pattern.permute.xlu0 0
    %390 = vperm.xlu0 %389, %v384
    %v391 = vpop.permute.xlu0 %390
    %v393 = vmul.f32 %v371, %v391
    %395 = vset.pattern.permute.xlu0 0
    %396 = vperm.xlu0 %395, %v387
    %v397 = vpop.permute.xlu0 %396
    %v399 = vadd.f32 %v393, %v397
    %v400 = vmax.f32 %v399, 0.0
    %401 = vst [vmem:[%s4] sm:$0xff] %v400
    // Predicated region
    $region26: #{_lambda_.6} parent=1 // pred_check
      _
    $region27: #{_lambda_.6} parent=1 // pred_check_branch
      %403 = sbr.rel (0) target = $region29
    $region28: #{_lambda_.6} parent=1 // pred_region
      _
    $region29: #{_lambda_.6} parent=1 // pred_fallthru
      _
    // Predicated region
    $region30: #{_lambda_.6} parent=1 // pred_check
      _
    $region31: #{_lambda_.6} parent=1 // pred_check_branch
      %405 = sbr.rel (0) target = $region33
    $region32: #{_lambda_.6} parent=1 // pred_region
      _
    $region33: #{_lambda_.6} parent=1 // pred_fallthru
      _
    %406 = vsyncpa [#allocation3], 1
    %407 = vsyncpa [#allocation5], 1

// kernel: _lambda_.7
$region0: #{_lambda_.7}
  #allocation0 [shape = 'u32[]', space=smem, size = 0x4, offset = 0x4, fixed_abs, tag = 'smem constant byte address 0x4 - core index']
  #allocation1 [shape = 'u32[144,128]{1,0:T(1,128)}', space=vmem, size = 0x12000, scoped, tag = 'internal scratch']
  %s0 = inlined_call_operand.vmem [shape: bf16[4,32,128], index: 0, kind: input, shape index: {}]
  %s1 = inlined_call_operand.hbm [shape: bf16[4,4,32], index: 1, kind: input, shape index: {}]
  %s2 = inlined_call_operand.hbm [shape: f32[4,1], index: 2, kind: input, shape index: {}]
  %s3 = inlined_call_operand.vmem [shape: f32[4,1], index: 3, kind: input, shape index: {}]
  %s4 = inlined_call_operand.vmem [shape: f32[4,512], index: 4, kind: output, shape index: {}]
  %s5 = sld [smem:[#allocation0]]
  $region34: #{_lambda_.7} parent=0
    _
  %s7 = ssub.s32 1, %s5
  %s8 = scalar_select 0, %s7, %s5
  $region1: #{_lambda_.7} parent=0
    #allocation2 [shape = 'u8[4096]{0}', space=vmem, size = 0x1000, scoped, tag = 'input window, operand 1, single buffered']
    #allocation3 [shape = 's32[1]{0}', space=sflag, size = 0x4, scoped, tag = 'scoped memory for _lambda_.7']
    #allocation4 [shape = 'u8[2048]{0}', space=vmem, size = 0x800, scoped, tag = 'input window, operand 2, single buffered']
    #allocation5 [shape = 's32[1]{0}', space=sflag, size = 0x4, scoped, tag = 'scoped memory for _lambda_.7']
    %9 = vsyncpa [#allocation3], 0
    %10 = vsyncpa [#allocation5], 0
    // Predicated region
    $region2: #{_lambda_.7} parent=1 // pred_check
      _
    $region3: #{_lambda_.7} parent=1 // pred_check_branch
      %12 = sbr.rel (0) target = $region5
    $region4: #{_lambda_.7} parent=1 // pred_region
      _
    $region5: #{_lambda_.7} parent=1 // pred_fallthru
      _
    // Predicated region
    $region6: #{_lambda_.7} parent=1 // pred_check
      _
    $region7: #{_lambda_.7} parent=1 // pred_check_branch
      %14 = sbr.rel (0) target = $region9
    $region8: #{_lambda_.7} parent=1 // pred_region
      %s16 = ssub.s32 128, 128
      %17 = vsyncadd [#allocation3], %s16
      %s18 = sshll.u32 [#allocation2], 4
      %s19 = int_to_ptr.vmem [resolvable:$true] %s18
      %24 = dma.hbm_to_vmem [thread:$0]  %s1, 128, %s19, [#allocation3], 32, 32, 2
    $region9: #{_lambda_.7} parent=1 // pred_fallthru
      _
    // Predicated region
    $region10: #{_lambda_.7} parent=1 // pred_check
      _
    $region11: #{_lambda_.7} parent=1 // pred_check_branch
      %26 = sbr.rel (0) target = $region13
    $region12: #{_lambda_.7} parent=1 // pred_region
      %s28 = ssub.s32 64, 64
      %29 = vsyncadd [#allocation5], %s28
      %s31 = sshll.u32 [#allocation4], 4
      %s32 = int_to_ptr.vmem [resolvable:$true] %s31
      %34 = dma.hbm_to_vmem [thread:$0]  %s2, 64, %s32, [#allocation5]
    $region13: #{_lambda_.7} parent=1 // pred_fallthru
      _
    // Predicated region
    $region14: #{_lambda_.7} parent=1 // pred_check
      _
    $region15: #{_lambda_.7} parent=1 // pred_check_branch
      %36 = sbr.rel (0) target = $region17
    $region16: #{_lambda_.7} parent=1 // pred_region
      _
    $region17: #{_lambda_.7} parent=1 // pred_fallthru
      _
    // Predicated region
    $region18: #{_lambda_.7} parent=1 // pred_check
      _
    $region19: #{_lambda_.7} parent=1 // pred_check_branch
      %38 = sbr.rel (0) target = $region21
    $region20: #{_lambda_.7} parent=1 // pred_region
      %39 = dma.done [#allocation3], 128
    $region21: #{_lambda_.7} parent=1 // pred_fallthru
      _
    // Predicated region
    $region22: #{_lambda_.7} parent=1 // pred_check
      _
    $region23: #{_lambda_.7} parent=1 // pred_check_branch
      %41 = sbr.rel (0) target = $region25
    $region24: #{_lambda_.7} parent=1 // pred_region
      %42 = dma.done [#allocation5], 64
    $region25: #{_lambda_.7} parent=1 // pred_fallthru
      _
    %v44 = vld [vmem:[#allocation2] sm:$0x3]
    %v45 = vld [vmem:[%s0] sm:$0xf]
    %v46 = vld [vmem:[%s0 + $0x4] sm:$0xf]
    %v47 = vld [vmem:[%s0 + $0x8] sm:$0xf]
    %v48 = vld [vmem:[%s0 + $0xc] sm:$0xf]
    %v53 = vunpack.c.l.b16 %v45
    %v54 = vunpack.c.l.b16 %v46
    %v55 = vunpack.c.l.b16 %v47
    %v56 = vunpack.c.l.b16 %v48
    %v57 = vpack.c.b16 %v54, %v53
    %v58 = vpack.c.b16 %v56, %v55
    %vm61 = vcmask 261120
    %v63 = vsel %vm61, %v44, 0
    %65 = vmatprep.subr.bf16.mxu0 0
    %66 = vmatpush1.bf16.msra.mxu0 %v57
    %67 = vmatprep.subr.bf16.mxu0 0
    %68 = vmatpush1.bf16.msra.mxu0 %v58
    %69 = vmatprep.subr.bf16.mxu0 0
    %70 = vmatpush1.bf16.msra.mxu0 0
    %71 = vmatprep.subr.bf16.mxu0 0
    %72 = vmatpush1.bf16.msra.mxu0 0
    %73 = vmatprep.subr.bf16.mxu0 0
    %74 = vmatpush1.bf16.msra.mxu0 0
    %75 = vmatprep.subr.bf16.mxu0 0
    %76 = vmatpush1.bf16.msra.mxu0 0
    %77 = vmatprep.subr.bf16.mxu0 0
    %78 = vmatpush1.bf16.msra.mxu0 0
    %79 = vmatprep.subr.bf16.mxu0 0
    %80 = vmatpush1.bf16.msra.mxu0 0
    %81 = vmatprep.subr.bf16.mxu0 0
    %82 = vmatpush1.bf16.msra.mxu0 0
    %83 = vmatprep.subr.bf16.mxu0 0
    %84 = vmatpush1.bf16.msra.mxu0 0
    %85 = vmatprep.subr.bf16.mxu0 0
    %86 = vmatpush1.bf16.msra.mxu0 0
    %87 = vmatprep.subr.bf16.mxu0 0
    %88 = vmatpush1.bf16.msra.mxu0 0
    %89 = vmatprep.subr.bf16.mxu0 0
    %90 = vmatpush1.bf16.msra.mxu0 0
    %91 = vmatprep.subr.bf16.mxu0 0
    %92 = vmatpush1.bf16.msra.mxu0 0
    %93 = vmatprep.subr.bf16.mxu0 0
    %94 = vmatpush1.bf16.msra.mxu0 0
    %95 = vmatprep.subr.bf16.mxu0 0
    %96 = vmatpush1.bf16.msra.mxu0 0
    %97 = vmatprep.mubr.bf16.mxu0 0
    %98 = vmatmul.mubr.bf16.gmra.mrb[0].mxu0 %v63
    %v99 = vpop.f32.mrb[0].mxu0
    %v100 = vadd.f32 0.0, %v99
    %v101 = vpop.f32.mrb[0].mxu0
    %v102 = vpop.f32.mrb[0].mxu0
    %v103 = vpop.f32.mrb[0].mxu0
    %104 = vdwg.mxu0
    %s105 = scalar_lea.vmem [#allocation2], 2
    %v106 = vld [vmem:[%s105] sm:$0x3]
    %s107 = scalar_lea.vmem %s0, 16
    %v108 = vld [vmem:[%s107] sm:$0xf]
    %v109 = vld [vmem:[%s107 + $0x4] sm:$0xf]
    %v110 = vld [vmem:[%s107 + $0x8] sm:$0xf]
    %v111 = vld [vmem:[%s107 + $0xc] sm:$0xf]
    %v116 = vunpack.c.l.b16 %v108
    %v117 = vunpack.c.l.b16 %v109
    %v118 = vunpack.c.l.b16 %v110
    %v119 = vunpack.c.l.b16 %v111
    %v120 = vpack.c.b16 %v117, %v116
    %v121 = vpack.c.b16 %v119, %v118
    %v125 = vsel %vm61, %v106, 0
    %127 = vmatprep.subr.bf16.mxu0 0
    %128 = vmatpush1.bf16.msra.mxu0 %v120
    %129 = vmatprep.subr.bf16.mxu0 0
    %130 = vmatpush1.bf16.msra.mxu0 %v121
    %131 = vmatprep.subr.bf16.mxu0 0
    %132 = vmatpush1.bf16.msra.mxu0 0
    %133 = vmatprep.subr.bf16.mxu0 0
    %134 = vmatpush1.bf16.msra.mxu0 0
    %135 = vmatprep.subr.bf16.mxu0 0
    %136 = vmatpush1.bf16.msra.mxu0 0
    %137 = vmatprep.subr.bf16.mxu0 0
    %138 = vmatpush1.bf16.msra.mxu0 0
    %139 = vmatprep.subr.bf16.mxu0 0
    %140 = vmatpush1.bf16.msra.mxu0 0
    %141 = vmatprep.subr.bf16.mxu0 0
    %142 = vmatpush1.bf16.msra.mxu0 0
    %143 = vmatprep.subr.bf16.mxu0 0
    %144 = vmatpush1.bf16.msra.mxu0 0
    %145 = vmatprep.subr.bf16.mxu0 0
    %146 = vmatpush1.bf16.msra.mxu0 0
    %147 = vmatprep.subr.bf16.mxu0 0
    %148 = vmatpush1.bf16.msra.mxu0 0
    %149 = vmatprep.subr.bf16.mxu0 0
    %150 = vmatpush1.bf16.msra.mxu0 0
    %151 = vmatprep.subr.bf16.mxu0 0
    %152 = vmatpush1.bf16.msra.mxu0 0
    %153 = vmatprep.subr.bf16.mxu0 0
    %154 = vmatpush1.bf16.msra.mxu0 0
    %155 = vmatprep.subr.bf16.mxu0 0
    %156 = vmatpush1.bf16.msra.mxu0 0
    %157 = vmatprep.subr.bf16.mxu0 0
    %158 = vmatpush1.bf16.msra.mxu0 0
    %159 = vmatprep.mubr.bf16.mxu0 0
    %160 = vmatmul.mubr.bf16.gmra.mrb[0].mxu0 %v125
    %v161 = vpop.f32.mrb[0].mxu0
    %v162 = vadd.f32 0.0, %v161
    %v163 = vpop.f32.mrb[0].mxu0
    %v164 = vpop.f32.mrb[0].mxu0
    %v165 = vpop.f32.mrb[0].mxu0
    %166 = vdwg.mxu0
    %s167 = scalar_lea.vmem [#allocation2], 4
    %v168 = vld [vmem:[%s167] sm:$0x3]
    %s169 = scalar_lea.vmem %s0, 32
    %v170 = vld [vmem:[%s169] sm:$0xf]
    %v171 = vld [vmem:[%s169 + $0x4] sm:$0xf]
    %v172 = vld [vmem:[%s169 + $0x8] sm:$0xf]
    %v173 = vld [vmem:[%s169 + $0xc] sm:$0xf]
    %v178 = vunpack.c.l.b16 %v170
    %v179 = vunpack.c.l.b16 %v171
    %v180 = vunpack.c.l.b16 %v172
    %v181 = vunpack.c.l.b16 %v173
    %v182 = vpack.c.b16 %v179, %v178
    %v183 = vpack.c.b16 %v181, %v180
    %v187 = vsel %vm61, %v168, 0
    %189 = vmatprep.subr.bf16.mxu0 0
    %190 = vmatpush1.bf16.msra.mxu0 %v182
    %191 = vmatprep.subr.bf16.mxu0 0
    %192 = vmatpush1.bf16.msra.mxu0 %v183
    %193 = vmatprep.subr.bf16.mxu0 0
    %194 = vmatpush1.bf16.msra.mxu0 0
    %195 = vmatprep.subr.bf16.mxu0 0
    %196 = vmatpush1.bf16.msra.mxu0 0
    %197 = vmatprep.subr.bf16.mxu0 0
    %198 = vmatpush1.bf16.msra.mxu0 0
    %199 = vmatprep.subr.bf16.mxu0 0
    %200 = vmatpush1.bf16.msra.mxu0 0
    %201 = vmatprep.subr.bf16.mxu0 0
    %202 = vmatpush1.bf16.msra.mxu0 0
    %203 = vmatprep.subr.bf16.mxu0 0
    %204 = vmatpush1.bf16.msra.mxu0 0
    %205 = vmatprep.subr.bf16.mxu0 0
    %206 = vmatpush1.bf16.msra.mxu0 0
    %207 = vmatprep.subr.bf16.mxu0 0
    %208 = vmatpush1.bf16.msra.mxu0 0
    %209 = vmatprep.subr.bf16.mxu0 0
    %210 = vmatpush1.bf16.msra.mxu0 0
    %211 = vmatprep.subr.bf16.mxu0 0
    %212 = vmatpush1.bf16.msra.mxu0 0
    %213 = vmatprep.subr.bf16.mxu0 0
    %214 = vmatpush1.bf16.msra.mxu0 0
    %215 = vmatprep.subr.bf16.mxu0 0
    %216 = vmatpush1.bf16.msra.mxu0 0
    %217 = vmatprep.subr.bf16.mxu0 0
    %218 = vmatpush1.bf16.msra.mxu0 0
    %219 = vmatprep.subr.bf16.mxu0 0
    %220 = vmatpush1.bf16.msra.mxu0 0
    %221 = vmatprep.mubr.bf16.mxu0 0
    %222 = vmatmul.mubr.bf16.gmra.mrb[0].mxu0 %v187
    %v223 = vpop.f32.mrb[0].mxu0
    %v224 = vadd.f32 0.0, %v223
    %v225 = vpop.f32.mrb[0].mxu0
    %v226 = vpop.f32.mrb[0].mxu0
    %v227 = vpop.f32.mrb[0].mxu0
    %228 = vdwg.mxu0
    %s229 = scalar_lea.vmem [#allocation2], 6
    %v230 = vld [vmem:[%s229] sm:$0x3]
    %s231 = scalar_lea.vmem %s0, 48
    %v232 = vld [vmem:[%s231] sm:$0xf]
    %v233 = vld [vmem:[%s231 + $0x4] sm:$0xf]
    %v234 = vld [vmem:[%s231 + $0x8] sm:$0xf]
    %v235 = vld [vmem:[%s231 + $0xc] sm:$0xf]
    %v240 = vunpack.c.l.b16 %v232
    %v241 = vunpack.c.l.b16 %v233
    %v242 = vunpack.c.l.b16 %v234
    %v243 = vunpack.c.l.b16 %v235
    %v244 = vpack.c.b16 %v241, %v240
    %v245 = vpack.c.b16 %v243, %v242
    %v249 = vsel %vm61, %v230, 0
    %251 = vmatprep.subr.bf16.mxu0 0
    %252 = vmatpush1.bf16.msra.mxu0 %v244
    %253 = vmatprep.subr.bf16.mxu0 0
    %254 = vmatpush1.bf16.msra.mxu0 %v245
    %255 = vmatprep.subr.bf16.mxu0 0
    %256 = vmatpush1.bf16.msra.mxu0 0
    %257 = vmatprep.subr.bf16.mxu0 0
    %258 = vmatpush1.bf16.msra.mxu0 0
    %259 = vmatprep.subr.bf16.mxu0 0
    %260 = vmatpush1.bf16.msra.mxu0 0
    %261 = vmatprep.subr.bf16.mxu0 0
    %262 = vmatpush1.bf16.msra.mxu0 0
    %263 = vmatprep.subr.bf16.mxu0 0
    %264 = vmatpush1.bf16.msra.mxu0 0
    %265 = vmatprep.subr.bf16.mxu0 0
    %266 = vmatpush1.bf16.msra.mxu0 0
    %267 = vmatprep.subr.bf16.mxu0 0
    %268 = vmatpush1.bf16.msra.mxu0 0
    %269 = vmatprep.subr.bf16.mxu0 0
    %270 = vmatpush1.bf16.msra.mxu0 0
    %271 = vmatprep.subr.bf16.mxu0 0
    %272 = vmatpush1.bf16.msra.mxu0 0
    %273 = vmatprep.subr.bf16.mxu0 0
    %274 = vmatpush1.bf16.msra.mxu0 0
    %275 = vmatprep.subr.bf16.mxu0 0
    %276 = vmatpush1.bf16.msra.mxu0 0
    %277 = vmatprep.subr.bf16.mxu0 0
    %278 = vmatpush1.bf16.msra.mxu0 0
    %279 = vmatprep.subr.bf16.mxu0 0
    %280 = vmatpush1.bf16.msra.mxu0 0
    %281 = vmatprep.subr.bf16.mxu0 0
    %282 = vmatpush1.bf16.msra.mxu0 0
    %283 = vmatprep.mubr.bf16.mxu0 0
    %284 = vmatmul.mubr.bf16.gmra.mrb[0].mxu0 %v249
    %v285 = vpop.f32.mrb[0].mxu0
    %v286 = vadd.f32 0.0, %v285
    %v287 = vpop.f32.mrb[0].mxu0
    %v288 = vpop.f32.mrb[0].mxu0
    %v289 = vpop.f32.mrb[0].mxu0
    %290 = vdwg.mxu0
    %vm291 = vcmask 1043456
    %v292 = vsel %vm291, %v100, 0.0
    %v293 = vsel %vm291, %v162, 0.0
    %v294 = vadd.f32 %v292, %v293
    %v295 = vsel %vm291, %v224, 0.0
    %v296 = vadd.f32 %v294, %v295
    %v297 = vsel %vm291, %v286, 0.0
    %v298 = vadd.f32 %v296, %v297
    %299 = vadd.xlane.f32.xlu0 %v298
    %v300 = vpop.xlane.xlu0 %299
    %v301 = vrcp.pop 512.0
    %v302 = vmul.f32 %v300, %v301
    %v303 = vsub.f32 %v100, %v302
    %v304 = vsub.f32 %v162, %v302
    %v305 = vsub.f32 %v224, %v302
    %v306 = vsub.f32 %v286, %v302
    %v307 = vmul.f32 %v303, %v303
    %v308 = vmul.f32 %v304, %v304
    %v309 = vmul.f32 %v305, %v305
    %v310 = vmul.f32 %v306, %v306
    %v311 = vsel %vm291, %v307, 0.0
    %v312 = vsel %vm291, %v308, 0.0
    %v313 = vadd.f32 %v311, %v312
    %v314 = vsel %vm291, %v309, 0.0
    %v315 = vadd.f32 %v313, %v314
    %v316 = vsel %vm291, %v310, 0.0
    %v317 = vadd.f32 %v315, %v316
    %318 = vadd.xlane.f32.xlu0 %v317
    %v319 = vpop.xlane.xlu0 %318
    %v320 = vmul.f32 %v319, %v301
    %v321 = vld [vmem:[#allocation4] sm:$0xf]
    %v322 = vadd.f32 %v320, 1e-05
    %v323 = vrsqrt.pop %v322
    %v324 = vmul.f32 %v321, %v323
    %v325 = vld [vmem:[%s3] sm:$0xf]
    %v326 = vmul.f32 %v302, %v324
    %v327 = vsub.f32 %v325, %v326
    %329 = vset.pattern.permute.xlu0 0
    %330 = vperm.xlu0 %329, %v324
    %v331 = vpop.permute.xlu0 %330
    %v333 = vmul.f32 %v100, %v331
    %v334 = vmul.f32 %v162, %v331
    %v335 = vmul.f32 %v224, %v331
    %v336 = vmul.f32 %v286, %v331
    %338 = vset.pattern.permute.xlu0 0
    %339 = vperm.xlu0 %338, %v327
    %v340 = vpop.permute.xlu0 %339
    %v342 = vadd.f32 %v333, %v340
    %v343 = vadd.f32 %v334, %v340
    %v344 = vadd.f32 %v335, %v340
    %v345 = vadd.f32 %v336, %v340
    %v346 = vmax.f32 %v342, 0.0
    %v347 = vmax.f32 %v343, 0.0
    %v348 = vmax.f32 %v344, 0.0
    %v349 = vmax.f32 %v345, 0.0
    %v354 = vcombine.low %v346, %v347
    %v355 = vcombine.low %v348, %v349
    %358 = vst [vmem:[%s4] sm:$0xff] %v354
    %359 = vst [vmem:[%s4 + $0x8] sm:$0xff] %v355
    // Predicated region
    $region26: #{_lambda_.7} parent=1 // pred_check
      _
    $region27: #{_lambda_.7} parent=1 // pred_check_branch
      %361 = sbr.rel (0) target = $region29
    $region28: #{_lambda_.7} parent=1 // pred_region
      _
    $region29: #{_lambda_.7} parent=1 // pred_fallthru
      _
    // Predicated region
    $region30: #{_lambda_.7} parent=1 // pred_check
      _
    $region31: #{_lambda_.7} parent=1 // pred_check_branch
      %363 = sbr.rel (0) target = $region33
    $region32: #{_lambda_.7} parent=1 // pred_region
      _
    $region33: #{_lambda_.7} parent=1 // pred_fallthru
      _
    %364 = vsyncpa [#allocation3], 1
    %365 = vsyncpa [#allocation5], 1

// kernel: _lambda_.8
$region0: #{_lambda_.8}
  #allocation0 [shape = 'u32[]', space=smem, size = 0x4, offset = 0x4, fixed_abs, tag = 'smem constant byte address 0x4 - core index']
  #allocation1 [shape = 'u32[144,128]{1,0:T(1,128)}', space=vmem, size = 0x12000, scoped, tag = 'internal scratch']
  %s0 = inlined_call_operand.vmem [shape: bf16[4,16,512], index: 0, kind: input, shape index: {}]
  %s1 = inlined_call_operand.vmem [shape: bf16[4,2,16], index: 1, kind: input, shape index: {}]
  %s2 = inlined_call_operand.vmem [shape: f32[2,1], index: 2, kind: input, shape index: {}]
  %s3 = inlined_call_operand.vmem [shape: f32[2,1], index: 3, kind: input, shape index: {}]
  %s4 = inlined_call_operand.vmem [shape: f32[2,2048], index: 4, kind: output, shape index: {}]
  %s5 = sld [smem:[#allocation0]]
  $region26: #{_lambda_.8} parent=0
    _
  %s7 = ssub.s32 1, %s5
  %s8 = scalar_select 0, %s7, %s5
  // Predicated region
  $region2: #{_lambda_.8} parent=0 // pred_check
    _
  $region3: #{_lambda_.8} parent=0 // pred_check_branch
    %10 = sbr.rel (0) target = $region5
  $region4: #{_lambda_.8} parent=0 // pred_region
    _
  $region5: #{_lambda_.8} parent=0 // pred_fallthru
    _
  // Predicated region
  $region6: #{_lambda_.8} parent=0 // pred_check
    _
  $region7: #{_lambda_.8} parent=0 // pred_check_branch
    %12 = sbr.rel (0) target = $region9
  $region8: #{_lambda_.8} parent=0 // pred_region
    _
  $region9: #{_lambda_.8} parent=0 // pred_fallthru
    _
  // Predicated region
  $region10: #{_lambda_.8} parent=0 // pred_check
    _
  $region11: #{_lambda_.8} parent=0 // pred_check_branch
    %14 = sbr.rel (0) target = $region13
  $region12: #{_lambda_.8} parent=0 // pred_region
    _
  $region13: #{_lambda_.8} parent=0 // pred_fallthru
    _
  // Predicated region
  $region14: #{_lambda_.8} parent=0 // pred_check
    _
  $region15: #{_lambda_.8} parent=0 // pred_check_branch
    %16 = sbr.rel (0) target = $region17
  $region16: #{_lambda_.8} parent=0 // pred_region
    _
  $region17: #{_lambda_.8} parent=0 // pred_fallthru
    _
  %v18 = vld [vmem:[%s1] sm:$0x1]
  %v19 = vld [vmem:[%s0] sm:$0xff]
  %v20 = vld [vmem:[%s0 + $0x8] sm:$0xff]
  %v21 = vld [vmem:[%s0 + $0x10] sm:$0xff]
  %v22 = vld [vmem:[%s0 + $0x18] sm:$0xff]
  %v27 = vunpack.c.l.b16 %v19
  %v28 = vunpack.c.h.b16 %v19
  %v29 = vunpack.c.l.b16 %v20
  %v30 = vunpack.c.h.b16 %v20
  %v31 = vunpack.c.l.b16 %v21
  %v32 = vunpack.c.h.b16 %v21
  %v33 = vunpack.c.l.b16 %v22
  %v34 = vunpack.c.h.b16 %v22
  %v35 = vpack.c.b16 %v31, %v27
  %v36 = vpack.c.b16 %v32, %v28
  %v37 = vpack.c.b16 %v33, %v29
  %v38 = vpack.c.b16 %v34, %v30
  %vm43 = vcmask 130048
  %v45 = vsel %vm43, %v18, 0
  %47 = vmatprep.subr.bf16.mxu0 %v36
  %48 = vmatpush1.bf16.msra.mxu0 %v35
  %49 = vmatprep.subr.bf16.mxu0 0
  %50 = vmatpush1.bf16.msra.mxu0 0
  %51 = vmatprep.subr.bf16.mxu0 0
  %52 = vmatpush1.bf16.msra.mxu0 0
  %53 = vmatprep.subr.bf16.mxu0 0
  %54 = vmatpush1.bf16.msra.mxu0 0
  %55 = vmatprep.subr.bf16.mxu0 0
  %56 = vmatpush1.bf16.msra.mxu0 0
  %57 = vmatprep.subr.bf16.mxu0 0
  %58 = vmatpush1.bf16.msra.mxu0 0
  %59 = vmatprep.subr.bf16.mxu0 0
  %60 = vmatpush1.bf16.msra.mxu0 0
  %61 = vmatprep.subr.bf16.mxu0 0
  %62 = vmatpush1.bf16.msra.mxu0 0
  %63 = vmatprep.subr.bf16.mxu0 0
  %64 = vmatpush1.bf16.msra.mxu0 0
  %65 = vmatprep.subr.bf16.mxu0 0
  %66 = vmatpush1.bf16.msra.mxu0 0
  %67 = vmatprep.subr.bf16.mxu0 0
  %68 = vmatpush1.bf16.msra.mxu0 0
  %69 = vmatprep.subr.bf16.mxu0 0
  %70 = vmatpush1.bf16.msra.mxu0 0
  %71 = vmatprep.subr.bf16.mxu0 0
  %72 = vmatpush1.bf16.msra.mxu0 0
  %73 = vmatprep.subr.bf16.mxu0 0
  %74 = vmatpush1.bf16.msra.mxu0 0
  %75 = vmatprep.subr.bf16.mxu0 0
  %76 = vmatpush1.bf16.msra.mxu0 0
  %77 = vmatprep.subr.bf16.mxu0 0
  %78 = vmatpush1.bf16.msra.mxu0 0
  %79 = vmatprep.mubr.bf16.mxu0 0
  %80 = vmatmul.mubr.bf16.gmra.mrb[0].mxu0 %v45
  %v81 = vpop.f32.mrb[0].mxu0
  %v82 = vadd.f32 0.0, %v81
  %v83 = vpop.f32.mrb[0].mxu0
  %v84 = vadd.f32 0.0, %v83
  %v85 = vpop.f32.mrb[0].mxu0
  %v86 = vpop.f32.mrb[0].mxu0
  %87 = vdwg.mxu0
  %88 = vmatprep.subr.bf16.mxu0 %v38
  %89 = vmatpush1.bf16.msra.mxu0 %v37
  %90 = vmatprep.subr.bf16.mxu0 0
  %91 = vmatpush1.bf16.msra.mxu0 0
  %92 = vmatprep.subr.bf16.mxu0 0
  %93 = vmatpush1.bf16.msra.mxu0 0
  %94 = vmatprep.subr.bf16.mxu0 0
  %95 = vmatpush1.bf16.msra.mxu0 0
  %96 = vmatprep.subr.bf16.mxu0 0
  %97 = vmatpush1.bf16.msra.mxu0 0
  %98 = vmatprep.subr.bf16.mxu0 0
  %99 = vmatpush1.bf16.msra.mxu0 0
  %100 = vmatprep.subr.bf16.mxu0 0
  %101 = vmatpush1.bf16.msra.mxu0 0
  %102 = vmatprep.subr.bf16.mxu0 0
  %103 = vmatpush1.bf16.msra.mxu0 0
  %104 = vmatprep.subr.bf16.mxu0 0
  %105 = vmatpush1.bf16.msra.mxu0 0
  %106 = vmatprep.subr.bf16.mxu0 0
  %107 = vmatpush1.bf16.msra.mxu0 0
  %108 = vmatprep.subr.bf16.mxu0 0
  %109 = vmatpush1.bf16.msra.mxu0 0
  %110 = vmatprep.subr.bf16.mxu0 0
  %111 = vmatpush1.bf16.msra.mxu0 0
  %112 = vmatprep.subr.bf16.mxu0 0
  %113 = vmatpush1.bf16.msra.mxu0 0
  %114 = vmatprep.subr.bf16.mxu0 0
  %115 = vmatpush1.bf16.msra.mxu0 0
  %116 = vmatprep.subr.bf16.mxu0 0
  %117 = vmatpush1.bf16.msra.mxu0 0
  %118 = vmatprep.subr.bf16.mxu0 0
  %119 = vmatpush1.bf16.msra.mxu0 0
  %120 = vmatprep.mubr.bf16.mxu0 0
  %121 = vmatmul.mubr.bf16.gmra.mrb[0].mxu0 %v45
  %v122 = vpop.f32.mrb[0].mxu0
  %v123 = vadd.f32 0.0, %v122
  %v124 = vpop.f32.mrb[0].mxu0
  %v125 = vadd.f32 0.0, %v124
  %v126 = vpop.f32.mrb[0].mxu0
  %v127 = vpop.f32.mrb[0].mxu0
  %128 = vdwg.mxu0
  %s129 = scalar_lea.vmem %s1, 1
  %v130 = vld [vmem:[%s129] sm:$0x1]
  %s131 = scalar_lea.vmem %s0, 32
  %v132 = vld [vmem:[%s131] sm:$0xff]
  %v133 = vld [vmem:[%s131 + $0x8] sm:$0xff]
  %v134 = vld [vmem:[%s131 + $0x10] sm:$0xff]
  %v135 = vld [vmem:[%s131 + $0x18] sm:$0xff]
  %v140 = vunpack.c.l.b16 %v132
  %v141 = vunpack.c.h.b16 %v132
  %v142 = vunpack.c.l.b16 %v133
  %v143 = vunpack.c.h.b16 %v133
  %v144 = vunpack.c.l.b16 %v134
  %v145 = vunpack.c.h.b16 %v134
  %v146 = vunpack.c.l.b16 %v135
  %v147 = vunpack.c.h.b16 %v135
  %v148 = vpack.c.b16 %v144, %v140
  %v149 = vpack.c.b16 %v145, %v141
  %v150 = vpack.c.b16 %v146, %v142
  %v151 = vpack.c.b16 %v147, %v143
  %v157 = vsel %vm43, %v130, 0
  %159 = vmatprep.subr.bf16.mxu0 %v149
  %160 = vmatpush1.bf16.msra.mxu0 %v148
  %161 = vmatprep.subr.bf16.mxu0 0
  %162 = vmatpush1.bf16.msra.mxu0 0
  %163 = vmatprep.subr.bf16.mxu0 0
  %164 = vmatpush1.bf16.msra.mxu0 0
  %165 = vmatprep.subr.bf16.mxu0 0
  %166 = vmatpush1.bf16.msra.mxu0 0
  %167 = vmatprep.subr.bf16.mxu0 0
  %168 = vmatpush1.bf16.msra.mxu0 0
  %169 = vmatprep.subr.bf16.mxu0 0
  %170 = vmatpush1.bf16.msra.mxu0 0
  %171 = vmatprep.subr.bf16.mxu0 0
  %172 = vmatpush1.bf16.msra.mxu0 0
  %173 = vmatprep.subr.bf16.mxu0 0
  %174 = vmatpush1.bf16.msra.mxu0 0
  %175 = vmatprep.subr.bf16.mxu0 0
  %176 = vmatpush1.bf16.msra.mxu0 0
  %177 = vmatprep.subr.bf16.mxu0 0
  %178 = vmatpush1.bf16.msra.mxu0 0
  %179 = vmatprep.subr.bf16.mxu0 0
  %180 = vmatpush1.bf16.msra.mxu0 0
  %181 = vmatprep.subr.bf16.mxu0 0
  %182 = vmatpush1.bf16.msra.mxu0 0
  %183 = vmatprep.subr.bf16.mxu0 0
  %184 = vmatpush1.bf16.msra.mxu0 0
  %185 = vmatprep.subr.bf16.mxu0 0
  %186 = vmatpush1.bf16.msra.mxu0 0
  %187 = vmatprep.subr.bf16.mxu0 0
  %188 = vmatpush1.bf16.msra.mxu0 0
  %189 = vmatprep.subr.bf16.mxu0 0
  %190 = vmatpush1.bf16.msra.mxu0 0
  %191 = vmatprep.mubr.bf16.mxu0 0
  %192 = vmatmul.mubr.bf16.gmra.mrb[0].mxu0 %v157
  %v193 = vpop.f32.mrb[0].mxu0
  %v194 = vadd.f32 0.0, %v193
  %v195 = vpop.f32.mrb[0].mxu0
  %v196 = vadd.f32 0.0, %v195
  %v197 = vpop.f32.mrb[0].mxu0
  %v198 = vpop.f32.mrb[0].mxu0
  %199 = vdwg.mxu0
  %200 = vmatprep.subr.bf16.mxu0 %v151
  %201 = vmatpush1.bf16.msra.mxu0 %v150
  %202 = vmatprep.subr.bf16.mxu0 0
  %203 = vmatpush1.bf16.msra.mxu0 0
  %204 = vmatprep.subr.bf16.mxu0 0
  %205 = vmatpush1.bf16.msra.mxu0 0
  %206 = vmatprep.subr.bf16.mxu0 0
  %207 = vmatpush1.bf16.msra.mxu0 0
  %208 = vmatprep.subr.bf16.mxu0 0
  %209 = vmatpush1.bf16.msra.mxu0 0
  %210 = vmatprep.subr.bf16.mxu0 0
  %211 = vmatpush1.bf16.msra.mxu0 0
  %212 = vmatprep.subr.bf16.mxu0 0
  %213 = vmatpush1.bf16.msra.mxu0 0
  %214 = vmatprep.subr.bf16.mxu0 0
  %215 = vmatpush1.bf16.msra.mxu0 0
  %216 = vmatprep.subr.bf16.mxu0 0
  %217 = vmatpush1.bf16.msra.mxu0 0
  %218 = vmatprep.subr.bf16.mxu0 0
  %219 = vmatpush1.bf16.msra.mxu0 0
  %220 = vmatprep.subr.bf16.mxu0 0
  %221 = vmatpush1.bf16.msra.mxu0 0
  %222 = vmatprep.subr.bf16.mxu0 0
  %223 = vmatpush1.bf16.msra.mxu0 0
  %224 = vmatprep.subr.bf16.mxu0 0
  %225 = vmatpush1.bf16.msra.mxu0 0
  %226 = vmatprep.subr.bf16.mxu0 0
  %227 = vmatpush1.bf16.msra.mxu0 0
  %228 = vmatprep.subr.bf16.mxu0 0
  %229 = vmatpush1.bf16.msra.mxu0 0
  %230 = vmatprep.subr.bf16.mxu0 0
  %231 = vmatpush1.bf16.msra.mxu0 0
  %232 = vmatprep.mubr.bf16.mxu0 0
  %233 = vmatmul.mubr.bf16.gmra.mrb[0].mxu0 %v157
  %v234 = vpop.f32.mrb[0].mxu0
  %v235 = vadd.f32 0.0, %v234
  %v236 = vpop.f32.mrb[0].mxu0
  %v237 = vadd.f32 0.0, %v236
  %v238 = vpop.f32.mrb[0].mxu0
  %v239 = vpop.f32.mrb[0].mxu0
  %240 = vdwg.mxu0
  %s241 = scalar_lea.vmem %s1, 2
  %v242 = vld [vmem:[%s241] sm:$0x1]
  %s243 = scalar_lea.vmem %s0, 64
  %v244 = vld [vmem:[%s243] sm:$0xff]
  %v245 = vld [vmem:[%s243 + $0x8] sm:$0xff]
  %v246 = vld [vmem:[%s243 + $0x10] sm:$0xff]
  %v247 = vld [vmem:[%s243 + $0x18] sm:$0xff]
  %v252 = vunpack.c.l.b16 %v244
  %v253 = vunpack.c.h.b16 %v244
  %v254 = vunpack.c.l.b16 %v245
  %v255 = vunpack.c.h.b16 %v245
  %v256 = vunpack.c.l.b16 %v246
  %v257 = vunpack.c.h.b16 %v246
  %v258 = vunpack.c.l.b16 %v247
  %v259 = vunpack.c.h.b16 %v247
  %v260 = vpack.c.b16 %v256, %v252
  %v261 = vpack.c.b16 %v257, %v253
  %v262 = vpack.c.b16 %v258, %v254
  %v263 = vpack.c.b16 %v259, %v255
  %v269 = vsel %vm43, %v242, 0
  %271 = vmatprep.subr.bf16.mxu0 %v261
  %272 = vmatpush1.bf16.msra.mxu0 %v260
  %273 = vmatprep.subr.bf16.mxu0 0
  %274 = vmatpush1.bf16.msra.mxu0 0
  %275 = vmatprep.subr.bf16.mxu0 0
  %276 = vmatpush1.bf16.msra.mxu0 0
  %277 = vmatprep.subr.bf16.mxu0 0
  %278 = vmatpush1.bf16.msra.mxu0 0
  %279 = vmatprep.subr.bf16.mxu0 0
  %280 = vmatpush1.bf16.msra.mxu0 0
  %281 = vmatprep.subr.bf16.mxu0 0
  %282 = vmatpush1.bf16.msra.mxu0 0
  %283 = vmatprep.subr.bf16.mxu0 0
  %284 = vmatpush1.bf16.msra.mxu0 0
  %285 = vmatprep.subr.bf16.mxu0 0
  %286 = vmatpush1.bf16.msra.mxu0 0
  %287 = vmatprep.subr.bf16.mxu0 0
  %288 = vmatpush1.bf16.msra.mxu0 0
  %289 = vmatprep.subr.bf16.mxu0 0
  %290 = vmatpush1.bf16.msra.mxu0 0
  %291 = vmatprep.subr.bf16.mxu0 0
  %292 = vmatpush1.bf16.msra.mxu0 0
  %293 = vmatprep.subr.bf16.mxu0 0
  %294 = vmatpush1.bf16.msra.mxu0 0
  %295 = vmatprep.subr.bf16.mxu0 0
  %296 = vmatpush1.bf16.msra.mxu0 0
  %297 = vmatprep.subr.bf16.mxu0 0
  %298 = vmatpush1.bf16.msra.mxu0 0
  %299 = vmatprep.subr.bf16.mxu0 0
  %300 = vmatpush1.bf16.msra.mxu0 0
  %301 = vmatprep.subr.bf16.mxu0 0
  %302 = vmatpush1.bf16.msra.mxu0 0
  %303 = vmatprep.mubr.bf16.mxu0 0
  %304 = vmatmul.mubr.bf16.gmra.mrb[0].mxu0 %v269
  %v305 = vpop.f32.mrb[0].mxu0
  %v306 = vadd.f32 0.0, %v305
  %v307 = vpop.f32.mrb[0].mxu0
  %v308 = vadd.f32 0.0, %v307
  %v309 = vpop.f32.mrb[0].mxu0
  %v310 = vpop.f32.mrb[0].mxu0
  %311 = vdwg.mxu0
  %312 = vmatprep.subr.bf16.mxu0 %v263
  %313 = vmatpush1.bf16.msra.mxu0 %v262
  %314 = vmatprep.subr.bf16.mxu0 0
  %315 = vmatpush1.bf16.msra.mxu0 0
  %316 = vmatprep.subr.bf16.mxu0 0
  %317 = vmatpush1.bf16.msra.mxu0 0
  %318 = vmatprep.subr.bf16.mxu0 0
  %319 = vmatpush1.bf16.msra.mxu0 0
  %320 = vmatprep.subr.bf16.mxu0 0
  %321 = vmatpush1.bf16.msra.mxu0 0
  %322 = vmatprep.subr.bf16.mxu0 0
  %323 = vmatpush1.bf16.msra.mxu0 0
  %324 = vmatprep.subr.bf16.mxu0 0
  %325 = vmatpush1.bf16.msra.mxu0 0
  %326 = vmatprep.subr.bf16.mxu0 0
  %327 = vmatpush1.bf16.msra.mxu0 0
  %328 = vmatprep.subr.bf16.mxu0 0
  %329 = vmatpush1.bf16.msra.mxu0 0
  %330 = vmatprep.subr.bf16.mxu0 0
  %331 = vmatpush1.bf16.msra.mxu0 0
  %332 = vmatprep.subr.bf16.mxu0 0
  %333 = vmatpush1.bf16.msra.mxu0 0
  %334 = vmatprep.subr.bf16.mxu0 0
  %335 = vmatpush1.bf16.msra.mxu0 0
  %336 = vmatprep.subr.bf16.mxu0 0
  %337 = vmatpush1.bf16.msra.mxu0 0
  %338 = vmatprep.subr.bf16.mxu0 0
  %339 = vmatpush1.bf16.msra.mxu0 0
  %340 = vmatprep.subr.bf16.mxu0 0
  %341 = vmatpush1.bf16.msra.mxu0 0
  %342 = vmatprep.subr.bf16.mxu0 0
  %343 = vmatpush1.bf16.msra.mxu0 0
  %344 = vmatprep.mubr.bf16.mxu0 0
  %345 = vmatmul.mubr.bf16.gmra.mrb[0].mxu0 %v269
  %v346 = vpop.f32.mrb[0].mxu0
  %v347 = vadd.f32 0.0, %v346
  %v348 = vpop.f32.mrb[0].mxu0
  %v349 = vadd.f32 0.0, %v348
  %v350 = vpop.f32.mrb[0].mxu0
  %v351 = vpop.f32.mrb[0].mxu0
  %352 = vdwg.mxu0
  %s353 = scalar_lea.vmem %s1, 3
  %v354 = vld [vmem:[%s353] sm:$0x1]
  %s355 = scalar_lea.vmem %s0, 96
  %v356 = vld [vmem:[%s355] sm:$0xff]
  %v357 = vld [vmem:[%s355 + $0x8] sm:$0xff]
  %v358 = vld [vmem:[%s355 + $0x10] sm:$0xff]
  %v359 = vld [vmem:[%s355 + $0x18] sm:$0xff]
  %v364 = vunpack.c.l.b16 %v356
  %v365 = vunpack.c.h.b16 %v356
  %v366 = vunpack.c.l.b16 %v357
  %v367 = vunpack.c.h.b16 %v357
  %v368 = vunpack.c.l.b16 %v358
  %v369 = vunpack.c.h.b16 %v358
  %v370 = vunpack.c.l.b16 %v359
  %v371 = vunpack.c.h.b16 %v359
  %v372 = vpack.c.b16 %v368, %v364
  %v373 = vpack.c.b16 %v369, %v365
  %v374 = vpack.c.b16 %v370, %v366
  %v375 = vpack.c.b16 %v371, %v367
  %v381 = vsel %vm43, %v354, 0
  %383 = vmatprep.subr.bf16.mxu0 %v373
  %384 = vmatpush1.bf16.msra.mxu0 %v372
  %385 = vmatprep.subr.bf16.mxu0 0
  %386 = vmatpush1.bf16.msra.mxu0 0
  %387 = vmatprep.subr.bf16.mxu0 0
  %388 = vmatpush1.bf16.msra.mxu0 0
  %389 = vmatprep.subr.bf16.mxu0 0
  %390 = vmatpush1.bf16.msra.mxu0 0
  %391 = vmatprep.subr.bf16.mxu0 0
  %392 = vmatpush1.bf16.msra.mxu0 0
  %393 = vmatprep.subr.bf16.mxu0 0
  %394 = vmatpush1.bf16.msra.mxu0 0
  %395 = vmatprep.subr.bf16.mxu0 0
  %396 = vmatpush1.bf16.msra.mxu0 0
  %397 = vmatprep.subr.bf16.mxu0 0
  %398 = vmatpush1.bf16.msra.mxu0 0
  %399 = vmatprep.subr.bf16.mxu0 0
  %400 = vmatpush1.bf16.msra.mxu0 0
  %401 = vmatprep.subr.bf16.mxu0 0
  %402 = vmatpush1.bf16.msra.mxu0 0
  %403 = vmatprep.subr.bf16.mxu0 0
  %404 = vmatpush1.bf16.msra.mxu0 0
  %405 = vmatprep.subr.bf16.mxu0 0
  %406 = vmatpush1.bf16.msra.mxu0 0
  %407 = vmatprep.subr.bf16.mxu0 0
  %408 = vmatpush1.bf16.msra.mxu0 0
  %409 = vmatprep.subr.bf16.mxu0 0
  %410 = vmatpush1.bf16.msra.mxu0 0
  %411 = vmatprep.subr.bf16.mxu0 0
  %412 = vmatpush1.bf16.msra.mxu0 0
  %413 = vmatprep.subr.bf16.mxu0 0
  %414 = vmatpush1.bf16.msra.mxu0 0
  %415 = vmatprep.mubr.bf16.mxu0 0
  %416 = vmatmul.mubr.bf16.gmra.mrb[0].mxu0 %v381
  %v417 = vpop.f32.mrb[0].mxu0
  %v418 = vadd.f32 0.0, %v417
  %v419 = vpop.f32.mrb[0].mxu0
  %v420 = vadd.f32 0.0, %v419
  %v421 = vpop.f32.mrb[0].mxu0
  %v422 = vpop.f32.mrb[0].mxu0
  %423 = vdwg.mxu0
  %424 = vmatprep.subr.bf16.mxu0 %v375
  %425 = vmatpush1.bf16.msra.mxu0 %v374
  %426 = vmatprep.subr.bf16.mxu0 0
  %427 = vmatpush1.bf16.msra.mxu0 0
  %428 = vmatprep.subr.bf16.mxu0 0
  %429 = vmatpush1.bf16.msra.mxu0 0
  %430 = vmatprep.subr.bf16.mxu0 0
  %431 = vmatpush1.bf16.msra.mxu0 0
  %432 = vmatprep.subr.bf16.mxu0 0
  %433 = vmatpush1.bf16.msra.mxu0 0
  %434 = vmatprep.subr.bf16.mxu0 0
  %435 = vmatpush1.bf16.msra.mxu0 0
  %436 = vmatprep.subr.bf16.mxu0 0
  %437 = vmatpush1.bf16.msra.mxu0 0
  %438 = vmatprep.subr.bf16.mxu0 0
  %439 = vmatpush1.bf16.msra.mxu0 0
  %440 = vmatprep.subr.bf16.mxu0 0
  %441 = vmatpush1.bf16.msra.mxu0 0
  %442 = vmatprep.subr.bf16.mxu0 0
  %443 = vmatpush1.bf16.msra.mxu0 0
  %444 = vmatprep.subr.bf16.mxu0 0
  %445 = vmatpush1.bf16.msra.mxu0 0
  %446 = vmatprep.subr.bf16.mxu0 0
  %447 = vmatpush1.bf16.msra.mxu0 0
  %448 = vmatprep.subr.bf16.mxu0 0
  %449 = vmatpush1.bf16.msra.mxu0 0
  %450 = vmatprep.subr.bf16.mxu0 0
  %451 = vmatpush1.bf16.msra.mxu0 0
  %452 = vmatprep.subr.bf16.mxu0 0
  %453 = vmatpush1.bf16.msra.mxu0 0
  %454 = vmatprep.subr.bf16.mxu0 0
  %455 = vmatpush1.bf16.msra.mxu0 0
  %456 = vmatprep.mubr.bf16.mxu0 0
  %457 = vmatmul.mubr.bf16.gmra.mrb[0].mxu0 %v381
  %v458 = vpop.f32.mrb[0].mxu0
  %v459 = vadd.f32 0.0, %v458
  %v460 = vpop.f32.mrb[0].mxu0
  %v461 = vadd.f32 0.0, %v460
  %v462 = vpop.f32.mrb[0].mxu0
  %v463 = vpop.f32.mrb[0].mxu0
  %464 = vdwg.mxu0
  %vm465 = vcmask 1041408
  %v466 = vsel %vm465, %v82, 0.0
  %v467 = vsel %vm465, %v84, 0.0
  %v468 = vadd.f32 %v466, %v467
  %v469 = vsel %vm465, %v123, 0.0
  %v470 = vadd.f32 %v468, %v469
  %v471 = vsel %vm465, %v125, 0.0
  %v472 = vadd.f32 %v470, %v471
  %v473 = vsel %vm465, %v194, 0.0
  %v474 = vadd.f32 %v472, %v473
  %v475 = vsel %vm465, %v196, 0.0
  %v476 = vadd.f32 %v474, %v475
  %v477 = vsel %vm465, %v235, 0.0
  %v478 = vadd.f32 %v476, %v477
  %v479 = vsel %vm465, %v237, 0.0
  %v480 = vadd.f32 %v478, %v479
  %v481 = vsel %vm465, %v306, 0.0
  %v482 = vadd.f32 %v480, %v481
  %v483 = vsel %vm465, %v308, 0.0
  %v484 = vadd.f32 %v482, %v483
  %v485 = vsel %vm465, %v347, 0.0
  %v486 = vadd.f32 %v484, %v485
  %v487 = vsel %vm465, %v349, 0.0
  %v488 = vadd.f32 %v486, %v487
  %v489 = vsel %vm465, %v418, 0.0
  %v490 = vadd.f32 %v488, %v489
  %v491 = vsel %vm465, %v420, 0.0
  %v492 = vadd.f32 %v490, %v491
  %v493 = vsel %vm465, %v459, 0.0
  %v494 = vadd.f32 %v492, %v493
  %v495 = vsel %vm465, %v461, 0.0
  %v496 = vadd.f32 %v494, %v495
  %497 = vadd.xlane.f32.xlu0 %v496
  %v498 = vpop.xlane.xlu0 %497
  %v499 = vrcp.pop 2048.0
  %v500 = vmul.f32 %v498, %v499
  %v501 = vsub.f32 %v82, %v500
  %v502 = vsub.f32 %v84, %v500
  %v503 = vsub.f32 %v123, %v500
  %v504 = vsub.f32 %v125, %v500
  %v505 = vsub.f32 %v194, %v500
  %v506 = vsub.f32 %v196, %v500
  %v507 = vsub.f32 %v235, %v500
  %v508 = vsub.f32 %v237, %v500
  %v509 = vsub.f32 %v306, %v500
  %v510 = vsub.f32 %v308, %v500
  %v511 = vsub.f32 %v347, %v500
  %v512 = vsub.f32 %v349, %v500
  %v513 = vsub.f32 %v418, %v500
  %v514 = vsub.f32 %v420, %v500
  %v515 = vsub.f32 %v459, %v500
  %v516 = vsub.f32 %v461, %v500
  %v517 = vmul.f32 %v501, %v501
  %v518 = vmul.f32 %v502, %v502
  %v519 = vmul.f32 %v503, %v503
  %v520 = vmul.f32 %v504, %v504
  %v521 = vmul.f32 %v505, %v505
  %v522 = vmul.f32 %v506, %v506
  %v523 = vmul.f32 %v507, %v507
  %v524 = vmul.f32 %v508, %v508
  %v525 = vmul.f32 %v509, %v509
  %v526 = vmul.f32 %v510, %v510
  %v527 = vmul.f32 %v511, %v511
  %v528 = vmul.f32 %v512, %v512
  %v529 = vmul.f32 %v513, %v513
  %v530 = vmul.f32 %v514, %v514
  %v531 = vmul.f32 %v515, %v515
  %v532 = vmul.f32 %v516, %v516
  %v533 = vsel %vm465, %v517, 0.0
  %v534 = vsel %vm465, %v518, 0.0
  %v535 = vadd.f32 %v533, %v534
  %v536 = vsel %vm465, %v519, 0.0
  %v537 = vadd.f32 %v535, %v536
  %v538 = vsel %vm465, %v520, 0.0
  %v539 = vadd.f32 %v537, %v538
  %v540 = vsel %vm465, %v521, 0.0
  %v541 = vadd.f32 %v539, %v540
  %v542 = vsel %vm465, %v522, 0.0
  %v543 = vadd.f32 %v541, %v542
  %v544 = vsel %vm465, %v523, 0.0
  %v545 = vadd.f32 %v543, %v544
  %v546 = vsel %vm465, %v524, 0.0
  %v547 = vadd.f32 %v545, %v546
  %v548 = vsel %vm465, %v525, 0.0
  %v549 = vadd.f32 %v547, %v548
  %v550 = vsel %vm465, %v526, 0.0
  %v551 = vadd.f32 %v549, %v550
  %v552 = vsel %vm465, %v527, 0.0
  %v553 = vadd.f32 %v551, %v552
  %v554 = vsel %vm465, %v528, 0.0
  %v555 = vadd.f32 %v553, %v554
  %v556 = vsel %vm465, %v529, 0.0
  %v557 = vadd.f32 %v555, %v556
  %v558 = vsel %vm465, %v530, 0.0
  %v559 = vadd.f32 %v557, %v558
  %v560 = vsel %vm465, %v531, 0.0
  %v561 = vadd.f32 %v559, %v560
  %v562 = vsel %vm465, %v532, 0.0
  %v563 = vadd.f32 %v561, %v562
  %564 = vadd.xlane.f32.xlu0 %v563
  %v565 = vpop.xlane.xlu0 %564
  %v566 = vmul.f32 %v565, %v499
  %v567 = vld [vmem:[%s2] sm:$0x3]
  %v568 = vadd.f32 %v566, 1e-05
  %v569 = vrsqrt.pop %v568
  %v570 = vmul.f32 %v567, %v569
  %v571 = vld [vmem:[%s3] sm:$0x3]
  %v572 = vmul.f32 %v500, %v570
  %v573 = vsub.f32 %v571, %v572
  %575 = vset.pattern.permute.xlu0 0
  %576 = vperm.xlu0 %575, %v570
  %v577 = vpop.permute.xlu0 %576
  %v579 = vmul.f32 %v82, %v577
  %v580 = vmul.f32 %v84, %v577
  %v581 = vmul.f32 %v123, %v577
  %v582 = vmul.f32 %v125, %v577
  %v583 = vmul.f32 %v194, %v577
  %v584 = vmul.f32 %v196, %v577
  %v585 = vmul.f32 %v235, %v577
  %v586 = vmul.f32 %v237, %v577
  %v587 = vmul.f32 %v306, %v577
  %v588 = vmul.f32 %v308, %v577
  %v589 = vmul.f32 %v347, %v577
  %v590 = vmul.f32 %v349, %v577
  %v591 = vmul.f32 %v418, %v577
  %v592 = vmul.f32 %v420, %v577
  %v593 = vmul.f32 %v459, %v577
  %v594 = vmul.f32 %v461, %v577
  %596 = vset.pattern.permute.xlu0 0
  %597 = vperm.xlu0 %596, %v573
  %v598 = vpop.permute.xlu0 %597
  %v600 = vadd.f32 %v579, %v598
  %v601 = vadd.f32 %v580, %v598
  %v602 = vadd.f32 %v581, %v598
  %v603 = vadd.f32 %v582, %v598
  %v604 = vadd.f32 %v583, %v598
  %v605 = vadd.f32 %v584, %v598
  %v606 = vadd.f32 %v585, %v598
  %v607 = vadd.f32 %v586, %v598
  %v608 = vadd.f32 %v587, %v598
  %v609 = vadd.f32 %v588, %v598
  %v610 = vadd.f32 %v589, %v598
  %v611 = vadd.f32 %v590, %v598
  %v612 = vadd.f32 %v591, %v598
  %v613 = vadd.f32 %v592, %v598
  %v614 = vadd.f32 %v593, %v598
  %v615 = vadd.f32 %v594, %v598
  %v616 = vmax.f32 %v600, 0.0
  %v617 = vmax.f32 %v601, 0.0
  %v618 = vmax.f32 %v602, 0.0
  %v619 = vmax.f32 %v603, 0.0
  %v620 = vmax.f32 %v604, 0.0
  %v621 = vmax.f32 %v605, 0.0
  %v622 = vmax.f32 %v606, 0.0
  %v623 = vmax.f32 %v607, 0.0
  %v624 = vmax.f32 %v608, 0.0
  %v625 = vmax.f32 %v609, 0.0
  %v626 = vmax.f32 %v610, 0.0
  %v627 = vmax.f32 %v611, 0.0
  %v628 = vmax.f32 %v612, 0.0
  %v629 = vmax.f32 %v613, 0.0
  %v630 = vmax.f32 %v614, 0.0
  %v631 = vmax.f32 %v615, 0.0
  %v648 = vcombine.low %v616, %v617
  %v649 = vcombine.low %v618, %v619
  %v651 = vunpack.c.l.s4 1983009808
  %v652 = vunpack.c.0.s8 %v651
  %v653 = vlaneseq
  %v654 = vshrl.u32 %v653, 7
  %v655 = vsub.s32 %v652, %v654
  %v656 = vrot.slane %v648, %v655
  %v658 = vunpack.c.l.s4 1983009808
  %v659 = vunpack.c.0.s8 %v658
  %v660 = vlaneseq
  %v661 = vshrl.u32 %v660, 7
  %v662 = vsub.s32 %v659, %v661
  %v663 = vrot.slane %v649, %v662
  %v664 = vcombine.low %v656, %v663
  %v665 = vcombine.low %v620, %v621
  %v666 = vcombine.low %v622, %v623
  %v668 = vunpack.c.l.s4 1983009808
  %v669 = vunpack.c.0.s8 %v668
  %v670 = vlaneseq
  %v671 = vshrl.u32 %v670, 7
  %v672 = vsub.s32 %v669, %v671
  %v673 = vrot.slane %v665, %v672
  %v675 = vunpack.c.l.s4 1983009808
  %v676 = vunpack.c.0.s8 %v675
  %v677 = vlaneseq
  %v678 = vshrl.u32 %v677, 7
  %v679 = vsub.s32 %v676, %v678
  %v680 = vrot.slane %v666, %v679
  %v681 = vcombine.low %v673, %v680
  %v682 = vcombine.low %v624, %v625
  %v683 = vcombine.low %v626, %v627
  %v685 = vunpack.c.l.s4 1983009808
  %v686 = vunpack.c.0.s8 %v685
  %v687 = vlaneseq
  %v688 = vshrl.u32 %v687, 7
  %v689 = vsub.s32 %v686, %v688
  %v690 = vrot.slane %v682, %v689
  %v692 = vunpack.c.l.s4 1983009808
  %v693 = vunpack.c.0.s8 %v692
  %v694 = vlaneseq
  %v695 = vshrl.u32 %v694, 7
  %v696 = vsub.s32 %v693, %v695
  %v697 = vrot.slane %v683, %v696
  %v698 = vcombine.low %v690, %v697
  %v699 = vcombine.low %v628, %v629
  %v700 = vcombine.low %v630, %v631
  %v702 = vunpack.c.l.s4 1983009808
  %v703 = vunpack.c.0.s8 %v702
  %v704 = vlaneseq
  %v705 = vshrl.u32 %v704, 7
  %v706 = vsub.s32 %v703, %v705
  %v707 = vrot.slane %v699, %v706
  %v709 = vunpack.c.l.s4 1983009808
  %v710 = vunpack.c.0.s8 %v709
  %v711 = vlaneseq
  %v712 = vshrl.u32 %v711, 7
  %v713 = vsub.s32 %v710, %v712
  %v714 = vrot.slane %v700, %v713
  %v715 = vcombine.low %v707, %v714
  %720 = vst [vmem:[%s4] sm:$0xff] %v664
  %721 = vst [vmem:[%s4 + $0x8] sm:$0xff] %v681
  %722 = vst [vmem:[%s4 + $0x10] sm:$0xff] %v698
  %723 = vst [vmem:[%s4 + $0x18] sm:$0xff] %v715
  // Predicated region
  $region18: #{_lambda_.8} parent=0 // pred_check
    _
  $region19: #{_lambda_.8} parent=0 // pred_check_branch
    %725 = sbr.rel (0) target = $region21
  $region20: #{_lambda_.8} parent=0 // pred_region
    _
  $region21: #{_lambda_.8} parent=0 // pred_fallthru
    _
  // Predicated region
  $region22: #{_lambda_.8} parent=0 // pred_check
    _
  $region23: #{_lambda_.8} parent=0 // pred_check_branch
    %727 = sbr.rel (0) target = $region25
  $region24: #{_lambda_.8} parent=0 // pred_region
    _
  $region25: #{_lambda_.8} parent=0 // pred_fallthru
    _

// kernel: _lambda_.9
$region0: #{_lambda_.9}
  #allocation0 [shape = 'u32[]', space=smem, size = 0x4, offset = 0x4, fixed_abs, tag = 'smem constant byte address 0x4 - core index']
  #allocation1 [shape = 'u32[144,128]{1,0:T(1,128)}', space=vmem, size = 0x12000, scoped, tag = 'internal scratch']
  %s0 = inlined_call_operand.vmem [shape: bf16[4,8,2048], index: 0, kind: input, shape index: {}]
  %s1 = inlined_call_operand.vmem [shape: bf16[4,3,8], index: 1, kind: input, shape index: {}]
  %s2 = inlined_call_operand.vmem [shape: f32[3,8192], index: 2, kind: output, shape index: {}]
  %s3 = sld [smem:[#allocation0]]
  $region18: #{_lambda_.9} parent=0
    _
  %s5 = ssub.s32 1, %s3
  %s6 = scalar_select 0, %s5, %s3
  // Predicated region
  $region2: #{_lambda_.9} parent=0 // pred_check
    _
  $region3: #{_lambda_.9} parent=0 // pred_check_branch
    %8 = sbr.rel (0) target = $region5
  $region4: #{_lambda_.9} parent=0 // pred_region
    _
  $region5: #{_lambda_.9} parent=0 // pred_fallthru
    _
  // Predicated region
  $region6: #{_lambda_.9} parent=0 // pred_check
    _
  $region7: #{_lambda_.9} parent=0 // pred_check_branch
    %10 = sbr.rel (0) target = $region9
  $region8: #{_lambda_.9} parent=0 // pred_region
    _
  $region9: #{_lambda_.9} parent=0 // pred_fallthru
    _
  %v12 = vld [vmem:[%s1] sm:$0x3]
  %v13 = vld [vmem:[%s0] sm:$0xff]
  %v14 = vld [vmem:[%s0 + $0x8] sm:$0xff]
  %v15 = vld [vmem:[%s0 + $0x10] sm:$0xff]
  %v16 = vld [vmem:[%s0 + $0x18] sm:$0xff]
  %v17 = vld [vmem:[%s0 + $0x20] sm:$0xff]
  %v18 = vld [vmem:[%s0 + $0x28] sm:$0xff]
  %v19 = vld [vmem:[%s0 + $0x30] sm:$0xff]
  %v20 = vld [vmem:[%s0 + $0x38] sm:$0xff]
  %v29 = vunpack.c.l.b16 %v13
  %v30 = vunpack.c.h.b16 %v13
  %v31 = vunpack.c.l.b16 %v14
  %v32 = vunpack.c.h.b16 %v14
  %v33 = vunpack.c.l.b16 %v15
  %v34 = vunpack.c.h.b16 %v15
  %v35 = vunpack.c.l.b16 %v16
  %v36 = vunpack.c.h.b16 %v16
  %v37 = vunpack.c.l.b16 %v17
  %v38 = vunpack.c.h.b16 %v17
  %v39 = vunpack.c.l.b16 %v18
  %v40 = vunpack.c.h.b16 %v18
  %v41 = vunpack.c.l.b16 %v19
  %v42 = vunpack.c.h.b16 %v19
  %v43 = vunpack.c.l.b16 %v20
  %v44 = vunpack.c.h.b16 %v20
  %v45 = vpack.c.b16 %v29, %v29
  %v46 = vpack.c.b16 %v30, %v30
  %v47 = vpack.c.b16 %v31, %v31
  %v48 = vpack.c.b16 %v32, %v32
  %v49 = vpack.c.b16 %v33, %v33
  %v50 = vpack.c.b16 %v34, %v34
  %v51 = vpack.c.b16 %v35, %v35
  %v52 = vpack.c.b16 %v36, %v36
  %v53 = vpack.c.b16 %v37, %v37
  %v54 = vpack.c.b16 %v38, %v38
  %v55 = vpack.c.b16 %v39, %v39
  %v56 = vpack.c.b16 %v40, %v40
  %v57 = vpack.c.b16 %v41, %v41
  %v58 = vpack.c.b16 %v42, %v42
  %v59 = vpack.c.b16 %v43, %v43
  %v60 = vpack.c.b16 %v44, %v44
  %vm61 = vcmask 64512
  %v63 = vsel %vm61, %v12, 0
  %vm65 = vcmask 1043456
  %v67 = vsel %vm65, %v45, 0
  %v70 = vsel %vm65, %v46, 0
  %v73 = vsel %vm65, %v47, 0
  %v76 = vsel %vm65, %v48, 0
  %v79 = vsel %vm65, %v49, 0
  %v82 = vsel %vm65, %v50, 0
  %v85 = vsel %vm65, %v51, 0
  %v88 = vsel %vm65, %v52, 0
  %v91 = vsel %vm65, %v53, 0
  %v94 = vsel %vm65, %v54, 0
  %v97 = vsel %vm65, %v55, 0
  %v100 = vsel %vm65, %v56, 0
  %v103 = vsel %vm65, %v57, 0
  %v106 = vsel %vm65, %v58, 0
  %v109 = vsel %vm65, %v59, 0
  %v112 = vsel %vm65, %v60, 0
  %114 = vmatprep.subr.bf16.mxu0 %v70
  %115 = vmatpush1.bf16.msra.mxu0 %v67
  %116 = vmatprep.subr.bf16.mxu0 0
  %117 = vmatpush1.bf16.msra.mxu0 0
  %118 = vmatprep.subr.bf16.mxu0 0
  %119 = vmatpush1.bf16.msra.mxu0 0
  %120 = vmatprep.subr.bf16.mxu0 0
  %121 = vmatpush1.bf16.msra.mxu0 0
  %122 = vmatprep.subr.bf16.mxu0 0
  %123 = vmatpush1.bf16.msra.mxu0 0
  %124 = vmatprep.subr.bf16.mxu0 0
  %125 = vmatpush1.bf16.msra.mxu0 0
  %126 = vmatprep.subr.bf16.mxu0 0
  %127 = vmatpush1.bf16.msra.mxu0 0
  %128 = vmatprep.subr.bf16.mxu0 0
  %129 = vmatpush1.bf16.msra.mxu0 0
  %130 = vmatprep.subr.bf16.mxu0 0
  %131 = vmatpush1.bf16.msra.mxu0 0
  %132 = vmatprep.subr.bf16.mxu0 0
  %133 = vmatpush1.bf16.msra.mxu0 0
  %134 = vmatprep.subr.bf16.mxu0 0
  %135 = vmatpush1.bf16.msra.mxu0 0
  %136 = vmatprep.subr.bf16.mxu0 0
  %137 = vmatpush1.bf16.msra.mxu0 0
  %138 = vmatprep.subr.bf16.mxu0 0
  %139 = vmatpush1.bf16.msra.mxu0 0
  %140 = vmatprep.subr.bf16.mxu0 0
  %141 = vmatpush1.bf16.msra.mxu0 0
  %142 = vmatprep.subr.bf16.mxu0 0
  %143 = vmatpush1.bf16.msra.mxu0 0
  %144 = vmatprep.subr.bf16.mxu0 0
  %145 = vmatpush1.bf16.msra.mxu0 0
  %146 = vmatprep.mubr.bf16.mxu0 0
  %147 = vmatmul.mubr.bf16.gmra.mrb[0].mxu0 %v63
  %v148 = vpop.f32.mrb[0].mxu0
  %v149 = vadd.f32 0.0, %v148
  %v150 = vpop.f32.mrb[0].mxu0
  %v151 = vadd.f32 0.0, %v150
  %v152 = vpop.f32.mrb[0].mxu0
  %v153 = vpop.f32.mrb[0].mxu0
  %154 = vdwg.mxu0
  %155 = vmatprep.subr.bf16.mxu0 %v76
  %156 = vmatpush1.bf16.msra.mxu0 %v73
  %157 = vmatprep.subr.bf16.mxu0 0
  %158 = vmatpush1.bf16.msra.mxu0 0
  %159 = vmatprep.subr.bf16.mxu0 0
  %160 = vmatpush1.bf16.msra.mxu0 0
  %161 = vmatprep.subr.bf16.mxu0 0
  %162 = vmatpush1.bf16.msra.mxu0 0
  %163 = vmatprep.subr.bf16.mxu0 0
  %164 = vmatpush1.bf16.msra.mxu0 0
  %165 = vmatprep.subr.bf16.mxu0 0
  %166 = vmatpush1.bf16.msra.mxu0 0
  %167 = vmatprep.subr.bf16.mxu0 0
  %168 = vmatpush1.bf16.msra.mxu0 0
  %169 = vmatprep.subr.bf16.mxu0 0
  %170 = vmatpush1.bf16.msra.mxu0 0
  %171 = vmatprep.subr.bf16.mxu0 0
  %172 = vmatpush1.bf16.msra.mxu0 0
  %173 = vmatprep.subr.bf16.mxu0 0
  %174 = vmatpush1.bf16.msra.mxu0 0
  %175 = vmatprep.subr.bf16.mxu0 0
  %176 = vmatpush1.bf16.msra.mxu0 0
  %177 = vmatprep.subr.bf16.mxu0 0
  %178 = vmatpush1.bf16.msra.mxu0 0
  %179 = vmatprep.subr.bf16.mxu0 0
  %180 = vmatpush1.bf16.msra.mxu0 0
  %181 = vmatprep.subr.bf16.mxu0 0
  %182 = vmatpush1.bf16.msra.mxu0 0
  %183 = vmatprep.subr.bf16.mxu0 0
  %184 = vmatpush1.bf16.msra.mxu0 0
  %185 = vmatprep.subr.bf16.mxu0 0
  %186 = vmatpush1.bf16.msra.mxu0 0
  %187 = vmatprep.mubr.bf16.mxu0 0
  %188 = vmatmul.mubr.bf16.gmra.mrb[0].mxu0 %v63
  %v189 = vpop.f32.mrb[0].mxu0
  %v190 = vadd.f32 0.0, %v189
  %v191 = vpop.f32.mrb[0].mxu0
  %v192 = vadd.f32 0.0, %v191
  %v193 = vpop.f32.mrb[0].mxu0
  %v194 = vpop.f32.mrb[0].mxu0
  %195 = vdwg.mxu0
  %196 = vmatprep.subr.bf16.mxu0 %v82
  %197 = vmatpush1.bf16.msra.mxu0 %v79
  %198 = vmatprep.subr.bf16.mxu0 0
  %199 = vmatpush1.bf16.msra.mxu0 0
  %200 = vmatprep.subr.bf16.mxu0 0
  %201 = vmatpush1.bf16.msra.mxu0 0
  %202 = vmatprep.subr.bf16.mxu0 0
  %203 = vmatpush1.bf16.msra.mxu0 0
  %204 = vmatprep.subr.bf16.mxu0 0
  %205 = vmatpush1.bf16.msra.mxu0 0
  %206 = vmatprep.subr.bf16.mxu0 0
  %207 = vmatpush1.bf16.msra.mxu0 0
  %208 = vmatprep.subr.bf16.mxu0 0
  %209 = vmatpush1.bf16.msra.mxu0 0
  %210 = vmatprep.subr.bf16.mxu0 0
  %211 = vmatpush1.bf16.msra.mxu0 0
  %212 = vmatprep.subr.bf16.mxu0 0
  %213 = vmatpush1.bf16.msra.mxu0 0
  %214 = vmatprep.subr.bf16.mxu0 0
  %215 = vmatpush1.bf16.msra.mxu0 0
  %216 = vmatprep.subr.bf16.mxu0 0
  %217 = vmatpush1.bf16.msra.mxu0 0
  %218 = vmatprep.subr.bf16.mxu0 0
  %219 = vmatpush1.bf16.msra.mxu0 0
  %220 = vmatprep.subr.bf16.mxu0 0
  %221 = vmatpush1.bf16.msra.mxu0 0
  %222 = vmatprep.subr.bf16.mxu0 0
  %223 = vmatpush1.bf16.msra.mxu0 0
  %224 = vmatprep.subr.bf16.mxu0 0
  %225 = vmatpush1.bf16.msra.mxu0 0
  %226 = vmatprep.subr.bf16.mxu0 0
  %227 = vmatpush1.bf16.msra.mxu0 0
  %228 = vmatprep.mubr.bf16.mxu0 0
  %229 = vmatmul.mubr.bf16.gmra.mrb[0].mxu0 %v63
  %v230 = vpop.f32.mrb[0].mxu0
  %v231 = vadd.f32 0.0, %v230
  %v232 = vpop.f32.mrb[0].mxu0
  %v233 = vadd.f32 0.0, %v232
  %v234 = vpop.f32.mrb[0].mxu0
  %v235 = vpop.f32.mrb[0].mxu0
  %236 = vdwg.mxu0
  %237 = vmatprep.subr.bf16.mxu0 %v88
  %238 = vmatpush1.bf16.msra.mxu0 %v85
  %239 = vmatprep.subr.bf16.mxu0 0
  %240 = vmatpush1.bf16.msra.mxu0 0
  %241 = vmatprep.subr.bf16.mxu0 0
  %242 = vmatpush1.bf16.msra.mxu0 0
  %243 = vmatprep.subr.bf16.mxu0 0
  %244 = vmatpush1.bf16.msra.mxu0 0
  %245 = vmatprep.subr.bf16.mxu0 0
  %246 = vmatpush1.bf16.msra.mxu0 0
  %247 = vmatprep.subr.bf16.mxu0 0
  %248 = vmatpush1.bf16.msra.mxu0 0
  %249 = vmatprep.subr.bf16.mxu0 0
  %250 = vmatpush1.bf16.msra.mxu0 0
  %251 = vmatprep.subr.bf16.mxu0 0
  %252 = vmatpush1.bf16.msra.mxu0 0
  %253 = vmatprep.subr.bf16.mxu0 0
  %254 = vmatpush1.bf16.msra.mxu0 0
  %255 = vmatprep.subr.bf16.mxu0 0
  %256 = vmatpush1.bf16.msra.mxu0 0
  %257 = vmatprep.subr.bf16.mxu0 0
  %258 = vmatpush1.bf16.msra.mxu0 0
  %259 = vmatprep.subr.bf16.mxu0 0
  %260 = vmatpush1.bf16.msra.mxu0 0
  %261 = vmatprep.subr.bf16.mxu0 0
  %262 = vmatpush1.bf16.msra.mxu0 0
  %263 = vmatprep.subr.bf16.mxu0 0
  %264 = vmatpush1.bf16.msra.mxu0 0
  %265 = vmatprep.subr.bf16.mxu0 0
  %266 = vmatpush1.bf16.msra.mxu0 0
  %267 = vmatprep.subr.bf16.mxu0 0
  %268 = vmatpush1.bf16.msra.mxu0 0
  %269 = vmatprep.mubr.bf16.mxu0 0
  %270 = vmatmul.mubr.bf16.gmra.mrb[0].mxu0 %v63
  %v271 = vpop.f32.mrb[0].mxu0
  %v272 = vadd.f32 0.0, %v271
  %v273 = vpop.f32.mrb[0].mxu0
  %v274 = vadd.f32 0.0, %v273
  %v275 = vpop.f32.mrb[0].mxu0
  %v276 = vpop.f32.mrb[0].mxu0
  %277 = vdwg.mxu0
  %278 = vmatprep.subr.bf16.mxu0 %v94
  %279 = vmatpush1.bf16.msra.mxu0 %v91
  %280 = vmatprep.subr.bf16.mxu0 0
  %281 = vmatpush1.bf16.msra.mxu0 0
  %282 = vmatprep.subr.bf16.mxu0 0
  %283 = vmatpush1.bf16.msra.mxu0 0
  %284 = vmatprep.subr.bf16.mxu0 0
  %285 = vmatpush1.bf16.msra.mxu0 0
  %286 = vmatprep.subr.bf16.mxu0 0
  %287 = vmatpush1.bf16.msra.mxu0 0
  %288 = vmatprep.subr.bf16.mxu0 0
  %289 = vmatpush1.bf16.msra.mxu0 0
  %290 = vmatprep.subr.bf16.mxu0 0
  %291 = vmatpush1.bf16.msra.mxu0 0
  %292 = vmatprep.subr.bf16.mxu0 0
  %293 = vmatpush1.bf16.msra.mxu0 0
  %294 = vmatprep.subr.bf16.mxu0 0
  %295 = vmatpush1.bf16.msra.mxu0 0
  %296 = vmatprep.subr.bf16.mxu0 0
  %297 = vmatpush1.bf16.msra.mxu0 0
  %298 = vmatprep.subr.bf16.mxu0 0
  %299 = vmatpush1.bf16.msra.mxu0 0
  %300 = vmatprep.subr.bf16.mxu0 0
  %301 = vmatpush1.bf16.msra.mxu0 0
  %302 = vmatprep.subr.bf16.mxu0 0
  %303 = vmatpush1.bf16.msra.mxu0 0
  %304 = vmatprep.subr.bf16.mxu0 0
  %305 = vmatpush1.bf16.msra.mxu0 0
  %306 = vmatprep.subr.bf16.mxu0 0
  %307 = vmatpush1.bf16.msra.mxu0 0
  %308 = vmatprep.subr.bf16.mxu0 0
  %309 = vmatpush1.bf16.msra.mxu0 0
  %310 = vmatprep.mubr.bf16.mxu0 0
  %311 = vmatmul.mubr.bf16.gmra.mrb[0].mxu0 %v63
  %v312 = vpop.f32.mrb[0].mxu0
  %v313 = vadd.f32 0.0, %v312
  %v314 = vpop.f32.mrb[0].mxu0
  %v315 = vadd.f32 0.0, %v314
  %v316 = vpop.f32.mrb[0].mxu0
  %v317 = vpop.f32.mrb[0].mxu0
  %318 = vdwg.mxu0
  %319 = vmatprep.subr.bf16.mxu0 %v100
  %320 = vmatpush1.bf16.msra.mxu0 %v97
  %321 = vmatprep.subr.bf16.mxu0 0
  %322 = vmatpush1.bf16.msra.mxu0 0
  %323 = vmatprep.subr.bf16.mxu0 0
  %324 = vmatpush1.bf16.msra.mxu0 0
  %325 = vmatprep.subr.bf16.mxu0 0
  %326 = vmatpush1.bf16.msra.mxu0 0
  %327 = vmatprep.subr.bf16.mxu0 0
  %328 = vmatpush1.bf16.msra.mxu0 0
  %329 = vmatprep.subr.bf16.mxu0 0
  %330 = vmatpush1.bf16.msra.mxu0 0
  %331 = vmatprep.subr.bf16.mxu0 0
  %332 = vmatpush1.bf16.msra.mxu0 0
  %333 = vmatprep.subr.bf16.mxu0 0
  %334 = vmatpush1.bf16.msra.mxu0 0
  %335 = vmatprep.subr.bf16.mxu0 0
  %336 = vmatpush1.bf16.msra.mxu0 0
  %337 = vmatprep.subr.bf16.mxu0 0
  %338 = vmatpush1.bf16.msra.mxu0 0
  %339 = vmatprep.subr.bf16.mxu0 0
  %340 = vmatpush1.bf16.msra.mxu0 0
  %341 = vmatprep.subr.bf16.mxu0 0
  %342 = vmatpush1.bf16.msra.mxu0 0
  %343 = vmatprep.subr.bf16.mxu0 0
  %344 = vmatpush1.bf16.msra.mxu0 0
  %345 = vmatprep.subr.bf16.mxu0 0
  %346 = vmatpush1.bf16.msra.mxu0 0
  %347 = vmatprep.subr.bf16.mxu0 0
  %348 = vmatpush1.bf16.msra.mxu0 0
  %349 = vmatprep.subr.bf16.mxu0 0
  %350 = vmatpush1.bf16.msra.mxu0 0
  %351 = vmatprep.mubr.bf16.mxu0 0
  %352 = vmatmul.mubr.bf16.gmra.mrb[0].mxu0 %v63
  %v353 = vpop.f32.mrb[0].mxu0
  %v354 = vadd.f32 0.0, %v353
  %v355 = vpop.f32.mrb[0].mxu0
  %v356 = vadd.f32 0.0, %v355
  %v357 = vpop.f32.mrb[0].mxu0
  %v358 = vpop.f32.mrb[0].mxu0
  %359 = vdwg.mxu0
  %360 = vmatprep.subr.bf16.mxu0 %v106
  %361 = vmatpush1.bf16.msra.mxu0 %v103
  %362 = vmatprep.subr.bf16.mxu0 0
  %363 = vmatpush1.bf16.msra.mxu0 0
  %364 = vmatprep.subr.bf16.mxu0 0
  %365 = vmatpush1.bf16.msra.mxu0 0
  %366 = vmatprep.subr.bf16.mxu0 0
  %367 = vmatpush1.bf16.msra.mxu0 0
  %368 = vmatprep.subr.bf16.mxu0 0
  %369 = vmatpush1.bf16.msra.mxu0 0
  %370 = vmatprep.subr.bf16.mxu0 0
  %371 = vmatpush1.bf16.msra.mxu0 0
  %372 = vmatprep.subr.bf16.mxu0 0
  %373 = vmatpush1.bf16.msra.mxu0 0
  %374 = vmatprep.subr.bf16.mxu0 0
  %375 = vmatpush1.bf16.msra.mxu0 0
  %376 = vmatprep.subr.bf16.mxu0 0
  %377 = vmatpush1.bf16.msra.mxu0 0
  %378 = vmatprep.subr.bf16.mxu0 0
  %379 = vmatpush1.bf16.msra.mxu0 0
  %380 = vmatprep.subr.bf16.mxu0 0
  %381 = vmatpush1.bf16.msra.mxu0 0
  %382 = vmatprep.subr.bf16.mxu0 0
  %383 = vmatpush1.bf16.msra.mxu0 0
  %384 = vmatprep.subr.bf16.mxu0 0
  %385 = vmatpush1.bf16.msra.mxu0 0
  %386 = vmatprep.subr.bf16.mxu0 0
  %387 = vmatpush1.bf16.msra.mxu0 0
  %388 = vmatprep.subr.bf16.mxu0 0
  %389 = vmatpush1.bf16.msra.mxu0 0
  %390 = vmatprep.subr.bf16.mxu0 0
  %391 = vmatpush1.bf16.msra.mxu0 0
  %392 = vmatprep.mubr.bf16.mxu0 0
  %393 = vmatmul.mubr.bf16.gmra.mrb[0].mxu0 %v63
  %v394 = vpop.f32.mrb[0].mxu0
  %v395 = vadd.f32 0.0, %v394
  %v396 = vpop.f32.mrb[0].mxu0
  %v397 = vadd.f32 0.0, %v396
  %v398 = vpop.f32.mrb[0].mxu0
  %v399 = vpop.f32.mrb[0].mxu0
  %400 = vdwg.mxu0
  %401 = vmatprep.subr.bf16.mxu0 %v112
  %402 = vmatpush1.bf16.msra.mxu0 %v109
  %403 = vmatprep.subr.bf16.mxu0 0
  %404 = vmatpush1.bf16.msra.mxu0 0
  %405 = vmatprep.subr.bf16.mxu0 0
  %406 = vmatpush1.bf16.msra.mxu0 0
  %407 = vmatprep.subr.bf16.mxu0 0
  %408 = vmatpush1.bf16.msra.mxu0 0
  %409 = vmatprep.subr.bf16.mxu0 0
  %410 = vmatpush1.bf16.msra.mxu0 0
  %411 = vmatprep.subr.bf16.mxu0 0
  %412 = vmatpush1.bf16.msra.mxu0 0
  %413 = vmatprep.subr.bf16.mxu0 0
  %414 = vmatpush1.bf16.msra.mxu0 0
  %415 = vmatprep.subr.bf16.mxu0 0
  %416 = vmatpush1.bf16.msra.mxu0 0
  %417 = vmatprep.subr.bf16.mxu0 0
  %418 = vmatpush1.bf16.msra.mxu0 0
  %419 = vmatprep.subr.bf16.mxu0 0
  %420 = vmatpush1.bf16.msra.mxu0 0
  %421 = vmatprep.subr.bf16.mxu0 0
  %422 = vmatpush1.bf16.msra.mxu0 0
  %423 = vmatprep.subr.bf16.mxu0 0
  %424 = vmatpush1.bf16.msra.mxu0 0
  %425 = vmatprep.subr.bf16.mxu0 0
  %426 = vmatpush1.bf16.msra.mxu0 0
  %427 = vmatprep.subr.bf16.mxu0 0
  %428 = vmatpush1.bf16.msra.mxu0 0
  %429 = vmatprep.subr.bf16.mxu0 0
  %430 = vmatpush1.bf16.msra.mxu0 0
  %431 = vmatprep.subr.bf16.mxu0 0
  %432 = vmatpush1.bf16.msra.mxu0 0
  %433 = vmatprep.mubr.bf16.mxu0 0
  %434 = vmatmul.mubr.bf16.gmra.mrb[0].mxu0 %v63
  %v435 = vpop.f32.mrb[0].mxu0
  %v436 = vadd.f32 0.0, %v435
  %v437 = vpop.f32.mrb[0].mxu0
  %v438 = vadd.f32 0.0, %v437
  %v439 = vpop.f32.mrb[0].mxu0
  %v440 = vpop.f32.mrb[0].mxu0
  %441 = vdwg.mxu0
  %v442 = vtanh.pop %v149
  %v443 = vtanh.pop %v151
  %v444 = vtanh.pop %v190
  %v445 = vtanh.pop %v192
  %v446 = vtanh.pop %v231
  %v447 = vtanh.pop %v233
  %v448 = vtanh.pop %v272
  %v449 = vtanh.pop %v274
  %v450 = vtanh.pop %v313
  %v451 = vtanh.pop %v315
  %v452 = vtanh.pop %v354
  %v453 = vtanh.pop %v356
  %v454 = vtanh.pop %v395
  %v455 = vtanh.pop %v397
  %v456 = vtanh.pop %v436
  %v457 = vtanh.pop %v438
  %s458 = scalar_lea.vmem %s1, 2
  %v459 = vld [vmem:[%s458] sm:$0x3]
  %s460 = scalar_lea.vmem %s0, 64
  %v461 = vld [vmem:[%s460] sm:$0xff]
  %v462 = vld [vmem:[%s460 + $0x8] sm:$0xff]
  %v463 = vld [vmem:[%s460 + $0x10] sm:$0xff]
  %v464 = vld [vmem:[%s460 + $0x18] sm:$0xff]
  %v465 = vld [vmem:[%s460 + $0x20] sm:$0xff]
  %v466 = vld [vmem:[%s460 + $0x28] sm:$0xff]
  %v467 = vld [vmem:[%s460 + $0x30] sm:$0xff]
  %v468 = vld [vmem:[%s460 + $0x38] sm:$0xff]
  %v477 = vunpack.c.l.b16 %v461
  %v478 = vunpack.c.h.b16 %v461
  %v479 = vunpack.c.l.b16 %v462
  %v480 = vunpack.c.h.b16 %v462
  %v481 = vunpack.c.l.b16 %v463
  %v482 = vunpack.c.h.b16 %v463
  %v483 = vunpack.c.l.b16 %v464
  %v484 = vunpack.c.h.b16 %v464
  %v485 = vunpack.c.l.b16 %v465
  %v486 = vunpack.c.h.b16 %v465
  %v487 = vunpack.c.l.b16 %v466
  %v488 = vunpack.c.h.b16 %v466
  %v489 = vunpack.c.l.b16 %v467
  %v490 = vunpack.c.h.b16 %v467
  %v491 = vunpack.c.l.b16 %v468
  %v492 = vunpack.c.h.b16 %v468
  %v493 = vpack.c.b16 %v477, %v477
  %v494 = vpack.c.b16 %v478, %v478
  %v495 = vpack.c.b16 %v479, %v479
  %v496 = vpack.c.b16 %v480, %v480
  %v497 = vpack.c.b16 %v481, %v481
  %v498 = vpack.c.b16 %v482, %v482
  %v499 = vpack.c.b16 %v483, %v483
  %v500 = vpack.c.b16 %v484, %v484
  %v501 = vpack.c.b16 %v485, %v485
  %v502 = vpack.c.b16 %v486, %v486
  %v503 = vpack.c.b16 %v487, %v487
  %v504 = vpack.c.b16 %v488, %v488
  %v505 = vpack.c.b16 %v489, %v489
  %v506 = vpack.c.b16 %v490, %v490
  %v507 = vpack.c.b16 %v491, %v491
  %v508 = vpack.c.b16 %v492, %v492
  %v510 = vsel %vm61, %v459, 0
  %v513 = vsel %vm65, %v493, 0
  %v516 = vsel %vm65, %v494, 0
  %v519 = vsel %vm65, %v495, 0
  %v522 = vsel %vm65, %v496, 0
  %v525 = vsel %vm65, %v497, 0
  %v528 = vsel %vm65, %v498, 0
  %v531 = vsel %vm65, %v499, 0
  %v534 = vsel %vm65, %v500, 0
  %v537 = vsel %vm65, %v501, 0
  %v540 = vsel %vm65, %v502, 0
  %v543 = vsel %vm65, %v503, 0
  %v546 = vsel %vm65, %v504, 0
  %v549 = vsel %vm65, %v505, 0
  %v552 = vsel %vm65, %v506, 0
  %v555 = vsel %vm65, %v507, 0
  %v558 = vsel %vm65, %v508, 0
  %560 = vmatprep.subr.bf16.mxu0 %v516
  %561 = vmatpush1.bf16.msra.mxu0 %v513
  %562 = vmatprep.subr.bf16.mxu0 0
  %563 = vmatpush1.bf16.msra.mxu0 0
  %564 = vmatprep.subr.bf16.mxu0 0
  %565 = vmatpush1.bf16.msra.mxu0 0
  %566 = vmatprep.subr.bf16.mxu0 0
  %567 = vmatpush1.bf16.msra.mxu0 0
  %568 = vmatprep.subr.bf16.mxu0 0
  %569 = vmatpush1.bf16.msra.mxu0 0
  %570 = vmatprep.subr.bf16.mxu0 0
  %571 = vmatpush1.bf16.msra.mxu0 0
  %572 = vmatprep.subr.bf16.mxu0 0
  %573 = vmatpush1.bf16.msra.mxu0 0
  %574 = vmatprep.subr.bf16.mxu0 0
  %575 = vmatpush1.bf16.msra.mxu0 0
  %576 = vmatprep.subr.bf16.mxu0 0
  %577 = vmatpush1.bf16.msra.mxu0 0
  %578 = vmatprep.subr.bf16.mxu0 0
  %579 = vmatpush1.bf16.msra.mxu0 0
  %580 = vmatprep.subr.bf16.mxu0 0
  %581 = vmatpush1.bf16.msra.mxu0 0
  %582 = vmatprep.subr.bf16.mxu0 0
  %583 = vmatpush1.bf16.msra.mxu0 0
  %584 = vmatprep.subr.bf16.mxu0 0
  %585 = vmatpush1.bf16.msra.mxu0 0
  %586 = vmatprep.subr.bf16.mxu0 0
  %587 = vmatpush1.bf16.msra.mxu0 0
  %588 = vmatprep.subr.bf16.mxu0 0
  %589 = vmatpush1.bf16.msra.mxu0 0
  %590 = vmatprep.subr.bf16.mxu0 0
  %591 = vmatpush1.bf16.msra.mxu0 0
  %592 = vmatprep.mubr.bf16.mxu0 0
  %593 = vmatmul.mubr.bf16.gmra.mrb[0].mxu0 %v510
  %v594 = vpop.f32.mrb[0].mxu0
  %v595 = vadd.f32 0.0, %v594
  %v596 = vpop.f32.mrb[0].mxu0
  %v597 = vadd.f32 0.0, %v596
  %v598 = vpop.f32.mrb[0].mxu0
  %v599 = vpop.f32.mrb[0].mxu0
  %600 = vdwg.mxu0
  %601 = vmatprep.subr.bf16.mxu0 %v522
  %602 = vmatpush1.bf16.msra.mxu0 %v519
  %603 = vmatprep.subr.bf16.mxu0 0
  %604 = vmatpush1.bf16.msra.mxu0 0
  %605 = vmatprep.subr.bf16.mxu0 0
  %606 = vmatpush1.bf16.msra.mxu0 0
  %607 = vmatprep.subr.bf16.mxu0 0
  %608 = vmatpush1.bf16.msra.mxu0 0
  %609 = vmatprep.subr.bf16.mxu0 0
  %610 = vmatpush1.bf16.msra.mxu0 0
  %611 = vmatprep.subr.bf16.mxu0 0
  %612 = vmatpush1.bf16.msra.mxu0 0
  %613 = vmatprep.subr.bf16.mxu0 0
  %614 = vmatpush1.bf16.msra.mxu0 0
  %615 = vmatprep.subr.bf16.mxu0 0
  %616 = vmatpush1.bf16.msra.mxu0 0
  %617 = vmatprep.subr.bf16.mxu0 0
  %618 = vmatpush1.bf16.msra.mxu0 0
  %619 = vmatprep.subr.bf16.mxu0 0
  %620 = vmatpush1.bf16.msra.mxu0 0
  %621 = vmatprep.subr.bf16.mxu0 0
  %622 = vmatpush1.bf16.msra.mxu0 0
  %623 = vmatprep.subr.bf16.mxu0 0
  %624 = vmatpush1.bf16.msra.mxu0 0
  %625 = vmatprep.subr.bf16.mxu0 0
  %626 = vmatpush1.bf16.msra.mxu0 0
  %627 = vmatprep.subr.bf16.mxu0 0
  %628 = vmatpush1.bf16.msra.mxu0 0
  %629 = vmatprep.subr.bf16.mxu0 0
  %630 = vmatpush1.bf16.msra.mxu0 0
  %631 = vmatprep.subr.bf16.mxu0 0
  %632 = vmatpush1.bf16.msra.mxu0 0
  %633 = vmatprep.mubr.bf16.mxu0 0
  %634 = vmatmul.mubr.bf16.gmra.mrb[0].mxu0 %v510
  %v635 = vpop.f32.mrb[0].mxu0
  %v636 = vadd.f32 0.0, %v635
  %v637 = vpop.f32.mrb[0].mxu0
  %v638 = vadd.f32 0.0, %v637
  %v639 = vpop.f32.mrb[0].mxu0
  %v640 = vpop.f32.mrb[0].mxu0
  %641 = vdwg.mxu0
  %642 = vmatprep.subr.bf16.mxu0 %v528
  %643 = vmatpush1.bf16.msra.mxu0 %v525
  %644 = vmatprep.subr.bf16.mxu0 0
  %645 = vmatpush1.bf16.msra.mxu0 0
  %646 = vmatprep.subr.bf16.mxu0 0
  %647 = vmatpush1.bf16.msra.mxu0 0
  %648 = vmatprep.subr.bf16.mxu0 0
  %649 = vmatpush1.bf16.msra.mxu0 0
  %650 = vmatprep.subr.bf16.mxu0 0
  %651 = vmatpush1.bf16.msra.mxu0 0
  %652 = vmatprep.subr.bf16.mxu0 0
  %653 = vmatpush1.bf16.msra.mxu0 0
  %654 = vmatprep.subr.bf16.mxu0 0
  %655 = vmatpush1.bf16.msra.mxu0 0
  %656 = vmatprep.subr.bf16.mxu0 0
  %657 = vmatpush1.bf16.msra.mxu0 0
  %658 = vmatprep.subr.bf16.mxu0 0
  %659 = vmatpush1.bf16.msra.mxu0 0
  %660 = vmatprep.subr.bf16.mxu0 0
  %661 = vmatpush1.bf16.msra.mxu0 0
  %662 = vmatprep.subr.bf16.mxu0 0
  %663 = vmatpush1.bf16.msra.mxu0 0
  %664 = vmatprep.subr.bf16.mxu0 0
  %665 = vmatpush1.bf16.msra.mxu0 0
  %666 = vmatprep.subr.bf16.mxu0 0
  %667 = vmatpush1.bf16.msra.mxu0 0
  %668 = vmatprep.subr.bf16.mxu0 0
  %669 = vmatpush1.bf16.msra.mxu0 0
  %670 = vmatprep.subr.bf16.mxu0 0
  %671 = vmatpush1.bf16.msra.mxu0 0
  %672 = vmatprep.subr.bf16.mxu0 0
  %673 = vmatpush1.bf16.msra.mxu0 0
  %674 = vmatprep.mubr.bf16.mxu0 0
  %675 = vmatmul.mubr.bf16.gmra.mrb[0].mxu0 %v510
  %v676 = vpop.f32.mrb[0].mxu0
  %v677 = vadd.f32 0.0, %v676
  %v678 = vpop.f32.mrb[0].mxu0
  %v679 = vadd.f32 0.0, %v678
  %v680 = vpop.f32.mrb[0].mxu0
  %v681 = vpop.f32.mrb[0].mxu0
  %682 = vdwg.mxu0
  %683 = vmatprep.subr.bf16.mxu0 %v534
  %684 = vmatpush1.bf16.msra.mxu0 %v531
  %685 = vmatprep.subr.bf16.mxu0 0
  %686 = vmatpush1.bf16.msra.mxu0 0
  %687 = vmatprep.subr.bf16.mxu0 0
  %688 = vmatpush1.bf16.msra.mxu0 0
  %689 = vmatprep.subr.bf16.mxu0 0
  %690 = vmatpush1.bf16.msra.mxu0 0
  %691 = vmatprep.subr.bf16.mxu0 0
  %692 = vmatpush1.bf16.msra.mxu0 0
  %693 = vmatprep.subr.bf16.mxu0 0
  %694 = vmatpush1.bf16.msra.mxu0 0
  %695 = vmatprep.subr.bf16.mxu0 0
  %696 = vmatpush1.bf16.msra.mxu0 0
  %697 = vmatprep.subr.bf16.mxu0 0
  %698 = vmatpush1.bf16.msra.mxu0 0
  %699 = vmatprep.subr.bf16.mxu0 0
  %700 = vmatpush1.bf16.msra.mxu0 0
  %701 = vmatprep.subr.bf16.mxu0 0
  %702 = vmatpush1.bf16.msra.mxu0 0
  %703 = vmatprep.subr.bf16.mxu0 0
  %704 = vmatpush1.bf16.msra.mxu0 0
  %705 = vmatprep.subr.bf16.mxu0 0
  %706 = vmatpush1.bf16.msra.mxu0 0
  %707 = vmatprep.subr.bf16.mxu0 0
  %708 = vmatpush1.bf16.msra.mxu0 0
  %709 = vmatprep.subr.bf16.mxu0 0
  %710 = vmatpush1.bf16.msra.mxu0 0
  %711 = vmatprep.subr.bf16.mxu0 0
  %712 = vmatpush1.bf16.msra.mxu0 0
  %713 = vmatprep.subr.bf16.mxu0 0
  %714 = vmatpush1.bf16.msra.mxu0 0
  %715 = vmatprep.mubr.bf16.mxu0 0
  %716 = vmatmul.mubr.bf16.gmra.mrb[0].mxu0 %v510
  %v717 = vpop.f32.mrb[0].mxu0
  %v718 = vadd.f32 0.0, %v717
  %v719 = vpop.f32.mrb[0].mxu0
  %v720 = vadd.f32 0.0, %v719
  %v721 = vpop.f32.mrb[0].mxu0
  %v722 = vpop.f32.mrb[0].mxu0
  %723 = vdwg.mxu0
  %724 = vmatprep.subr.bf16.mxu0 %v540
  %725 = vmatpush1.bf16.msra.mxu0 %v537
  %726 = vmatprep.subr.bf16.mxu0 0
  %727 = vmatpush1.bf16.msra.mxu0 0
  %728 = vmatprep.subr.bf16.mxu0 0
  %729 = vmatpush1.bf16.msra.mxu0 0
  %730 = vmatprep.subr.bf16.mxu0 0
  %731 = vmatpush1.bf16.msra.mxu0 0
  %732 = vmatprep.subr.bf16.mxu0 0
  %733 = vmatpush1.bf16.msra.mxu0 0
  %734 = vmatprep.subr.bf16.mxu0 0
  %735 = vmatpush1.bf16.msra.mxu0 0
  %736 = vmatprep.subr.bf16.mxu0 0
  %737 = vmatpush1.bf16.msra.mxu0 0
  %738 = vmatprep.subr.bf16.mxu0 0
  %739 = vmatpush1.bf16.msra.mxu0 0
  %740 = vmatprep.subr.bf16.mxu0 0
  %741 = vmatpush1.bf16.msra.mxu0 0
  %742 = vmatprep.subr.bf16.mxu0 0
  %743 = vmatpush1.bf16.msra.mxu0 0
  %744 = vmatprep.subr.bf16.mxu0 0
  %745 = vmatpush1.bf16.msra.mxu0 0
  %746 = vmatprep.subr.bf16.mxu0 0
  %747 = vmatpush1.bf16.msra.mxu0 0
  %748 = vmatprep.subr.bf16.mxu0 0
  %749 = vmatpush1.bf16.msra.mxu0 0
  %750 = vmatprep.subr.bf16.mxu0 0
  %751 = vmatpush1.bf16.msra.mxu0 0
  %752 = vmatprep.subr.bf16.mxu0 0
  %753 = vmatpush1.bf16.msra.mxu0 0
  %754 = vmatprep.subr.bf16.mxu0 0
  %755 = vmatpush1.bf16.msra.mxu0 0
  %756 = vmatprep.mubr.bf16.mxu0 0
  %757 = vmatmul.mubr.bf16.gmra.mrb[0].mxu0 %v510
  %v758 = vpop.f32.mrb[0].mxu0
  %v759 = vadd.f32 0.0, %v758
  %v760 = vpop.f32.mrb[0].mxu0
  %v761 = vadd.f32 0.0, %v760
  %v762 = vpop.f32.mrb[0].mxu0
  %v763 = vpop.f32.mrb[0].mxu0
  %764 = vdwg.mxu0
  %765 = vmatprep.subr.bf16.mxu0 %v546
  %766 = vmatpush1.bf16.msra.mxu0 %v543
  %767 = vmatprep.subr.bf16.mxu0 0
  %768 = vmatpush1.bf16.msra.mxu0 0
  %769 = vmatprep.subr.bf16.mxu0 0
  %770 = vmatpush1.bf16.msra.mxu0 0
  %771 = vmatprep.subr.bf16.mxu0 0
  %772 = vmatpush1.bf16.msra.mxu0 0
  %773 = vmatprep.subr.bf16.mxu0 0
  %774 = vmatpush1.bf16.msra.mxu0 0
  %775 = vmatprep.subr.bf16.mxu0 0
  %776 = vmatpush1.bf16.msra.mxu0 0
  %777 = vmatprep.subr.bf16.mxu0 0
  %778 = vmatpush1.bf16.msra.mxu0 0
  %779 = vmatprep.subr.bf16.mxu0 0
  %780 = vmatpush1.bf16.msra.mxu0 0
  %781 = vmatprep.subr.bf16.mxu0 0
  %782 = vmatpush1.bf16.msra.mxu0 0
  %783 = vmatprep.subr.bf16.mxu0 0
  %784 = vmatpush1.bf16.msra.mxu0 0
  %785 = vmatprep.subr.bf16.mxu0 0
  %786 = vmatpush1.bf16.msra.mxu0 0
  %787 = vmatprep.subr.bf16.mxu0 0
  %788 = vmatpush1.bf16.msra.mxu0 0
  %789 = vmatprep.subr.bf16.mxu0 0
  %790 = vmatpush1.bf16.msra.mxu0 0
  %791 = vmatprep.subr.bf16.mxu0 0
  %792 = vmatpush1.bf16.msra.mxu0 0
  %793 = vmatprep.subr.bf16.mxu0 0
  %794 = vmatpush1.bf16.msra.mxu0 0
  %795 = vmatprep.subr.bf16.mxu0 0
  %796 = vmatpush1.bf16.msra.mxu0 0
  %797 = vmatprep.mubr.bf16.mxu0 0
  %798 = vmatmul.mubr.bf16.gmra.mrb[0].mxu0 %v510
  %v799 = vpop.f32.mrb[0].mxu0
  %v800 = vadd.f32 0.0, %v799
  %v801 = vpop.f32.mrb[0].mxu0
  %v802 = vadd.f32 0.0, %v801
  %v803 = vpop.f32.mrb[0].mxu0
  %v804 = vpop.f32.mrb[0].mxu0
  %805 = vdwg.mxu0
  %806 = vmatprep.subr.bf16.mxu0 %v552
  %807 = vmatpush1.bf16.msra.mxu0 %v549
  %808 = vmatprep.subr.bf16.mxu0 0
  %809 = vmatpush1.bf16.msra.mxu0 0
  %810 = vmatprep.subr.bf16.mxu0 0
  %811 = vmatpush1.bf16.msra.mxu0 0
  %812 = vmatprep.subr.bf16.mxu0 0
  %813 = vmatpush1.bf16.msra.mxu0 0
  %814 = vmatprep.subr.bf16.mxu0 0
  %815 = vmatpush1.bf16.msra.mxu0 0
  %816 = vmatprep.subr.bf16.mxu0 0
  %817 = vmatpush1.bf16.msra.mxu0 0
  %818 = vmatprep.subr.bf16.mxu0 0
  %819 = vmatpush1.bf16.msra.mxu0 0
  %820 = vmatprep.subr.bf16.mxu0 0
  %821 = vmatpush1.bf16.msra.mxu0 0
  %822 = vmatprep.subr.bf16.mxu0 0
  %823 = vmatpush1.bf16.msra.mxu0 0
  %824 = vmatprep.subr.bf16.mxu0 0
  %825 = vmatpush1.bf16.msra.mxu0 0
  %826 = vmatprep.subr.bf16.mxu0 0
  %827 = vmatpush1.bf16.msra.mxu0 0
  %828 = vmatprep.subr.bf16.mxu0 0
  %829 = vmatpush1.bf16.msra.mxu0 0
  %830 = vmatprep.subr.bf16.mxu0 0
  %831 = vmatpush1.bf16.msra.mxu0 0
  %832 = vmatprep.subr.bf16.mxu0 0
  %833 = vmatpush1.bf16.msra.mxu0 0
  %834 = vmatprep.subr.bf16.mxu0 0
  %835 = vmatpush1.bf16.msra.mxu0 0
  %836 = vmatprep.subr.bf16.mxu0 0
  %837 = vmatpush1.bf16.msra.mxu0 0
  %838 = vmatprep.mubr.bf16.mxu0 0
  %839 = vmatmul.mubr.bf16.gmra.mrb[0].mxu0 %v510
  %v840 = vpop.f32.mrb[0].mxu0
  %v841 = vadd.f32 0.0, %v840
  %v842 = vpop.f32.mrb[0].mxu0
  %v843 = vadd.f32 0.0, %v842
  %v844 = vpop.f32.mrb[0].mxu0
  %v845 = vpop.f32.mrb[0].mxu0
  %846 = vdwg.mxu0
  %847 = vmatprep.subr.bf16.mxu0 %v558
  %848 = vmatpush1.bf16.msra.mxu0 %v555
  %849 = vmatprep.subr.bf16.mxu0 0
  %850 = vmatpush1.bf16.msra.mxu0 0
  %851 = vmatprep.subr.bf16.mxu0 0
  %852 = vmatpush1.bf16.msra.mxu0 0
  %853 = vmatprep.subr.bf16.mxu0 0
  %854 = vmatpush1.bf16.msra.mxu0 0
  %855 = vmatprep.subr.bf16.mxu0 0
  %856 = vmatpush1.bf16.msra.mxu0 0
  %857 = vmatprep.subr.bf16.mxu0 0
  %858 = vmatpush1.bf16.msra.mxu0 0
  %859 = vmatprep.subr.bf16.mxu0 0
  %860 = vmatpush1.bf16.msra.mxu0 0
  %861 = vmatprep.subr.bf16.mxu0 0
  %862 = vmatpush1.bf16.msra.mxu0 0
  %863 = vmatprep.subr.bf16.mxu0 0
  %864 = vmatpush1.bf16.msra.mxu0 0
  %865 = vmatprep.subr.bf16.mxu0 0
  %866 = vmatpush1.bf16.msra.mxu0 0
  %867 = vmatprep.subr.bf16.mxu0 0
  %868 = vmatpush1.bf16.msra.mxu0 0
  %869 = vmatprep.subr.bf16.mxu0 0
  %870 = vmatpush1.bf16.msra.mxu0 0
  %871 = vmatprep.subr.bf16.mxu0 0
  %872 = vmatpush1.bf16.msra.mxu0 0
  %873 = vmatprep.subr.bf16.mxu0 0
  %874 = vmatpush1.bf16.msra.mxu0 0
  %875 = vmatprep.subr.bf16.mxu0 0
  %876 = vmatpush1.bf16.msra.mxu0 0
  %877 = vmatprep.subr.bf16.mxu0 0
  %878 = vmatpush1.bf16.msra.mxu0 0
  %879 = vmatprep.mubr.bf16.mxu0 0
  %880 = vmatmul.mubr.bf16.gmra.mrb[0].mxu0 %v510
  %v881 = vpop.f32.mrb[0].mxu0
  %v882 = vadd.f32 0.0, %v881
  %v883 = vpop.f32.mrb[0].mxu0
  %v884 = vadd.f32 0.0, %v883
  %v885 = vpop.f32.mrb[0].mxu0
  %v886 = vpop.f32.mrb[0].mxu0
  %887 = vdwg.mxu0
  %v888 = vtanh.pop %v595
  %v889 = vtanh.pop %v597
  %v890 = vtanh.pop %v636
  %v891 = vtanh.pop %v638
  %v892 = vtanh.pop %v677
  %v893 = vtanh.pop %v679
  %v894 = vtanh.pop %v718
  %v895 = vtanh.pop %v720
  %v896 = vtanh.pop %v759
  %v897 = vtanh.pop %v761
  %v898 = vtanh.pop %v800
  %v899 = vtanh.pop %v802
  %v900 = vtanh.pop %v841
  %v901 = vtanh.pop %v843
  %v902 = vtanh.pop %v882
  %v903 = vtanh.pop %v884
  %s904 = scalar_lea.vmem %s1, 4
  %v905 = vld [vmem:[%s904] sm:$0x3]
  %s906 = scalar_lea.vmem %s0, 128
  %v907 = vld [vmem:[%s906] sm:$0xff]
  %v908 = vld [vmem:[%s906 + $0x8] sm:$0xff]
  %v909 = vld [vmem:[%s906 + $0x10] sm:$0xff]
  %v910 = vld [vmem:[%s906 + $0x18] sm:$0xff]
  %v911 = vld [vmem:[%s906 + $0x20] sm:$0xff]
  %v912 = vld [vmem:[%s906 + $0x28] sm:$0xff]
  %v913 = vld [vmem:[%s906 + $0x30] sm:$0xff]
  %v914 = vld [vmem:[%s906 + $0x38] sm:$0xff]
  %v923 = vunpack.c.l.b16 %v907
  %v924 = vunpack.c.h.b16 %v907
  %v925 = vunpack.c.l.b16 %v908
  %v926 = vunpack.c.h.b16 %v908
  %v927 = vunpack.c.l.b16 %v909
  %v928 = vunpack.c.h.b16 %v909
  %v929 = vunpack.c.l.b16 %v910
  %v930 = vunpack.c.h.b16 %v910
  %v931 = vunpack.c.l.b16 %v911
  %v932 = vunpack.c.h.b16 %v911
  %v933 = vunpack.c.l.b16 %v912
  %v934 = vunpack.c.h.b16 %v912
  %v935 = vunpack.c.l.b16 %v913
  %v936 = vunpack.c.h.b16 %v913
  %v937 = vunpack.c.l.b16 %v914
  %v938 = vunpack.c.h.b16 %v914
  %v939 = vpack.c.b16 %v923, %v923
  %v940 = vpack.c.b16 %v924, %v924
  %v941 = vpack.c.b16 %v925, %v925
  %v942 = vpack.c.b16 %v926, %v926
  %v943 = vpack.c.b16 %v927, %v927
  %v944 = vpack.c.b16 %v928, %v928
  %v945 = vpack.c.b16 %v929, %v929
  %v946 = vpack.c.b16 %v930, %v930
  %v947 = vpack.c.b16 %v931, %v931
  %v948 = vpack.c.b16 %v932, %v932
  %v949 = vpack.c.b16 %v933, %v933
  %v950 = vpack.c.b16 %v934, %v934
  %v951 = vpack.c.b16 %v935, %v935
  %v952 = vpack.c.b16 %v936, %v936
  %v953 = vpack.c.b16 %v937, %v937
  %v954 = vpack.c.b16 %v938, %v938
  %v956 = vsel %vm61, %v905, 0
  %v959 = vsel %vm65, %v939, 0
  %v962 = vsel %vm65, %v940, 0
  %v965 = vsel %vm65, %v941, 0
  %v968 = vsel %vm65, %v942, 0
  %v971 = vsel %vm65, %v943, 0
  %v974 = vsel %vm65, %v944, 0
  %v977 = vsel %vm65, %v945, 0
  %v980 = vsel %vm65, %v946, 0
  %v983 = vsel %vm65, %v947, 0
  %v986 = vsel %vm65, %v948, 0
  %v989 = vsel %vm65, %v949, 0
  %v992 = vsel %vm65, %v950, 0
  %v995 = vsel %vm65, %v951, 0
  %v998 = vsel %vm65, %v952, 0
  %v1001 = vsel %vm65, %v953, 0
  %v1004 = vsel %vm65, %v954, 0
  %1006 = vmatprep.subr.bf16.mxu0 %v962
  %1007 = vmatpush1.bf16.msra.mxu0 %v959
  %1008 = vmatprep.subr.bf16.mxu0 0
  %1009 = vmatpush1.bf16.msra.mxu0 0
  %1010 = vmatprep.subr.bf16.mxu0 0
  %1011 = vmatpush1.bf16.msra.mxu0 0
  %1012 = vmatprep.subr.bf16.mxu0 0
  %1013 = vmatpush1.bf16.msra.mxu0 0
  %1014 = vmatprep.subr.bf16.mxu0 0
  %1015 = vmatpush1.bf16.msra.mxu0 0
  %1016 = vmatprep.subr.bf16.mxu0 0
  %1017 = vmatpush1.bf16.msra.mxu0 0
  %1018 = vmatprep.subr.bf16.mxu0 0
  %1019 = vmatpush1.bf16.msra.mxu0 0
  %1020 = vmatprep.subr.bf16.mxu0 0
  %1021 = vmatpush1.bf16.msra.mxu0 0
  %1022 = vmatprep.subr.bf16.mxu0 0
  %1023 = vmatpush1.bf16.msra.mxu0 0
  %1024 = vmatprep.subr.bf16.mxu0 0
  %1025 = vmatpush1.bf16.msra.mxu0 0
  %1026 = vmatprep.subr.bf16.mxu0 0
  %1027 = vmatpush1.bf16.msra.mxu0 0
  %1028 = vmatprep.subr.bf16.mxu0 0
  %1029 = vmatpush1.bf16.msra.mxu0 0
  %1030 = vmatprep.subr.bf16.mxu0 0
  %1031 = vmatpush1.bf16.msra.mxu0 0
  %1032 = vmatprep.subr.bf16.mxu0 0
  %1033 = vmatpush1.bf16.msra.mxu0 0
  %1034 = vmatprep.subr.bf16.mxu0 0
  %1035 = vmatpush1.bf16.msra.mxu0 0
  %1036 = vmatprep.subr.bf16.mxu0 0
  %1037 = vmatpush1.bf16.msra.mxu0 0
  %1038 = vmatprep.mubr.bf16.mxu0 0
  %1039 = vmatmul.mubr.bf16.gmra.mrb[0].mxu0 %v956
  %v1040 = vpop.f32.mrb[0].mxu0
  %v1041 = vadd.f32 0.0, %v1040
  %v1042 = vpop.f32.mrb[0].mxu0
  %v1043 = vadd.f32 0.0, %v1042
  %v1044 = vpop.f32.mrb[0].mxu0
  %v1045 = vpop.f32.mrb[0].mxu0
  %1046 = vdwg.mxu0
  %1047 = vmatprep.subr.bf16.mxu0 %v968
  %1048 = vmatpush1.bf16.msra.mxu0 %v965
  %1049 = vmatprep.subr.bf16.mxu0 0
  %1050 = vmatpush1.bf16.msra.mxu0 0
  %1051 = vmatprep.subr.bf16.mxu0 0
  %1052 = vmatpush1.bf16.msra.mxu0 0
  %1053 = vmatprep.subr.bf16.mxu0 0
  %1054 = vmatpush1.bf16.msra.mxu0 0
  %1055 = vmatprep.subr.bf16.mxu0 0
  %1056 = vmatpush1.bf16.msra.mxu0 0
  %1057 = vmatprep.subr.bf16.mxu0 0
  %1058 = vmatpush1.bf16.msra.mxu0 0
  %1059 = vmatprep.subr.bf16.mxu0 0
  %1060 = vmatpush1.bf16.msra.mxu0 0
  %1061 = vmatprep.subr.bf16.mxu0 0
  %1062 = vmatpush1.bf16.msra.mxu0 0
  %1063 = vmatprep.subr.bf16.mxu0 0
  %1064 = vmatpush1.bf16.msra.mxu0 0
  %1065 = vmatprep.subr.bf16.mxu0 0
  %1066 = vmatpush1.bf16.msra.mxu0 0
  %1067 = vmatprep.subr.bf16.mxu0 0
  %1068 = vmatpush1.bf16.msra.mxu0 0
  %1069 = vmatprep.subr.bf16.mxu0 0
  %1070 = vmatpush1.bf16.msra.mxu0 0
  %1071 = vmatprep.subr.bf16.mxu0 0
  %1072 = vmatpush1.bf16.msra.mxu0 0
  %1073 = vmatprep.subr.bf16.mxu0 0
  %1074 = vmatpush1.bf16.msra.mxu0 0
  %1075 = vmatprep.subr.bf16.mxu0 0
  %1076 = vmatpush1.bf16.msra.mxu0 0
  %1077 = vmatprep.subr.bf16.mxu0 0
  %1078 = vmatpush1.bf16.msra.mxu0 0
  %1079 = vmatprep.mubr.bf16.mxu0 0
  %1080 = vmatmul.mubr.bf16.gmra.mrb[0].mxu0 %v956
  %v1081 = vpop.f32.mrb[0].mxu0
  %v1082 = vadd.f32 0.0, %v1081
  %v1083 = vpop.f32.mrb[0].mxu0
  %v1084 = vadd.f32 0.0, %v1083
  %v1085 = vpop.f32.mrb[0].mxu0
  %v1086 = vpop.f32.mrb[0].mxu0
  %1087 = vdwg.mxu0
  %1088 = vmatprep.subr.bf16.mxu0 %v974
  %1089 = vmatpush1.bf16.msra.mxu0 %v971
  %1090 = vmatprep.subr.bf16.mxu0 0
  %1091 = vmatpush1.bf16.msra.mxu0 0
  %1092 = vmatprep.subr.bf16.mxu0 0
  %1093 = vmatpush1.bf16.msra.mxu0 0
  %1094 = vmatprep.subr.bf16.mxu0 0
  %1095 = vmatpush1.bf16.msra.mxu0 0
  %1096 = vmatprep.subr.bf16.mxu0 0
  %1097 = vmatpush1.bf16.msra.mxu0 0
  %1098 = vmatprep.subr.bf16.mxu0 0
  %1099 = vmatpush1.bf16.msra.mxu0 0
  %1100 = vmatprep.subr.bf16.mxu0 0
  %1101 = vmatpush1.bf16.msra.mxu0 0
  %1102 = vmatprep.subr.bf16.mxu0 0
  %1103 = vmatpush1.bf16.msra.mxu0 0
  %1104 = vmatprep.subr.bf16.mxu0 0
  %1105 = vmatpush1.bf16.msra.mxu0 0
  %1106 = vmatprep.subr.bf16.mxu0 0
  %1107 = vmatpush1.bf16.msra.mxu0 0
  %1108 = vmatprep.subr.bf16.mxu0 0
  %1109 = vmatpush1.bf16.msra.mxu0 0
  %1110 = vmatprep.subr.bf16.mxu0 0
  %1111 = vmatpush1.bf16.msra.mxu0 0
  %1112 = vmatprep.subr.bf16.mxu0 0
  %1113 = vmatpush1.bf16.msra.mxu0 0
  %1114 = vmatprep.subr.bf16.mxu0 0
  %1115 = vmatpush1.bf16.msra.mxu0 0
  %1116 = vmatprep.subr.bf16.mxu0 0
  %1117 = vmatpush1.bf16.msra.mxu0 0
  %1118 = vmatprep.subr.bf16.mxu0 0
  %1119 = vmatpush1.bf16.msra.mxu0 0
  %1120 = vmatprep.mubr.bf16.mxu0 0
  %1121 = vmatmul.mubr.bf16.gmra.mrb[0].mxu0 %v956
  %v1122 = vpop.f32.mrb[0].mxu0
  %v1123 = vadd.f32 0.0, %v1122
  %v1124 = vpop.f32.mrb[0].mxu0
  %v1125 = vadd.f32 0.0, %v1124
  %v1126 = vpop.f32.mrb[0].mxu0
  %v1127 = vpop.f32.mrb[0].mxu0
  %1128 = vdwg.mxu0
  %1129 = vmatprep.subr.bf16.mxu0 %v980
  %1130 = vmatpush1.bf16.msra.mxu0 %v977
  %1131 = vmatprep.subr.bf16.mxu0 0
  %1132 = vmatpush1.bf16.msra.mxu0 0
  %1133 = vmatprep.subr.bf16.mxu0 0
  %1134 = vmatpush1.bf16.msra.mxu0 0
  %1135 = vmatprep.subr.bf16.mxu0 0
  %1136 = vmatpush1.bf16.msra.mxu0 0
  %1137 = vmatprep.subr.bf16.mxu0 0
  %1138 = vmatpush1.bf16.msra.mxu0 0
  %1139 = vmatprep.subr.bf16.mxu0 0
  %1140 = vmatpush1.bf16.msra.mxu0 0
  %1141 = vmatprep.subr.bf16.mxu0 0
  %1142 = vmatpush1.bf16.msra.mxu0 0
  %1143 = vmatprep.subr.bf16.mxu0 0
  %1144 = vmatpush1.bf16.msra.mxu0 0
  %1145 = vmatprep.subr.bf16.mxu0 0
  %1146 = vmatpush1.bf16.msra.mxu0 0
  %1147 = vmatprep.subr.bf16.mxu0 0
  %1148 = vmatpush1.bf16.msra.mxu0 0
  %1149 = vmatprep.subr.bf16.mxu0 0
  %1150 = vmatpush1.bf16.msra.mxu0 0
  %1151 = vmatprep.subr.bf16.mxu0 0
  %1152 = vmatpush1.bf16.msra.mxu0 0
  %1153 = vmatprep.subr.bf16.mxu0 0
  %1154 = vmatpush1.bf16.msra.mxu0 0
  %1155 = vmatprep.subr.bf16.mxu0 0
  %1156 = vmatpush1.bf16.msra.mxu0 0
  %1157 = vmatprep.subr.bf16.mxu0 0
  %1158 = vmatpush1.bf16.msra.mxu0 0
  %1159 = vmatprep.subr.bf16.mxu0 0
  %1160 = vmatpush1.bf16.msra.mxu0 0
  %1161 = vmatprep.mubr.bf16.mxu0 0
  %1162 = vmatmul.mubr.bf16.gmra.mrb[0].mxu0 %v956
  %v1163 = vpop.f32.mrb[0].mxu0
  %v1164 = vadd.f32 0.0, %v1163
  %v1165 = vpop.f32.mrb[0].mxu0
  %v1166 = vadd.f32 0.0, %v1165
  %v1167 = vpop.f32.mrb[0].mxu0
  %v1168 = vpop.f32.mrb[0].mxu0
  %1169 = vdwg.mxu0
  %1170 = vmatprep.subr.bf16.mxu0 %v986
  %1171 = vmatpush1.bf16.msra.mxu0 %v983
  %1172 = vmatprep.subr.bf16.mxu0 0
  %1173 = vmatpush1.bf16.msra.mxu0 0
  %1174 = vmatprep.subr.bf16.mxu0 0
  %1175 = vmatpush1.bf16.msra.mxu0 0
  %1176 = vmatprep.subr.bf16.mxu0 0
  %1177 = vmatpush1.bf16.msra.mxu0 0
  %1178 = vmatprep.subr.bf16.mxu0 0
  %1179 = vmatpush1.bf16.msra.mxu0 0
  %1180 = vmatprep.subr.bf16.mxu0 0
  %1181 = vmatpush1.bf16.msra.mxu0 0
  %1182 = vmatprep.subr.bf16.mxu0 0
  %1183 = vmatpush1.bf16.msra.mxu0 0
  %1184 = vmatprep.subr.bf16.mxu0 0
  %1185 = vmatpush1.bf16.msra.mxu0 0
  %1186 = vmatprep.subr.bf16.mxu0 0
  %1187 = vmatpush1.bf16.msra.mxu0 0
  %1188 = vmatprep.subr.bf16.mxu0 0
  %1189 = vmatpush1.bf16.msra.mxu0 0
  %1190 = vmatprep.subr.bf16.mxu0 0
  %1191 = vmatpush1.bf16.msra.mxu0 0
  %1192 = vmatprep.subr.bf16.mxu0 0
  %1193 = vmatpush1.bf16.msra.mxu0 0
  %1194 = vmatprep.subr.bf16.mxu0 0
  %1195 = vmatpush1.bf16.msra.mxu0 0
  %1196 = vmatprep.subr.bf16.mxu0 0
  %1197 = vmatpush1.bf16.msra.mxu0 0
  %1198 = vmatprep.subr.bf16.mxu0 0
  %1199 = vmatpush1.bf16.msra.mxu0 0
  %1200 = vmatprep.subr.bf16.mxu0 0
  %1201 = vmatpush1.bf16.msra.mxu0 0
  %1202 = vmatprep.mubr.bf16.mxu0 0
  %1203 = vmatmul.mubr.bf16.gmra.mrb[0].mxu0 %v956
  %v1204 = vpop.f32.mrb[0].mxu0
  %v1205 = vadd.f32 0.0, %v1204
  %v1206 = vpop.f32.mrb[0].mxu0
  %v1207 = vadd.f32 0.0, %v1206
  %v1208 = vpop.f32.mrb[0].mxu0
  %v1209 = vpop.f32.mrb[0].mxu0
  %1210 = vdwg.mxu0
  %1211 = vmatprep.subr.bf16.mxu0 %v992
  %1212 = vmatpush1.bf16.msra.mxu0 %v989
  %1213 = vmatprep.subr.bf16.mxu0 0
  %1214 = vmatpush1.bf16.msra.mxu0 0
  %1215 = vmatprep.subr.bf16.mxu0 0
  %1216 = vmatpush1.bf16.msra.mxu0 0
  %1217 = vmatprep.subr.bf16.mxu0 0
  %1218 = vmatpush1.bf16.msra.mxu0 0
  %1219 = vmatprep.subr.bf16.mxu0 0
  %1220 = vmatpush1.bf16.msra.mxu0 0
  %1221 = vmatprep.subr.bf16.mxu0 0
  %1222 = vmatpush1.bf16.msra.mxu0 0
  %1223 = vmatprep.subr.bf16.mxu0 0
  %1224 = vmatpush1.bf16.msra.mxu0 0
  %1225 = vmatprep.subr.bf16.mxu0 0
  %1226 = vmatpush1.bf16.msra.mxu0 0
  %1227 = vmatprep.subr.bf16.mxu0 0
  %1228 = vmatpush1.bf16.msra.mxu0 0
  %1229 = vmatprep.subr.bf16.mxu0 0
  %1230 = vmatpush1.bf16.msra.mxu0 0
  %1231 = vmatprep.subr.bf16.mxu0 0
  %1232 = vmatpush1.bf16.msra.mxu0 0
  %1233 = vmatprep.subr.bf16.mxu0 0
  %1234 = vmatpush1.bf16.msra.mxu0 0
  %1235 = vmatprep.subr.bf16.mxu0 0
  %1236 = vmatpush1.bf16.msra.mxu0 0
  %1237 = vmatprep.subr.bf16.mxu0 0
  %1238 = vmatpush1.bf16.msra.mxu0 0
  %1239 = vmatprep.subr.bf16.mxu0 0
  %1240 = vmatpush1.bf16.msra.mxu0 0
  %1241 = vmatprep.subr.bf16.mxu0 0
  %1242 = vmatpush1.bf16.msra.mxu0 0
  %1243 = vmatprep.mubr.bf16.mxu0 0
  %1244 = vmatmul.mubr.bf16.gmra.mrb[0].mxu0 %v956
  %v1245 = vpop.f32.mrb[0].mxu0
  %v1246 = vadd.f32 0.0, %v1245
  %v1247 = vpop.f32.mrb[0].mxu0
  %v1248 = vadd.f32 0.0, %v1247
  %v1249 = vpop.f32.mrb[0].mxu0
  %v1250 = vpop.f32.mrb[0].mxu0
  %1251 = vdwg.mxu0
  %1252 = vmatprep.subr.bf16.mxu0 %v998
  %1253 = vmatpush1.bf16.msra.mxu0 %v995
  %1254 = vmatprep.subr.bf16.mxu0 0
  %1255 = vmatpush1.bf16.msra.mxu0 0
  %1256 = vmatprep.subr.bf16.mxu0 0
  %1257 = vmatpush1.bf16.msra.mxu0 0
  %1258 = vmatprep.subr.bf16.mxu0 0
  %1259 = vmatpush1.bf16.msra.mxu0 0
  %1260 = vmatprep.subr.bf16.mxu0 0
  %1261 = vmatpush1.bf16.msra.mxu0 0
  %1262 = vmatprep.subr.bf16.mxu0 0
  %1263 = vmatpush1.bf16.msra.mxu0 0
  %1264 = vmatprep.subr.bf16.mxu0 0
  %1265 = vmatpush1.bf16.msra.mxu0 0
  %1266 = vmatprep.subr.bf16.mxu0 0
  %1267 = vmatpush1.bf16.msra.mxu0 0
  %1268 = vmatprep.subr.bf16.mxu0 0
  %1269 = vmatpush1.bf16.msra.mxu0 0
  %1270 = vmatprep.subr.bf16.mxu0 0
  %1271 = vmatpush1.bf16.msra.mxu0 0
  %1272 = vmatprep.subr.bf16.mxu0 0
  %1273 = vmatpush1.bf16.msra.mxu0 0
  %1274 = vmatprep.subr.bf16.mxu0 0
  %1275 = vmatpush1.bf16.msra.mxu0 0
  %1276 = vmatprep.subr.bf16.mxu0 0
  %1277 = vmatpush1.bf16.msra.mxu0 0
  %1278 = vmatprep.subr.bf16.mxu0 0
  %1279 = vmatpush1.bf16.msra.mxu0 0
  %1280 = vmatprep.subr.bf16.mxu0 0
  %1281 = vmatpush1.bf16.msra.mxu0 0
  %1282 = vmatprep.subr.bf16.mxu0 0
  %1283 = vmatpush1.bf16.msra.mxu0 0
  %1284 = vmatprep.mubr.bf16.mxu0 0
  %1285 = vmatmul.mubr.bf16.gmra.mrb[0].mxu0 %v956
  %v1286 = vpop.f32.mrb[0].mxu0
  %v1287 = vadd.f32 0.0, %v1286
  %v1288 = vpop.f32.mrb[0].mxu0
  %v1289 = vadd.f32 0.0, %v1288
  %v1290 = vpop.f32.mrb[0].mxu0
  %v1291 = vpop.f32.mrb[0].mxu0
  %1292 = vdwg.mxu0
  %1293 = vmatprep.subr.bf16.mxu0 %v1004
  %1294 = vmatpush1.bf16.msra.mxu0 %v1001
  %1295 = vmatprep.subr.bf16.mxu0 0
  %1296 = vmatpush1.bf16.msra.mxu0 0
  %1297 = vmatprep.subr.bf16.mxu0 0
  %1298 = vmatpush1.bf16.msra.mxu0 0
  %1299 = vmatprep.subr.bf16.mxu0 0
  %1300 = vmatpush1.bf16.msra.mxu0 0
  %1301 = vmatprep.subr.bf16.mxu0 0
  %1302 = vmatpush1.bf16.msra.mxu0 0
  %1303 = vmatprep.subr.bf16.mxu0 0
  %1304 = vmatpush1.bf16.msra.mxu0 0
  %1305 = vmatprep.subr.bf16.mxu0 0
  %1306 = vmatpush1.bf16.msra.mxu0 0
  %1307 = vmatprep.subr.bf16.mxu0 0
  %1308 = vmatpush1.bf16.msra.mxu0 0
  %1309 = vmatprep.subr.bf16.mxu0 0
  %1310 = vmatpush1.bf16.msra.mxu0 0
  %1311 = vmatprep.subr.bf16.mxu0 0
  %1312 = vmatpush1.bf16.msra.mxu0 0
  %1313 = vmatprep.subr.bf16.mxu0 0
  %1314 = vmatpush1.bf16.msra.mxu0 0
  %1315 = vmatprep.subr.bf16.mxu0 0
  %1316 = vmatpush1.bf16.msra.mxu0 0
  %1317 = vmatprep.subr.bf16.mxu0 0
  %1318 = vmatpush1.bf16.msra.mxu0 0
  %1319 = vmatprep.subr.bf16.mxu0 0
  %1320 = vmatpush1.bf16.msra.mxu0 0
  %1321 = vmatprep.subr.bf16.mxu0 0
  %1322 = vmatpush1.bf16.msra.mxu0 0
  %1323 = vmatprep.subr.bf16.mxu0 0
  %1324 = vmatpush1.bf16.msra.mxu0 0
  %1325 = vmatprep.mubr.bf16.mxu0 0
  %1326 = vmatmul.mubr.bf16.gmra.mrb[0].mxu0 %v956
  %v1327 = vpop.f32.mrb[0].mxu0
  %v1328 = vadd.f32 0.0, %v1327
  %v1329 = vpop.f32.mrb[0].mxu0
  %v1330 = vadd.f32 0.0, %v1329
  %v1331 = vpop.f32.mrb[0].mxu0
  %v1332 = vpop.f32.mrb[0].mxu0
  %1333 = vdwg.mxu0
  %v1334 = vtanh.pop %v1041
  %v1335 = vtanh.pop %v1043
  %v1336 = vtanh.pop %v1082
  %v1337 = vtanh.pop %v1084
  %v1338 = vtanh.pop %v1123
  %v1339 = vtanh.pop %v1125
  %v1340 = vtanh.pop %v1164
  %v1341 = vtanh.pop %v1166
  %v1342 = vtanh.pop %v1205
  %v1343 = vtanh.pop %v1207
  %v1344 = vtanh.pop %v1246
  %v1345 = vtanh.pop %v1248
  %v1346 = vtanh.pop %v1287
  %v1347 = vtanh.pop %v1289
  %v1348 = vtanh.pop %v1328
  %v1349 = vtanh.pop %v1330
  %s1350 = scalar_lea.vmem %s1, 6
  %v1351 = vld [vmem:[%s1350] sm:$0x3]
  %s1352 = scalar_lea.vmem %s0, 192
  %v1353 = vld [vmem:[%s1352] sm:$0xff]
  %v1354 = vld [vmem:[%s1352 + $0x8] sm:$0xff]
  %v1355 = vld [vmem:[%s1352 + $0x10] sm:$0xff]
  %v1356 = vld [vmem:[%s1352 + $0x18] sm:$0xff]
  %v1357 = vld [vmem:[%s1352 + $0x20] sm:$0xff]
  %v1358 = vld [vmem:[%s1352 + $0x28] sm:$0xff]
  %v1359 = vld [vmem:[%s1352 + $0x30] sm:$0xff]
  %v1360 = vld [vmem:[%s1352 + $0x38] sm:$0xff]
  %v1369 = vunpack.c.l.b16 %v1353
  %v1370 = vunpack.c.h.b16 %v1353
  %v1371 = vunpack.c.l.b16 %v1354
  %v1372 = vunpack.c.h.b16 %v1354
  %v1373 = vunpack.c.l.b16 %v1355
  %v1374 = vunpack.c.h.b16 %v1355
  %v1375 = vunpack.c.l.b16 %v1356
  %v1376 = vunpack.c.h.b16 %v1356
  %v1377 = vunpack.c.l.b16 %v1357
  %v1378 = vunpack.c.h.b16 %v1357
  %v1379 = vunpack.c.l.b16 %v1358
  %v1380 = vunpack.c.h.b16 %v1358
  %v1381 = vunpack.c.l.b16 %v1359
  %v1382 = vunpack.c.h.b16 %v1359
  %v1383 = vunpack.c.l.b16 %v1360
  %v1384 = vunpack.c.h.b16 %v1360
  %v1385 = vpack.c.b16 %v1369, %v1369
  %v1386 = vpack.c.b16 %v1370, %v1370
  %v1387 = vpack.c.b16 %v1371, %v1371
  %v1388 = vpack.c.b16 %v1372, %v1372
  %v1389 = vpack.c.b16 %v1373, %v1373
  %v1390 = vpack.c.b16 %v1374, %v1374
  %v1391 = vpack.c.b16 %v1375, %v1375
  %v1392 = vpack.c.b16 %v1376, %v1376
  %v1393 = vpack.c.b16 %v1377, %v1377
  %v1394 = vpack.c.b16 %v1378, %v1378
  %v1395 = vpack.c.b16 %v1379, %v1379
  %v1396 = vpack.c.b16 %v1380, %v1380
  %v1397 = vpack.c.b16 %v1381, %v1381
  %v1398 = vpack.c.b16 %v1382, %v1382
  %v1399 = vpack.c.b16 %v1383, %v1383
  %v1400 = vpack.c.b16 %v1384, %v1384
  %v1402 = vsel %vm61, %v1351, 0
  %v1405 = vsel %vm65, %v1385, 0
  %v1408 = vsel %vm65, %v1386, 0
  %v1411 = vsel %vm65, %v1387, 0
  %v1414 = vsel %vm65, %v1388, 0
  %v1417 = vsel %vm65, %v1389, 0
  %v1420 = vsel %vm65, %v1390, 0
  %v1423 = vsel %vm65, %v1391, 0
  %v1426 = vsel %vm65, %v1392, 0
  %v1429 = vsel %vm65, %v1393, 0
  %v1432 = vsel %vm65, %v1394, 0
  %v1435 = vsel %vm65, %v1395, 0
  %v1438 = vsel %vm65, %v1396, 0
  %v1441 = vsel %vm65, %v1397, 0
  %v1444 = vsel %vm65, %v1398, 0
  %v1447 = vsel %vm65, %v1399, 0
  %v1450 = vsel %vm65, %v1400, 0
  %1452 = vmatprep.subr.bf16.mxu0 %v1408
  %1453 = vmatpush1.bf16.msra.mxu0 %v1405
  %1454 = vmatprep.subr.bf16.mxu0 0
  %1455 = vmatpush1.bf16.msra.mxu0 0
  %1456 = vmatprep.subr.bf16.mxu0 0
  %1457 = vmatpush1.bf16.msra.mxu0 0
  %1458 = vmatprep.subr.bf16.mxu0 0
  %1459 = vmatpush1.bf16.msra.mxu0 0
  %1460 = vmatprep.subr.bf16.mxu0 0
  %1461 = vmatpush1.bf16.msra.mxu0 0
  %1462 = vmatprep.subr.bf16.mxu0 0
  %1463 = vmatpush1.bf16.msra.mxu0 0
  %1464 = vmatprep.subr.bf16.mxu0 0
  %1465 = vmatpush1.bf16.msra.mxu0 0
  %1466 = vmatprep.subr.bf16.mxu0 0
  %1467 = vmatpush1.bf16.msra.mxu0 0
  %1468 = vmatprep.subr.bf16.mxu0 0
  %1469 = vmatpush1.bf16.msra.mxu0 0
  %1470 = vmatprep.subr.bf16.mxu0 0
  %1471 = vmatpush1.bf16.msra.mxu0 0
  %1472 = vmatprep.subr.bf16.mxu0 0
  %1473 = vmatpush1.bf16.msra.mxu0 0
  %1474 = vmatprep.subr.bf16.mxu0 0
  %1475 = vmatpush1.bf16.msra.mxu0 0
  %1476 = vmatprep.subr.bf16.mxu0 0
  %1477 = vmatpush1.bf16.msra.mxu0 0
  %1478 = vmatprep.subr.bf16.mxu0 0
  %1479 = vmatpush1.bf16.msra.mxu0 0
  %1480 = vmatprep.subr.bf16.mxu0 0
  %1481 = vmatpush1.bf16.msra.mxu0 0
  %1482 = vmatprep.subr.bf16.mxu0 0
  %1483 = vmatpush1.bf16.msra.mxu0 0
  %1484 = vmatprep.mubr.bf16.mxu0 0
  %1485 = vmatmul.mubr.bf16.gmra.mrb[0].mxu0 %v1402
  %v1486 = vpop.f32.mrb[0].mxu0
  %v1487 = vadd.f32 0.0, %v1486
  %v1488 = vpop.f32.mrb[0].mxu0
  %v1489 = vadd.f32 0.0, %v1488
  %v1490 = vpop.f32.mrb[0].mxu0
  %v1491 = vpop.f32.mrb[0].mxu0
  %1492 = vdwg.mxu0
  %1493 = vmatprep.subr.bf16.mxu0 %v1414
  %1494 = vmatpush1.bf16.msra.mxu0 %v1411
  %1495 = vmatprep.subr.bf16.mxu0 0
  %1496 = vmatpush1.bf16.msra.mxu0 0
  %1497 = vmatprep.subr.bf16.mxu0 0
  %1498 = vmatpush1.bf16.msra.mxu0 0
  %1499 = vmatprep.subr.bf16.mxu0 0
  %1500 = vmatpush1.bf16.msra.mxu0 0
  %1501 = vmatprep.subr.bf16.mxu0 0
  %1502 = vmatpush1.bf16.msra.mxu0 0
  %1503 = vmatprep.subr.bf16.mxu0 0
  %1504 = vmatpush1.bf16.msra.mxu0 0
  %1505 = vmatprep.subr.bf16.mxu0 0
  %1506 = vmatpush1.bf16.msra.mxu0 0
  %1507 = vmatprep.subr.bf16.mxu0 0
  %1508 = vmatpush1.bf16.msra.mxu0 0
  %1509 = vmatprep.subr.bf16.mxu0 0
  %1510 = vmatpush1.bf16.msra.mxu0 0
  %1511 = vmatprep.subr.bf16.mxu0 0
  %1512 = vmatpush1.bf16.msra.mxu0 0
  %1513 = vmatprep.subr.bf16.mxu0 0
  %1514 = vmatpush1.bf16.msra.mxu0 0
  %1515 = vmatprep.subr.bf16.mxu0 0
  %1516 = vmatpush1.bf16.msra.mxu0 0
  %1517 = vmatprep.subr.bf16.mxu0 0
  %1518 = vmatpush1.bf16.msra.mxu0 0
  %1519 = vmatprep.subr.bf16.mxu0 0
  %1520 = vmatpush1.bf16.msra.mxu0 0
  %1521 = vmatprep.subr.bf16.mxu0 0
  %1522 = vmatpush1.bf16.msra.mxu0 0
  %1523 = vmatprep.subr.bf16.mxu0 0
  %1524 = vmatpush1.bf16.msra.mxu0 0
  %1525 = vmatprep.mubr.bf16.mxu0 0
  %1526 = vmatmul.mubr.bf16.gmra.mrb[0].mxu0 %v1402
  %v1527 = vpop.f32.mrb[0].mxu0
  %v1528 = vadd.f32 0.0, %v1527
  %v1529 = vpop.f32.mrb[0].mxu0
  %v1530 = vadd.f32 0.0, %v1529
  %v1531 = vpop.f32.mrb[0].mxu0
  %v1532 = vpop.f32.mrb[0].mxu0
  %1533 = vdwg.mxu0
  %1534 = vmatprep.subr.bf16.mxu0 %v1420
  %1535 = vmatpush1.bf16.msra.mxu0 %v1417
  %1536 = vmatprep.subr.bf16.mxu0 0
  %1537 = vmatpush1.bf16.msra.mxu0 0
  %1538 = vmatprep.subr.bf16.mxu0 0
  %1539 = vmatpush1.bf16.msra.mxu0 0
  %1540 = vmatprep.subr.bf16.mxu0 0
  %1541 = vmatpush1.bf16.msra.mxu0 0
  %1542 = vmatprep.subr.bf16.mxu0 0
  %1543 = vmatpush1.bf16.msra.mxu0 0
  %1544 = vmatprep.subr.bf16.mxu0 0
  %1545 = vmatpush1.bf16.msra.mxu0 0
  %1546 = vmatprep.subr.bf16.mxu0 0
  %1547 = vmatpush1.bf16.msra.mxu0 0
  %1548 = vmatprep.subr.bf16.mxu0 0
  %1549 = vmatpush1.bf16.msra.mxu0 0
  %1550 = vmatprep.subr.bf16.mxu0 0
  %1551 = vmatpush1.bf16.msra.mxu0 0
  %1552 = vmatprep.subr.bf16.mxu0 0
  %1553 = vmatpush1.bf16.msra.mxu0 0
  %1554 = vmatprep.subr.bf16.mxu0 0
  %1555 = vmatpush1.bf16.msra.mxu0 0
  %1556 = vmatprep.subr.bf16.mxu0 0
  %1557 = vmatpush1.bf16.msra.mxu0 0
  %1558 = vmatprep.subr.bf16.mxu0 0
  %1559 = vmatpush1.bf16.msra.mxu0 0
  %1560 = vmatprep.subr.bf16.mxu0 0
  %1561 = vmatpush1.bf16.msra.mxu0 0
  %1562 = vmatprep.subr.bf16.mxu0 0
  %1563 = vmatpush1.bf16.msra.mxu0 0
  %1564 = vmatprep.subr.bf16.mxu0 0
  %1565 = vmatpush1.bf16.msra.mxu0 0
  %1566 = vmatprep.mubr.bf16.mxu0 0
  %1567 = vmatmul.mubr.bf16.gmra.mrb[0].mxu0 %v1402
  %v1568 = vpop.f32.mrb[0].mxu0
  %v1569 = vadd.f32 0.0, %v1568
  %v1570 = vpop.f32.mrb[0].mxu0
  %v1571 = vadd.f32 0.0, %v1570
  %v1572 = vpop.f32.mrb[0].mxu0
  %v1573 = vpop.f32.mrb[0].mxu0
  %1574 = vdwg.mxu0
  %1575 = vmatprep.subr.bf16.mxu0 %v1426
  %1576 = vmatpush1.bf16.msra.mxu0 %v1423
  %1577 = vmatprep.subr.bf16.mxu0 0
  %1578 = vmatpush1.bf16.msra.mxu0 0
  %1579 = vmatprep.subr.bf16.mxu0 0
  %1580 = vmatpush1.bf16.msra.mxu0 0
  %1581 = vmatprep.subr.bf16.mxu0 0
  %1582 = vmatpush1.bf16.msra.mxu0 0
  %1583 = vmatprep.subr.bf16.mxu0 0
  %1584 = vmatpush1.bf16.msra.mxu0 0
  %1585 = vmatprep.subr.bf16.mxu0 0
  %1586 = vmatpush1.bf16.msra.mxu0 0
  %1587 = vmatprep.subr.bf16.mxu0 0
  %1588 = vmatpush1.bf16.msra.mxu0 0
  %1589 = vmatprep.subr.bf16.mxu0 0
  %1590 = vmatpush1.bf16.msra.mxu0 0
  %1591 = vmatprep.subr.bf16.mxu0 0
  %1592 = vmatpush1.bf16.msra.mxu0 0
  %1593 = vmatprep.subr.bf16.mxu0 0
  %1594 = vmatpush1.bf16.msra.mxu0 0
  %1595 = vmatprep.subr.bf16.mxu0 0
  %1596 = vmatpush1.bf16.msra.mxu0 0
  %1597 = vmatprep.subr.bf16.mxu0 0
  %1598 = vmatpush1.bf16.msra.mxu0 0
  %1599 = vmatprep.subr.bf16.mxu0 0
  %1600 = vmatpush1.bf16.msra.mxu0 0
  %1601 = vmatprep.subr.bf16.mxu0 0
  %1602 = vmatpush1.bf16.msra.mxu0 0
  %1603 = vmatprep.subr.bf16.mxu0 0
  %1604 = vmatpush1.bf16.msra.mxu0 0
  %1605 = vmatprep.subr.bf16.mxu0 0
  %1606 = vmatpush1.bf16.msra.mxu0 0
  %1607 = vmatprep.mubr.bf16.mxu0 0
  %1608 = vmatmul.mubr.bf16.gmra.mrb[0].mxu0 %v1402
  %v1609 = vpop.f32.mrb[0].mxu0
  %v1610 = vadd.f32 0.0, %v1609
  %v1611 = vpop.f32.mrb[0].mxu0
  %v1612 = vadd.f32 0.0, %v1611
  %v1613 = vpop.f32.mrb[0].mxu0
  %v1614 = vpop.f32.mrb[0].mxu0
  %1615 = vdwg.mxu0
  %1616 = vmatprep.subr.bf16.mxu0 %v1432
  %1617 = vmatpush1.bf16.msra.mxu0 %v1429
  %1618 = vmatprep.subr.bf16.mxu0 0
  %1619 = vmatpush1.bf16.msra.mxu0 0
  %1620 = vmatprep.subr.bf16.mxu0 0
  %1621 = vmatpush1.bf16.msra.mxu0 0
  %1622 = vmatprep.subr.bf16.mxu0 0
  %1623 = vmatpush1.bf16.msra.mxu0 0
  %1624 = vmatprep.subr.bf16.mxu0 0
  %1625 = vmatpush1.bf16.msra.mxu0 0
  %1626 = vmatprep.subr.bf16.mxu0 0
  %1627 = vmatpush1.bf16.msra.mxu0 0
  %1628 = vmatprep.subr.bf16.mxu0 0
  %1629 = vmatpush1.bf16.msra.mxu0 0
  %1630 = vmatprep.subr.bf16.mxu0 0
  %1631 = vmatpush1.bf16.msra.mxu0 0
  %1632 = vmatprep.subr.bf16.mxu0 0
  %1633 = vmatpush1.bf16.msra.mxu0 0
  %1634 = vmatprep.subr.bf16.mxu0 0
  %1635 = vmatpush1.bf16.msra.mxu0 0
  %1636 = vmatprep.subr.bf16.mxu0 0
  %1637 = vmatpush1.bf16.msra.mxu0 0
  %1638 = vmatprep.subr.bf16.mxu0 0
  %1639 = vmatpush1.bf16.msra.mxu0 0
  %1640 = vmatprep.subr.bf16.mxu0 0
  %1641 = vmatpush1.bf16.msra.mxu0 0
  %1642 = vmatprep.subr.bf16.mxu0 0
  %1643 = vmatpush1.bf16.msra.mxu0 0
  %1644 = vmatprep.subr.bf16.mxu0 0
  %1645 = vmatpush1.bf16.msra.mxu0 0
  %1646 = vmatprep.subr.bf16.mxu0 0
  %1647 = vmatpush1.bf16.msra.mxu0 0
  %1648 = vmatprep.mubr.bf16.mxu0 0
  %1649 = vmatmul.mubr.bf16.gmra.mrb[0].mxu0 %v1402
  %v1650 = vpop.f32.mrb[0].mxu0
  %v1651 = vadd.f32 0.0, %v1650
  %v1652 = vpop.f32.mrb[0].mxu0
  %v1653 = vadd.f32 0.0, %v1652
  %v1654 = vpop.f32.mrb[0].mxu0
  %v1655 = vpop.f32.mrb[0].mxu0
  %1656 = vdwg.mxu0
  %1657 = vmatprep.subr.bf16.mxu0 %v1438
  %1658 = vmatpush1.bf16.msra.mxu0 %v1435
  %1659 = vmatprep.subr.bf16.mxu0 0
  %1660 = vmatpush1.bf16.msra.mxu0 0
  %1661 = vmatprep.subr.bf16.mxu0 0
  %1662 = vmatpush1.bf16.msra.mxu0 0
  %1663 = vmatprep.subr.bf16.mxu0 0
  %1664 = vmatpush1.bf16.msra.mxu0 0
  %1665 = vmatprep.subr.bf16.mxu0 0
  %1666 = vmatpush1.bf16.msra.mxu0 0
  %1667 = vmatprep.subr.bf16.mxu0 0
  %1668 = vmatpush1.bf16.msra.mxu0 0
  %1669 = vmatprep.subr.bf16.mxu0 0
  %1670 = vmatpush1.bf16.msra.mxu0 0
  %1671 = vmatprep.subr.bf16.mxu0 0
  %1672 = vmatpush1.bf16.msra.mxu0 0
  %1673 = vmatprep.subr.bf16.mxu0 0
  %1674 = vmatpush1.bf16.msra.mxu0 0
  %1675 = vmatprep.subr.bf16.mxu0 0
  %1676 = vmatpush1.bf16.msra.mxu0 0
  %1677 = vmatprep.subr.bf16.mxu0 0
  %1678 = vmatpush1.bf16.msra.mxu0 0
  %1679 = vmatprep.subr.bf16.mxu0 0
  %1680 = vmatpush1.bf16.msra.mxu0 0
  %1681 = vmatprep.subr.bf16.mxu0 0
  %1682 = vmatpush1.bf16.msra.mxu0 0
  %1683 = vmatprep.subr.bf16.mxu0 0
  %1684 = vmatpush1.bf16.msra.mxu0 0
  %1685 = vmatprep.subr.bf16.mxu0 0
  %1686 = vmatpush1.bf16.msra.mxu0 0
  %1687 = vmatprep.subr.bf16.mxu0 0
  %1688 = vmatpush1.bf16.msra.mxu0 0
  %1689 = vmatprep.mubr.bf16.mxu0 0
  %1690 = vmatmul.mubr.bf16.gmra.mrb[0].mxu0 %v1402
  %v1691 = vpop.f32.mrb[0].mxu0
  %v1692 = vadd.f32 0.0, %v1691
  %v1693 = vpop.f32.mrb[0].mxu0
  %v1694 = vadd.f32 0.0, %v1693
  %v1695 = vpop.f32.mrb[0].mxu0
  %v1696 = vpop.f32.mrb[0].mxu0
  %1697 = vdwg.mxu0
  %1698 = vmatprep.subr.bf16.mxu0 %v1444
  %1699 = vmatpush1.bf16.msra.mxu0 %v1441
  %1700 = vmatprep.subr.bf16.mxu0 0
  %1701 = vmatpush1.bf16.msra.mxu0 0
  %1702 = vmatprep.subr.bf16.mxu0 0
  %1703 = vmatpush1.bf16.msra.mxu0 0
  %1704 = vmatprep.subr.bf16.mxu0 0
  %1705 = vmatpush1.bf16.msra.mxu0 0
  %1706 = vmatprep.subr.bf16.mxu0 0
  %1707 = vmatpush1.bf16.msra.mxu0 0
  %1708 = vmatprep.subr.bf16.mxu0 0
  %1709 = vmatpush1.bf16.msra.mxu0 0
  %1710 = vmatprep.subr.bf16.mxu0 0
  %1711 = vmatpush1.bf16.msra.mxu0 0
  %1712 = vmatprep.subr.bf16.mxu0 0
  %1713 = vmatpush1.bf16.msra.mxu0 0
  %1714 = vmatprep.subr.bf16.mxu0 0
  %1715 = vmatpush1.bf16.msra.mxu0 0
  %1716 = vmatprep.subr.bf16.mxu0 0
  %1717 = vmatpush1.bf16.msra.mxu0 0
  %1718 = vmatprep.subr.bf16.mxu0 0
  %1719 = vmatpush1.bf16.msra.mxu0 0
  %1720 = vmatprep.subr.bf16.mxu0 0
  %1721 = vmatpush1.bf16.msra.mxu0 0
  %1722 = vmatprep.subr.bf16.mxu0 0
  %1723 = vmatpush1.bf16.msra.mxu0 0
  %1724 = vmatprep.subr.bf16.mxu0 0
  %1725 = vmatpush1.bf16.msra.mxu0 0
  %1726 = vmatprep.subr.bf16.mxu0 0
  %1727 = vmatpush1.bf16.msra.mxu0 0
  %1728 = vmatprep.subr.bf16.mxu0 0
  %1729 = vmatpush1.bf16.msra.mxu0 0
  %1730 = vmatprep.mubr.bf16.mxu0 0
  %1731 = vmatmul.mubr.bf16.gmra.mrb[0].mxu0 %v1402
  %v1732 = vpop.f32.mrb[0].mxu0
  %v1733 = vadd.f32 0.0, %v1732
  %v1734 = vpop.f32.mrb[0].mxu0
  %v1735 = vadd.f32 0.0, %v1734
  %v1736 = vpop.f32.mrb[0].mxu0
  %v1737 = vpop.f32.mrb[0].mxu0
  %1738 = vdwg.mxu0
  %1739 = vmatprep.subr.bf16.mxu0 %v1450
  %1740 = vmatpush1.bf16.msra.mxu0 %v1447
  %1741 = vmatprep.subr.bf16.mxu0 0
  %1742 = vmatpush1.bf16.msra.mxu0 0
  %1743 = vmatprep.subr.bf16.mxu0 0
  %1744 = vmatpush1.bf16.msra.mxu0 0
  %1745 = vmatprep.subr.bf16.mxu0 0
  %1746 = vmatpush1.bf16.msra.mxu0 0
  %1747 = vmatprep.subr.bf16.mxu0 0
  %1748 = vmatpush1.bf16.msra.mxu0 0
  %1749 = vmatprep.subr.bf16.mxu0 0
  %1750 = vmatpush1.bf16.msra.mxu0 0
  %1751 = vmatprep.subr.bf16.mxu0 0
  %1752 = vmatpush1.bf16.msra.mxu0 0
  %1753 = vmatprep.subr.bf16.mxu0 0
  %1754 = vmatpush1.bf16.msra.mxu0 0
  %1755 = vmatprep.subr.bf16.mxu0 0
  %1756 = vmatpush1.bf16.msra.mxu0 0
  %1757 = vmatprep.subr.bf16.mxu0 0
  %1758 = vmatpush1.bf16.msra.mxu0 0
  %1759 = vmatprep.subr.bf16.mxu0 0
  %1760 = vmatpush1.bf16.msra.mxu0 0
  %1761 = vmatprep.subr.bf16.mxu0 0
  %1762 = vmatpush1.bf16.msra.mxu0 0
  %1763 = vmatprep.subr.bf16.mxu0 0
  %1764 = vmatpush1.bf16.msra.mxu0 0
  %1765 = vmatprep.subr.bf16.mxu0 0
  %1766 = vmatpush1.bf16.msra.mxu0 0
  %1767 = vmatprep.subr.bf16.mxu0 0
  %1768 = vmatpush1.bf16.msra.mxu0 0
  %1769 = vmatprep.subr.bf16.mxu0 0
  %1770 = vmatpush1.bf16.msra.mxu0 0
  %1771 = vmatprep.mubr.bf16.mxu0 0
  %1772 = vmatmul.mubr.bf16.gmra.mrb[0].mxu0 %v1402
  %v1773 = vpop.f32.mrb[0].mxu0
  %v1774 = vadd.f32 0.0, %v1773
  %v1775 = vpop.f32.mrb[0].mxu0
  %v1776 = vadd.f32 0.0, %v1775
  %v1777 = vpop.f32.mrb[0].mxu0
  %v1778 = vpop.f32.mrb[0].mxu0
  %1779 = vdwg.mxu0
  %v1780 = vtanh.pop %v1487
  %v1781 = vtanh.pop %v1489
  %v1782 = vtanh.pop %v1528
  %v1783 = vtanh.pop %v1530
  %v1784 = vtanh.pop %v1569
  %v1785 = vtanh.pop %v1571
  %v1786 = vtanh.pop %v1610
  %v1787 = vtanh.pop %v1612
  %v1788 = vtanh.pop %v1651
  %v1789 = vtanh.pop %v1653
  %v1790 = vtanh.pop %v1692
  %v1791 = vtanh.pop %v1694
  %v1792 = vtanh.pop %v1733
  %v1793 = vtanh.pop %v1735
  %v1794 = vtanh.pop %v1774
  %v1795 = vtanh.pop %v1776
  %v1860 = vcombine.low %v442, %v443
  %v1861 = vcombine.low %v444, %v445
  %v1862 = vcombine.low %v446, %v447
  %v1863 = vcombine.low %v448, %v449
  %v1864 = vcombine.low %v450, %v451
  %v1865 = vcombine.low %v452, %v453
  %v1866 = vcombine.low %v454, %v455
  %v1867 = vcombine.low %v456, %v457
  %v1868 = vcombine.low %v888, %v889
  %v1869 = vcombine.low %v890, %v891
  %v1870 = vcombine.low %v892, %v893
  %v1871 = vcombine.low %v894, %v895
  %v1872 = vcombine.low %v896, %v897
  %v1873 = vcombine.low %v898, %v899
  %v1874 = vcombine.low %v900, %v901
  %v1875 = vcombine.low %v902, %v903
  %v1876 = vcombine.low %v1334, %v1335
  %v1877 = vcombine.low %v1336, %v1337
  %v1878 = vcombine.low %v1338, %v1339
  %v1879 = vcombine.low %v1340, %v1341
  %v1880 = vcombine.low %v1342, %v1343
  %v1881 = vcombine.low %v1344, %v1345
  %v1882 = vcombine.low %v1346, %v1347
  %v1883 = vcombine.low %v1348, %v1349
  %v1884 = vcombine.low %v1780, %v1781
  %v1885 = vcombine.low %v1782, %v1783
  %v1886 = vcombine.low %v1784, %v1785
  %v1887 = vcombine.low %v1786, %v1787
  %v1888 = vcombine.low %v1788, %v1789
  %v1889 = vcombine.low %v1790, %v1791
  %v1890 = vcombine.low %v1792, %v1793
  %v1891 = vcombine.low %v1794, %v1795
  %1924 = vst [vmem:[%s2] sm:$0x77] %v1860
  %1925 = vst [vmem:[%s2 + $0x8] sm:$0x77] %v1861
  %1926 = vst [vmem:[%s2 + $0x10] sm:$0x77] %v1862
  %1927 = vst [vmem:[%s2 + $0x18] sm:$0x77] %v1863
  %1928 = vst [vmem:[%s2 + $0x20] sm:$0x77] %v1864
  %1929 = vst [vmem:[%s2 + $0x28] sm:$0x77] %v1865
  %1930 = vst [vmem:[%s2 + $0x30] sm:$0x77] %v1866
  %1931 = vst [vmem:[%s2 + $0x38] sm:$0x77] %v1867
  %1932 = vst [vmem:[%s2 + $0x40] sm:$0x77] %v1868
  %1933 = vst [vmem:[%s2 + $0x48] sm:$0x77] %v1869
  %1934 = vst [vmem:[%s2 + $0x50] sm:$0x77] %v1870
  %1935 = vst [vmem:[%s2 + $0x58] sm:$0x77] %v1871
  %1936 = vst [vmem:[%s2 + $0x60] sm:$0x77] %v1872
  %1937 = vst [vmem:[%s2 + $0x68] sm:$0x77] %v1873
  %1938 = vst [vmem:[%s2 + $0x70] sm:$0x77] %v1874
  %1939 = vst [vmem:[%s2 + $0x78] sm:$0x77] %v1875
  %1940 = vst [vmem:[%s2 + $0x80] sm:$0x77] %v1876
  %1941 = vst [vmem:[%s2 + $0x88] sm:$0x77] %v1877
  %1942 = vst [vmem:[%s2 + $0x90] sm:$0x77] %v1878
  %1943 = vst [vmem:[%s2 + $0x98] sm:$0x77] %v1879
  %1944 = vst [vmem:[%s2 + $0xa0] sm:$0x77] %v1880
  %1945 = vst [vmem:[%s2 + $0xa8] sm:$0x77] %v1881
  %1946 = vst [vmem:[%s2 + $0xb0] sm:$0x77] %v1882
  %1947 = vst [vmem:[%s2 + $0xb8] sm:$0x77] %v1883
  %1948 = vst [vmem:[%s2 + $0xc0] sm:$0x77] %v1884
  %1949 = vst [vmem:[%s2 + $0xc8] sm:$0x77] %v1885
  %1950 = vst [vmem:[%s2 + $0xd0] sm:$0x77] %v1886
  %1951 = vst [vmem:[%s2 + $0xd8] sm:$0x77] %v1887
  %1952 = vst [vmem:[%s2 + $0xe0] sm:$0x77] %v1888
  %1953 = vst [vmem:[%s2 + $0xe8] sm:$0x77] %v1889
  %1954 = vst [vmem:[%s2 + $0xf0] sm:$0x77] %v1890
  %1955 = vst [vmem:[%s2 + $0xf8] sm:$0x77] %v1891
  // Predicated region
  $region10: #{_lambda_.9} parent=0 // pred_check
    _
  $region11: #{_lambda_.9} parent=0 // pred_check_branch
    %1957 = sbr.rel (0) target = $region13
  $region12: #{_lambda_.9} parent=0 // pred_region
    _
  $region13: #{_lambda_.9} parent=0 // pred_fallthru
    _
  // Predicated region
  $region14: #{_lambda_.9} parent=0 // pred_check
    _
  $region15: #{_lambda_.9} parent=0 // pred_check_branch
    %1959 = sbr.rel (0) target = $region17
  $region16: #{_lambda_.9} parent=0 // pred_region
    _
  $region17: #{_lambda_.9} parent=0 // pred_fallthru
    _

</llo_original>
